<compile_context>
chip_gen: v6e
topology: v6e:2x2x1
jax: 0.10.0
libtpu: 0.0.40
codegen_flags: <defaults>
</compile_context>

<pallas_src>
import jax
import jax.numpy as jnp
from jax.experimental import pallas as pl
from jax.experimental.pallas import tpu as pltpu


# ----------------------------------------------------------------------------
# Tiling helpers
# ----------------------------------------------------------------------------
def _pick_row_tile(H, per_row_bytes, fixed_bytes, budget_bytes, n_batch):
    """Largest divisor of H whose (double-buffered) per-step footprint fits the VMEM
    budget.  If that collapses the grid to fewer than ~4 steps, back off (keeping
    tiles >= 8 rows) so the pipeline / v7x megacore still has some depth."""
    divisors = [d for d in range(1, H + 1) if H % d == 0]
    fits = [d for d in divisors if fixed_bytes + d * per_row_bytes <= budget_bytes]
    if not fits:
        return 1
    th = max(fits)
    if n_batch * (H // th) < 4:
        deep = [d for d in fits if d >= 8 and n_batch * (H // d) >= 4]
        if deep:
            th = max(deep)
    return th


def _vmem_limit_bytes(need_bytes):
    # Raise the scoped-VMEM limit to match the tile plan (v5e default is 16 MiB,
    # v6e/v7x 32 MiB) while staying well under v7x's 64 MiB physical VMEM.
    return int(min(max(int(need_bytes * 1.5) + (2 << 20), 32 << 20), 56 << 20))


# ----------------------------------------------------------------------------
# Kernel 1: ConvTranspose2d(kernel_size=2, stride=2)
# Per-pixel matmul; the 2x2 scatter is absorbed into the output layout so no HBM
# transpose is needed afterwards (the wrapper reshape is a free bitcast).
# ----------------------------------------------------------------------------
def _make_upconv_kernel(fuse_dy, C2):
    if fuse_dy:
        def kernel(x_ref, w_ref, b_ref, o_ref):
            th, w, cin = x_ref.shape
            # NOTE: merging (TH, W) into the matmul M dim is a free relayout when W is
            # a multiple of the sublane tiling; it is always correct.
            x_flat = x_ref[...].reshape(th * w, cin)
            y = jnp.dot(x_flat, w_ref[0], preferred_element_type=jnp.float32)
            y = y + b_ref[...]
            for dy in range(2):          # free lane slice: C2 is a multiple of 128
                o_ref[:, dy, :, :] = (
                    y[:, dy * C2:(dy + 1) * C2].reshape(th, w, C2).astype(o_ref.dtype))
        return kernel

    def kernel(x_ref, w_ref, b_ref, o_ref):
        th, w, cin = x_ref.shape
        x_flat = x_ref[...].reshape(th * w, cin)
        for dy in range(2):
            y = jnp.dot(x_flat, w_ref[dy], preferred_element_type=jnp.float32)
            y = y + b_ref[...]
            o_ref[:, dy, :, :] = y.reshape(th, w, C2).astype(o_ref.dtype)
    return kernel


def upconv2x2_transpose(x_nhwc, w_t, b, *, vmem_budget_bytes=20 << 20):
    """ConvTranspose2d(kernel_size=2, stride=2).
    x_nhwc: (N, H, W, Cin); w_t: (Cin, Cout, 2, 2) (PyTorch layout); b: (Cout,).
    Returns bf16 (N, 2H, 2W, Cout)."""
    x = x_nhwc.astype(jnp.bfloat16)
    N, H, W, Cin = x.shape
    Cout = int(w_t.shape[1])
    C2 = 2 * Cout

    # Fuse the two dy taps into one matmul when the result splits by a free
    # 128-aligned lane slice (fills the 256-wide MXU on v6e/v7x).
    fuse_dy = (C2 % 128 == 0)
    if fuse_dy:
        # w[cin, dy*C2 + dx*Cout + oc] = w_t[cin, oc, dy, dx]
        w_up = jnp.transpose(w_t, (0, 2, 3, 1)).reshape(1, Cin, 2 * C2)
        b_up = jnp.tile(b, 4).reshape(1, 2 * C2).astype(jnp.float32)
    else:
        # w[dy, cin, dx*Cout + oc] = w_t[cin, oc, dy, dx]
        w_up = jnp.transpose(w_t, (2, 0, 3, 1)).reshape(2, Cin, C2)
        b_up = jnp.tile(b, 2).reshape(1, C2).astype(jnp.float32)
    w_up = w_up.astype(jnp.bfloat16)

    per_row = (W * Cin * 2 * 2                  # input rows: bf16, double-buffered
               + 2 * W * C2 * (2 * 2 + 4))      # output rows (bf16, dbl-buf) + f32 result regs
    fixed = 2 * w_up.size * 2 + b_up.size * 4 + (1 << 16)
    TH = _pick_row_tile(H, per_row, fixed, vmem_budget_bytes, N)
    T = H // TH
    vmem_limit = _vmem_limit_bytes(fixed + TH * per_row)

    out_raw = pl.pallas_call(
        _make_upconv_kernel(fuse_dy, C2),
        out_shape=jax.ShapeDtypeStruct((N, H, 2, W, C2), jnp.bfloat16),
        grid=(N, T),
        in_specs=[
            pl.BlockSpec((None, TH, W, Cin), lambda n, t: (n, t, 0, 0)),
            pl.BlockSpec(tuple(int(d) for d in w_up.shape), lambda n, t: (0, 0, 0)),
            pl.BlockSpec(tuple(int(d) for d in b_up.shape), lambda n, t: (0, 0)),
        ],
        out_specs=pl.BlockSpec((None, TH, 2, W, C2), lambda n, t: (n, t, 0, 0, 0)),
        compiler_params=pltpu.CompilerParams(
            dimension_semantics=("parallel", "parallel"),
            vmem_limit_bytes=vmem_limit),
    )(x, w_up, b_up)

    # (N, H, 2, W, 2*Cout) is byte-identical (row-major) to (N, 2H, 2W, Cout):
    # this reshape is a free bitcast, not a data movement.
    return out_raw.reshape(N, 2 * H, 2 * W, Cout)


# ----------------------------------------------------------------------------
# Kernel 2: fused [channel-concat of several inputs] -> 3x3 conv (stride 1,
# zero padding 1) -> bias -> ReLU, row-tiled with 1-row halo blocks.
# ----------------------------------------------------------------------------
def _make_conv3x3_relu_kernel(n_inputs, TH, Wf, Cout):
    def kernel(*refs):
        x_refs = refs[:3 * n_inputs]
        w_refs = refs[3 * n_inputs:4 * n_inputs]
        b_ref = refs[4 * n_inputs]
        o_ref = refs[4 * n_inputs + 1]
        pad_ref = refs[4 * n_inputs + 2]        # VMEM (2, TH, Wf+2, Cout) f32 staging

        t = pl.program_id(1)
        n_t = pl.num_programs(1)

        # Per-kx partial sums, kept in registers across ky taps and fused inputs.
        acc_kx = [None, None, None]

        for i in range(n_inputs):
            main = x_refs[3 * i][...]           # (TH, Wf, ci): rows of this tile
            top = x_refs[3 * i + 1][...]        # (1,  Wf, ci): row just above the tile
            bot = x_refs[3 * i + 2][...]        # (1,  Wf, ci): row just below the tile
            ci = main.shape[-1]
            # Zero padding at the image top/bottom is applied here (no wrapper jnp.pad).
            top = jnp.where(t == 0, jnp.zeros_like(top), top)
            bot = jnp.where(t == n_t - 1, jnp.zeros_like(bot), bot)
            w_ref = w_refs[i]                   # (3, 3, ci, Cout) bf16

            # Row windows for the three ky taps: leading-axis reassembly only.
            # TODO(synk): a single (TH+2)-row halo DMA per input (element-indexed spec)
            # would remove these copies and 2 of the 3 DMAs per input per step.
            if TH > 1:
                row_win = (
                    jnp.concatenate([top, main[:TH - 1]], axis=0),   # source rows r-1
                    main,                                            # source rows r
                    jnp.concatenate([main[1:], bot], axis=0),        # source rows r+1
                )
            else:
                row_win = (top, main, bot)

            for ky in range(3):
                xw = row_win[ky].reshape(TH * Wf, ci)
                for kx in range(3):
                    part = jnp.dot(xw, w_ref[ky, kx],
                                   preferred_element_type=jnp.float32)
                    acc_kx[kx] = part if acc_kx[kx] is None else acc_kx[kx] + part

        a0 = acc_kx[0].reshape(TH, Wf, Cout)
        a1 = acc_kx[1].reshape(TH, Wf, Cout)
        a2 = acc_kx[2].reshape(TH, Wf, Cout)

        # kx (column) combine: out[:, c] = a1[:, c] + a0[:, c-1] + a2[:, c+1] with the
        # image left/right zero padding falling out of the zeroed pad columns.  Each
        # shifted tap costs one plain store (column offset 1) and one plain load
        # (offset 0 / 2) through the staging slab -- no read-modify-write pass and no
        # full-size zero-init.
        zero_col = jnp.zeros((TH, 1, Cout), jnp.float32)
        pad_ref[0, :, 0:1, :] = zero_col
        pad_ref[0, :, 1:Wf + 1, :] = a0
        pad_ref[1, :, 1:Wf + 1, :] = a2
        pad_ref[1, :, Wf + 1:Wf + 2, :] = zero_col
        s0 = pad_ref[0, :, 0:Wf, :]             # = a0 shifted right by one column
        s2 = pad_ref[1, :, 2:Wf + 2, :]         # = a2 shifted left by one column

        out = jnp.maximum(a1 + s0 + s2 + b_ref[...], 0.0)
        o_ref[...] = out.astype(o_ref.dtype)

    return kernel


def conv3x3_relu(xs, w_hwio, b, *, out_dtype=jnp.bfloat16, vmem_budget_bytes=20 << 20):
    """3x3 conv (stride 1, zero padding 1) + bias + ReLU applied to the channel
    concatenation of the NHWC inputs in `xs`; the concat is fused into the kernel
    (never materialized in HBM).
    xs: list of (N, H, W, Ci); w_hwio: (3, 3, sum(Ci), Cout); b: (Cout,)."""
    if not isinstance(xs, (list, tuple)):
        xs = [xs]
    xs = [x.astype(jnp.bfloat16) for x in xs]            # bf16 MXU operands
    N, Hf, Wf, _ = xs[0].shape
    cins = [int(x.shape[-1]) for x in xs]
    Cout = int(w_hwio.shape[-1])
    assert int(w_hwio.shape[2]) == sum(cins)

    out_isize = jnp.dtype(out_dtype).itemsize
    per_row = (sum(cins) * Wf * 2 * 4                          # main tiles dbl-buf + row_win copies
               + Wf * Cout * (2 * out_isize + 3 * 4 + 2 * 4))  # out dbl-buf + f32 accs + staging
    fixed = (sum(2 * 9 * ci * Cout * 2 for ci in cins)         # weights, bf16, dbl-buffered
             + sum(2 * 2 * Wf * ci * 2 for ci in cins)         # halo rows, dbl-buffered
             + 4 * Cout + (1 << 16))
    TH = _pick_row_tile(Hf, per_row, fixed, vmem_budget_bytes, N)
    T = Hf // TH
    vmem_limit = _vmem_limit_bytes(fixed + TH * per_row)

    # Split the weight along the input-channel axis, one slice per fused input
    # (order matches torch.cat((from_up, from_down), 1)).
    ws, off = [], 0
    for ci in cins:
        ws.append(w_hwio[:, :, off:off + ci, :].astype(jnp.bfloat16))
        off += ci
    b3 = b.reshape(1, 1, Cout).astype(jnp.float32)

    operands, in_specs = [], []
    for x, ci in zip(xs, cins):
        operands += [x, x, x]
        in_specs += [
            # tile rows [t*TH, (t+1)*TH)
            pl.BlockSpec((None, TH, Wf, ci), lambda n, t: (n, t, 0, 0)),
            # single halo row above / below the tile (clamped; zeroed in-kernel at edges)
            pl.BlockSpec((None, 1, Wf, ci),
                         lambda n, t: (n, jnp.maximum(t * TH - 1, 0), 0, 0)),
            pl.BlockSpec((None, 1, Wf, ci),
                         lambda n, t: (n, jnp.minimum(t * TH + TH, Hf - 1), 0, 0)),
        ]
    for w_i in ws:
        operands.append(w_i)
        # Grid-invariant block.  (pipeline_mode=pl.Buffered(1) could drop the second
        # weight buffer for very deep decoder stages on v7x's 64 MiB VMEM.)
        in_specs.append(pl.BlockSpec(tuple(int(d) for d in w_i.shape),
                                     lambda n, t: (0, 0, 0, 0)))
    operands.append(b3)
    in_specs.append(pl.BlockSpec((1, 1, Cout), lambda n, t: (0, 0, 0)))

    kernel = _make_conv3x3_relu_kernel(len(xs), TH, Wf, Cout)

    return pl.pallas_call(
        kernel,
        out_shape=jax.ShapeDtypeStruct((N, Hf, Wf, Cout), out_dtype),
        grid=(N, T),
        in_specs=in_specs,
        out_specs=pl.BlockSpec((None, TH, Wf, Cout), lambda n, t: (n, t, 0, 0)),
        scratch_shapes=[pltpu.VMEM((2, TH, Wf + 2, Cout), jnp.float32)],
        compiler_params=pltpu.CompilerParams(
            dimension_semantics=("parallel", "parallel"),
            vmem_limit_bytes=vmem_limit),
    )(*operands)


# ----------------------------------------------------------------------------
# UpConv forward (merge_mode='concat', up_mode='transpose')
# ----------------------------------------------------------------------------
def upconv_forward(from_down_nchw, from_up_nchw, params):
    # TODO(synk): up_mode='upsample' (bilinear + conv1x1) and merge_mode='add' branches
    # of the PyTorch module are not implemented; only the default concat/transpose path.
    bf = jnp.bfloat16
    fd = jnp.transpose(from_down_nchw, (0, 2, 3, 1)).astype(bf)   # NCHW -> NHWC, bf16
    fu = jnp.transpose(from_up_nchw, (0, 2, 3, 1)).astype(bf)

    up = upconv2x2_transpose(fu, params["w_up"], params["b_up"])  # bf16 (N, 2H, 2W, Cout)
    # conv1 consumes torch.cat((from_up, from_down), 1); the concat is fused in-kernel.
    x = conv3x3_relu([up, fd], params["w1"], params["b1"], out_dtype=bf)
    x = conv3x3_relu([x], params["w2"], params["b2"], out_dtype=jnp.float32)

    return jnp.transpose(x, (0, 3, 1, 2))                         # back to NCHW (f32)


# ----------------------------------------------------------------------------
# Pure-JAX reference (independent code path) with the same bf16-operand /
# f32-accumulate / bf16-intermediate precision plan as the Pallas pipeline.
# ----------------------------------------------------------------------------
def _ref_forward(from_down_nchw, from_up_nchw, p):
    bf = jnp.bfloat16
    fd = jnp.transpose(from_down_nchw, (0, 2, 3, 1)).astype(bf)
    fu = jnp.transpose(from_up_nchw, (0, 2, 3, 1)).astype(bf)
    N, H, W, _ = fu.shape
    Cout = p["w_up"].shape[1]
    up = jnp.einsum("nhwc,coyx->nhywxo", fu, p["w_up"].astype(bf),
                    preferred_element_type=jnp.float32)
    up = (up.reshape(N, 2 * H, 2 * W, Cout) + p["b_up"]).astype(bf)
    x = jnp.concatenate([up, fd], axis=-1)

    def conv(x, w, b, odt):
        y = jax.lax.conv_general_dilated(
            x, w.astype(bf), window_strides=(1, 1), padding=((1, 1), (1, 1)),
            dimension_numbers=("NHWC", "HWIO", "NHWC"),
            preferred_element_type=jnp.float32)
        return jnp.maximum(y + b, 0.0).astype(odt)

    x = conv(x, p["w1"], p["b1"], bf)
    x = conv(x, p["w2"], p["b2"], jnp.float32)
    return jnp.transpose(x, (0, 3, 1, 2))


if __name__ == "__main__":
    def make_params(key, cin, cout):
        ks = jax.random.split(key, 6)

        def uinit(k, shape, fan_in):
            bound = 1.0 / jnp.sqrt(jnp.float32(fan_in))
            return jax.random.uniform(k, shape, jnp.float32, -bound, bound)

        return {
            # ConvTranspose2d(in, out, kernel_size=2, stride=2): weight (in, out, 2, 2)
            "w_up": uinit(ks[0], (cin, cout, 2, 2), cin * 4),
            "b_up": uinit(ks[1], (cout,), cin * 4),
            # conv1: 3x3 on 2*out_channels -> out_channels (HWIO layout here)
            "w1": uinit(ks[2], (3, 3, 2 * cout, cout), 2 * cout * 9),
            "b1": uinit(ks[3], (cout,), 2 * cout * 9),
            # conv2: 3x3 on out_channels -> out_channels
            "w2": uinit(ks[4], (3, 3, cout, cout), cout * 9),
            "b2": uinit(ks[5], (cout,), cout * 9),
        }

    key = jax.random.PRNGKey(0)
    fwd = jax.jit(upconv_forward)

    # Config A exercises the per-dy upconv path (2*Cout = 8 lanes, lane-sparse toy);
    # Config B exercises the fused-dy path (2*Cout = 128 lanes, lane-dense output).
    for (cin, cout, N, H, W) in [(8, 4, 2, 8, 8), (16, 64, 2, 8, 8)]:
        key, kp, ku, kd = jax.random.split(key, 4)
        params = make_params(kp, cin, cout)
        from_up = jax.random.normal(ku, (N, cin, H, W), jnp.float32)
        from_down = jax.random.normal(kd, (N, cout, 2 * H, 2 * W), jnp.float32)

        out = jax.block_until_ready(fwd(from_down, from_up, params))
        assert out.shape == (N, cout, 2 * H, 2 * W), out.shape

        ref = _ref_forward(from_down, from_up, params)
        err = float(jnp.max(jnp.abs(out - ref)))
        assert err < 2e-2, f"max abs error {err} (cin={cin}, cout={cout})"

    print("KERNEL_OK")
</pallas_src>

<mosaic_0001>
module attributes {stable_mosaic.version = 11 : i64} {
  func.func @kernel(%arg0: i32, %arg1: i32, %arg2: memref<1x8x8x8xbf16, #tpu.memory_space<vmem>>, %arg3: memref<2x8x8xbf16, #tpu.memory_space<vmem>>, %arg4: memref<1x8xf32, #tpu.memory_space<vmem>>, %arg5: memref<1x8x2x8x8xbf16, #tpu.memory_space<vmem>>) attributes {dimension_semantics = [#tpu.dimension_semantics<parallel>, #tpu.dimension_semantics<parallel>], iteration_bounds = array<i64: 2, 1>, scalar_prefetch = 0 : i64, scratch_operands = 0 : i64, tpu.core_type = #tpu.core_type<tc>, window_params = [{transform_indices = @transform_0, window_bounds = array<i64: 1, 8, 8, 8>}, {pipeline_mode = #tpu.pipeline_mode<synchronous>, transform_indices = @transform_1, window_bounds = array<i64: 2, 8, 8>}, {pipeline_mode = #tpu.pipeline_mode<synchronous>, transform_indices = @transform_2, window_bounds = array<i64: 1, 8>}, {transform_indices = @transform_3, window_bounds = array<i64: 1, 8, 2, 8, 8>}]} {
    %c0 = arith.constant 0 : index
    %c0_0 = arith.constant 0 : index
    %c0_1 = arith.constant 0 : index
    %c0_2 = arith.constant 0 : index
    %0 = vector.load %arg2[%c0, %c0_0, %c0_1, %c0_2] : memref<1x8x8x8xbf16, #tpu.memory_space<vmem>>, vector<1x8x8x8xbf16>
    %1 = vector.shape_cast %0 : vector<1x8x8x8xbf16> to vector<8x8x8xbf16>
    %2 = vector.shape_cast %1 : vector<8x8x8xbf16> to vector<64x8xbf16>
    %c0_3 = arith.constant 0 : index
    %c0_4 = arith.constant 0 : index
    %c0_5 = arith.constant 0 : index
    %3 = vector.load %arg3[%c0_3, %c0_4, %c0_5] : memref<2x8x8xbf16, #tpu.memory_space<vmem>>, vector<1x8x8xbf16>
    %4 = vector.shape_cast %3 : vector<1x8x8xbf16> to vector<8x8xbf16>
    %cst = arith.constant dense<0.000000e+00> : vector<64x8xf32>
    %5 = tpu.matmul %2, %4, %cst {dimension_numbers = #tpu.dot_dimension_numbers<[1], [0], [0], [1], [0, 0, 1, 1], [], []>} : vector<64x8xbf16>, vector<8x8xbf16>, vector<64x8xf32> -> vector<64x8xf32>
    %c0_6 = arith.constant 0 : index
    %c0_7 = arith.constant 0 : index
    %6 = vector.load %arg4[%c0_6, %c0_7] : memref<1x8xf32, #tpu.memory_space<vmem>>, vector<1x8xf32>
    %7 = vector.broadcast %6 : vector<1x8xf32> to vector<64x8xf32>
    %8 = arith.addf %5, %7 : vector<64x8xf32>
    %9 = vector.shape_cast %8 : vector<64x8xf32> to vector<8x8x8xf32>
    %10 = arith.truncf %9 : vector<8x8x8xf32> to vector<8x8x8xbf16>
    %c0_8 = arith.constant 0 : index
    %c0_9 = arith.constant 0 : index
    %c0_10 = arith.constant 0 : index
    %c0_11 = arith.constant 0 : index
    %c0_12 = arith.constant 0 : index
    %11 = vector.load %arg5[%c0_8, %c0_9, %c0_10, %c0_11, %c0_12] : memref<1x8x2x8x8xbf16, #tpu.memory_space<vmem>>, vector<1x8x1x8x8xbf16>
    %12 = vector.shape_cast %11 : vector<1x8x1x8x8xbf16> to vector<8x8x8xbf16>
    %13 = vector.shape_cast %10 : vector<8x8x8xbf16> to vector<1x8x1x8x8xbf16>
    tpu.vector_store %arg5[%c0_8, %c0_9, %c0_10, %c0_11, %c0_12], %13 {strides = array<i32>} : memref<1x8x2x8x8xbf16, #tpu.memory_space<vmem>>, vector<1x8x1x8x8xbf16>,
    %c1 = arith.constant 1 : index
    %c0_13 = arith.constant 0 : index
    %c0_14 = arith.constant 0 : index
    %14 = vector.load %arg3[%c1, %c0_13, %c0_14] : memref<2x8x8xbf16, #tpu.memory_space<vmem>>, vector<1x8x8xbf16>
    %15 = vector.shape_cast %14 : vector<1x8x8xbf16> to vector<8x8xbf16>
    %cst_15 = arith.constant dense<0.000000e+00> : vector<64x8xf32>
    %16 = tpu.matmul %2, %15, %cst_15 {dimension_numbers = #tpu.dot_dimension_numbers<[1], [0], [0], [1], [0, 0, 1, 1], [], []>} : vector<64x8xbf16>, vector<8x8xbf16>, vector<64x8xf32> -> vector<64x8xf32>
    %c0_16 = arith.constant 0 : index
    %c0_17 = arith.constant 0 : index
    %17 = vector.load %arg4[%c0_16, %c0_17] : memref<1x8xf32, #tpu.memory_space<vmem>>, vector<1x8xf32>
    %18 = vector.broadcast %17 : vector<1x8xf32> to vector<64x8xf32>
    %19 = arith.addf %16, %18 : vector<64x8xf32>
    %20 = vector.shape_cast %19 : vector<64x8xf32> to vector<8x8x8xf32>
    %21 = arith.truncf %20 : vector<8x8x8xf32> to vector<8x8x8xbf16>
    %c0_18 = arith.constant 0 : index
    %c0_19 = arith.constant 0 : index
    %c1_20 = arith.constant 1 : index
    %c0_21 = arith.constant 0 : index
    %c0_22 = arith.constant 0 : index
    %22 = vector.load %arg5[%c0_18, %c0_19, %c1_20, %c0_21, %c0_22] : memref<1x8x2x8x8xbf16, #tpu.memory_space<vmem>>, vector<1x8x1x8x8xbf16>
    %23 = vector.shape_cast %22 : vector<1x8x1x8x8xbf16> to vector<8x8x8xbf16>
    %24 = vector.shape_cast %21 : vector<8x8x8xbf16> to vector<1x8x1x8x8xbf16>
    tpu.vector_store %arg5[%c0_18, %c0_19, %c1_20, %c0_21, %c0_22], %24 {strides = array<i32>} : memref<1x8x2x8x8xbf16, #tpu.memory_space<vmem>>, vector<1x8x1x8x8xbf16>,
    return
  }
  func.func @transform_0(%arg0: i32, %arg1: i32) -> (i32, i32, i32, i32) {
    %c0_i32 = arith.constant 0 : i32
    %c0_i32_0 = arith.constant 0 : i32
    %c0_i32_1 = arith.constant 0 : i32
    return %arg0, %arg1, %c0_i32, %c0_i32_0 : i32, i32, i32, i32
  }
  func.func @transform_1(%arg0: i32, %arg1: i32) -> (i32, i32, i32) {
    %c0_i32 = arith.constant 0 : i32
    %c0_i32_0 = arith.constant 0 : i32
    %c0_i32_1 = arith.constant 0 : i32
    %c0_i32_2 = arith.constant 0 : i32
    return %c0_i32, %c0_i32_0, %c0_i32_1 : i32, i32, i32
  }
  func.func @transform_2(%arg0: i32, %arg1: i32) -> (i32, i32) {
    %c0_i32 = arith.constant 0 : i32
    %c0_i32_0 = arith.constant 0 : i32
    %c0_i32_1 = arith.constant 0 : i32
    return %c0_i32, %c0_i32_0 : i32, i32
  }
  func.func @transform_3(%arg0: i32, %arg1: i32) -> (i32, i32, i32, i32, i32) {
    %c0_i32 = arith.constant 0 : i32
    %c0_i32_0 = arith.constant 0 : i32
    %c0_i32_1 = arith.constant 0 : i32
    %c0_i32_2 = arith.constant 0 : i32
    return %arg0, %arg1, %c0_i32, %c0_i32_0, %c0_i32_1 : i32, i32, i32, i32, i32
  }
}

module attributes {stable_mosaic.version = 11 : i64} {
  func.func @kernel(%arg0: i32, %arg1: i32, %arg2: memref<1x8x16x4xbf16, #tpu.memory_space<vmem>>, %arg3: memref<1x1x16x4xbf16, #tpu.memory_space<vmem>>, %arg4: memref<1x1x16x4xbf16, #tpu.memory_space<vmem>>, %arg5: memref<1x8x16x4xbf16, #tpu.memory_space<vmem>>, %arg6: memref<1x1x16x4xbf16, #tpu.memory_space<vmem>>, %arg7: memref<1x1x16x4xbf16, #tpu.memory_space<vmem>>, %arg8: memref<3x3x4x4xbf16, #tpu.memory_space<vmem>>, %arg9: memref<3x3x4x4xbf16, #tpu.memory_space<vmem>>, %arg10: memref<1x1x4xf32, #tpu.memory_space<vmem>>, %arg11: memref<1x8x16x4xbf16, #tpu.memory_space<vmem>>, %arg12: memref<2x8x18x4xf32, #tpu.memory_space<vmem>>) attributes {dimension_semantics = [#tpu.dimension_semantics<parallel>, #tpu.dimension_semantics<parallel>], iteration_bounds = array<i64: 2, 2>, scalar_prefetch = 0 : i64, scratch_operands = 1 : i64, tpu.core_type = #tpu.core_type<tc>, window_params = [{transform_indices = @transform_0, window_bounds = array<i64: 1, 8, 16, 4>}, {transform_indices = @transform_1, window_bounds = array<i64: 1, 1, 16, 4>}, {transform_indices = @transform_2, window_bounds = array<i64: 1, 1, 16, 4>}, {transform_indices = @transform_3, window_bounds = array<i64: 1, 8, 16, 4>}, {transform_indices = @transform_4, window_bounds = array<i64: 1, 1, 16, 4>}, {transform_indices = @transform_5, window_bounds = array<i64: 1, 1, 16, 4>}, {pipeline_mode = #tpu.pipeline_mode<synchronous>, transform_indices = @transform_6, window_bounds = array<i64: 3, 3, 4, 4>}, {pipeline_mode = #tpu.pipeline_mode<synchronous>, transform_indices = @transform_7, window_bounds = array<i64: 3, 3, 4, 4>}, {pipeline_mode = #tpu.pipeline_mode<synchronous>, transform_indices = @transform_8, window_bounds = array<i64: 1, 1, 4>}, {transform_indices = @transform_9, window_bounds = array<i64: 1, 8, 16, 4>}]} {
    %c0 = arith.constant 0 : index
    %c0_0 = arith.constant 0 : index
    %c0_1 = arith.constant 0 : index
    %c0_2 = arith.constant 0 : index
    %0 = vector.load %arg2[%c0, %c0_0, %c0_1, %c0_2] : memref<1x8x16x4xbf16, #tpu.memory_space<vmem>>, vector<1x8x16x4xbf16>
    %1 = vector.shape_cast %0 : vector<1x8x16x4xbf16> to vector<8x16x4xbf16>
    %c0_3 = arith.constant 0 : index
    %c0_4 = arith.constant 0 : index
    %c0_5 = arith.constant 0 : index
    %c0_6 = arith.constant 0 : index
    %2 = vector.load %arg3[%c0_3, %c0_4, %c0_5, %c0_6] : memref<1x1x16x4xbf16, #tpu.memory_space<vmem>>, vector<1x1x16x4xbf16>
    %3 = vector.shape_cast %2 : vector<1x1x16x4xbf16> to vector<1x16x4xbf16>
    %c0_7 = arith.constant 0 : index
    %c0_8 = arith.constant 0 : index
    %c0_9 = arith.constant 0 : index
    %c0_10 = arith.constant 0 : index
    %4 = vector.load %arg4[%c0_7, %c0_8, %c0_9, %c0_10] : memref<1x1x16x4xbf16, #tpu.memory_space<vmem>>, vector<1x1x16x4xbf16>
    %5 = vector.shape_cast %4 : vector<1x1x16x4xbf16> to vector<1x16x4xbf16>
    %c0_i32 = arith.constant 0 : i32
    %6 = arith.cmpi eq, %arg1, %c0_i32 : i32
    %cst = arith.constant 0.000000e+00 : bf16
    %7 = vector.broadcast %cst : bf16 to vector<1x16x4xbf16>
    %8 = arith.select %6, %7, %3 : vector<1x16x4xbf16>
    %c1_i32 = arith.constant 1 : i32
    %9 = arith.cmpi eq, %arg1, %c1_i32 : i32
    %cst_11 = arith.constant 0.000000e+00 : bf16
    %10 = vector.broadcast %cst_11 : bf16 to vector<1x16x4xbf16>
    %11 = arith.select %9, %10, %5 : vector<1x16x4xbf16>
    %12 = vector.extract_strided_slice %1 {offsets = [0, 0, 0], sizes = [7, 16, 4], strides = [1, 1, 1]} : vector<8x16x4xbf16> to vector<7x16x4xbf16>
    %13 = tpu.concatenate %8, %12 in 0 : vector<1x16x4xbf16>, vector<7x16x4xbf16> -> vector<8x16x4xbf16>
    %14 = vector.extract_strided_slice %1 {offsets = [1, 0, 0], sizes = [7, 16, 4], strides = [1, 1, 1]} : vector<8x16x4xbf16> to vector<7x16x4xbf16>
    %15 = tpu.concatenate %14, %11 in 0 : vector<7x16x4xbf16>, vector<1x16x4xbf16> -> vector<8x16x4xbf16>
    %16 = vector.shape_cast %13 : vector<8x16x4xbf16> to vector<128x4xbf16>
    %c0_12 = arith.constant 0 : index
    %c0_13 = arith.constant 0 : index
    %c0_14 = arith.constant 0 : index
    %c0_15 = arith.constant 0 : index
    %17 = vector.load %arg8[%c0_12, %c0_13, %c0_14, %c0_15] : memref<3x3x4x4xbf16, #tpu.memory_space<vmem>>, vector<1x1x4x4xbf16>
    %18 = vector.shape_cast %17 : vector<1x1x4x4xbf16> to vector<4x4xbf16>
    %cst_16 = arith.constant dense<0.000000e+00> : vector<128x4xf32>
    %19 = tpu.matmul %16, %18, %cst_16 {dimension_numbers = #tpu.dot_dimension_numbers<[1], [0], [0], [1], [0, 0, 1, 1], [], []>} : vector<128x4xbf16>, vector<4x4xbf16>, vector<128x4xf32> -> vector<128x4xf32>
    %c0_17 = arith.constant 0 : index
    %c1 = arith.constant 1 : index
    %c0_18 = arith.constant 0 : index
    %c0_19 = arith.constant 0 : index
    %20 = vector.load %arg8[%c0_17, %c1, %c0_18, %c0_19] : memref<3x3x4x4xbf16, #tpu.memory_space<vmem>>, vector<1x1x4x4xbf16>
    %21 = vector.shape_cast %20 : vector<1x1x4x4xbf16> to vector<4x4xbf16>
    %cst_20 = arith.constant dense<0.000000e+00> : vector<128x4xf32>
    %22 = tpu.matmul %16, %21, %cst_20 {dimension_numbers = #tpu.dot_dimension_numbers<[1], [0], [0], [1], [0, 0, 1, 1], [], []>} : vector<128x4xbf16>, vector<4x4xbf16>, vector<128x4xf32> -> vector<128x4xf32>
    %c0_21 = arith.constant 0 : index
    %c2 = arith.constant 2 : index
    %c0_22 = arith.constant 0 : index
    %c0_23 = arith.constant 0 : index
    %23 = vector.load %arg8[%c0_21, %c2, %c0_22, %c0_23] : memref<3x3x4x4xbf16, #tpu.memory_space<vmem>>, vector<1x1x4x4xbf16>
    %24 = vector.shape_cast %23 : vector<1x1x4x4xbf16> to vector<4x4xbf16>
    %cst_24 = arith.constant dense<0.000000e+00> : vector<128x4xf32>
    %25 = tpu.matmul %16, %24, %cst_24 {dimension_numbers = #tpu.dot_dimension_numbers<[1], [0], [0], [1], [0, 0, 1, 1], [], []>} : vector<128x4xbf16>, vector<4x4xbf16>, vector<128x4xf32> -> vector<128x4xf32>
    %26 = vector.shape_cast %1 : vector<8x16x4xbf16> to vector<128x4xbf16>
    %c1_25 = arith.constant 1 : index
    %c0_26 = arith.constant 0 : index
    %c0_27 = arith.constant 0 : index
    %c0_28 = arith.constant 0 : index
    %27 = vector.load %arg8[%c1_25, %c0_26, %c0_27, %c0_28] : memref<3x3x4x4xbf16, #tpu.memory_space<vmem>>, vector<1x1x4x4xbf16>
    %28 = vector.shape_cast %27 : vector<1x1x4x4xbf16> to vector<4x4xbf16>
    %cst_29 = arith.constant dense<0.000000e+00> : vector<128x4xf32>
    %29 = tpu.matmul %26, %28, %cst_29 {dimension_numbers = #tpu.dot_dimension_numbers<[1], [0], [0], [1], [0, 0, 1, 1], [], []>} : vector<128x4xbf16>, vector<4x4xbf16>, vector<128x4xf32> -> vector<128x4xf32>
    %30 = arith.addf %19, %29 : vector<128x4xf32>
    %c1_30 = arith.constant 1 : index
    %c1_31 = arith.constant 1 : index
    %c0_32 = arith.constant 0 : index
    %c0_33 = arith.constant 0 : index
    %31 = vector.load %arg8[%c1_30, %c1_31, %c0_32, %c0_33] : memref<3x3x4x4xbf16, #tpu.memory_space<vmem>>, vector<1x1x4x4xbf16>
    %32 = vector.shape_cast %31 : vector<1x1x4x4xbf16> to vector<4x4xbf16>
    %cst_34 = arith.constant dense<0.000000e+00> : vector<128x4xf32>
    %33 = tpu.matmul %26, %32, %cst_34 {dimension_numbers = #tpu.dot_dimension_numbers<[1], [0], [0], [1], [0, 0, 1, 1], [], []>} : vector<128x4xbf16>, vector<4x4xbf16>, vector<128x4xf32> -> vector<128x4xf32>
    %34 = arith.addf %22, %33 : vector<128x4xf32>
    %c1_35 = arith.constant 1 : index
    %c2_36 = arith.constant 2 : index
    %c0_37 = arith.constant 0 : index
    %c0_38 = arith.constant 0 : index
    %35 = vector.load %arg8[%c1_35, %c2_36, %c0_37, %c0_38] : memref<3x3x4x4xbf16, #tpu.memory_space<vmem>>, vector<1x1x4x4xbf16>
    %36 = vector.shape_cast %35 : vector<1x1x4x4xbf16> to vector<4x4xbf16>
    %cst_39 = arith.constant dense<0.000000e+00> : vector<128x4xf32>
    %37 = tpu.matmul %26, %36, %cst_39 {dimension_numbers = #tpu.dot_dimension_numbers<[1], [0], [0], [1], [0, 0, 1, 1], [], []>} : vector<128x4xbf16>, vector<4x4xbf16>, vector<128x4xf32> -> vector<128x4xf32>
    %38 = arith.addf %25, %37 : vector<128x4xf32>
    %39 = vector.shape_cast %15 : vector<8x16x4xbf16> to vector<128x4xbf16>
    %c2_40 = arith.constant 2 : index
    %c0_41 = arith.constant 0 : index
    %c0_42 = arith.constant 0 : index
    %c0_43 = arith.constant 0 : index
    %40 = vector.load %arg8[%c2_40, %c0_41, %c0_42, %c0_43] : memref<3x3x4x4xbf16, #tpu.memory_space<vmem>>, vector<1x1x4x4xbf16>
    %41 = vector.shape_cast %40 : vector<1x1x4x4xbf16> to vector<4x4xbf16>
    %cst_44 = arith.constant dense<0.000000e+00> : vector<128x4xf32>
    %42 = tpu.matmul %39, %41, %cst_44 {dimension_numbers = #tpu.dot_dimension_numbers<[1], [0], [0], [1], [0, 0, 1, 1], [], []>} : vector<128x4xbf16>, vector<4x4xbf16>, vector<128x4xf32> -> vector<128x4xf32>
    %43 = arith.addf %30, %42 : vector<128x4xf32>
    %c2_45 = arith.constant 2 : index
    %c1_46 = arith.constant 1 : index
    %c0_47 = arith.constant 0 : index
    %c0_48 = arith.constant 0 : index
    %44 = vector.load %arg8[%c2_45, %c1_46, %c0_47, %c0_48] : memref<3x3x4x4xbf16, #tpu.memory_space<vmem>>, vector<1x1x4x4xbf16>
    %45 = vector.shape_cast %44 : vector<1x1x4x4xbf16> to vector<4x4xbf16>
    %cst_49 = arith.constant dense<0.000000e+00> : vector<128x4xf32>
    %46 = tpu.matmul %39, %45, %cst_49 {dimension_numbers = #tpu.dot_dimension_numbers<[1], [0], [0], [1], [0, 0, 1, 1], [], []>} : vector<128x4xbf16>, vector<4x4xbf16>, vector<128x4xf32> -> vector<128x4xf32>
    %47 = arith.addf %34, %46 : vector<128x4xf32>
    %c2_50 = arith.constant 2 : index
    %c2_51 = arith.constant 2 : index
    %c0_52 = arith.constant 0 : index
    %c0_53 = arith.constant 0 : index
    %48 = vector.load %arg8[%c2_50, %c2_51, %c0_52, %c0_53] : memref<3x3x4x4xbf16, #tpu.memory_space<vmem>>, vector<1x1x4x4xbf16>
    %49 = vector.shape_cast %48 : vector<1x1x4x4xbf16> to vector<4x4xbf16>
    %cst_54 = arith.constant dense<0.000000e+00> : vector<128x4xf32>
    %50 = tpu.matmul %39, %49, %cst_54 {dimension_numbers = #tpu.dot_dimension_numbers<[1], [0], [0], [1], [0, 0, 1, 1], [], []>} : vector<128x4xbf16>, vector<4x4xbf16>, vector<128x4xf32> -> vector<128x4xf32>
    %51 = arith.addf %38, %50 : vector<128x4xf32>
    %c0_55 = arith.constant 0 : index
    %c0_56 = arith.constant 0 : index
    %c0_57 = arith.constant 0 : index
    %c0_58 = arith.constant 0 : index
    %52 = vector.load %arg5[%c0_55, %c0_56, %c0_57, %c0_58] : memref<1x8x16x4xbf16, #tpu.memory_space<vmem>>, vector<1x8x16x4xbf16>
    %53 = vector.shape_cast %52 : vector<1x8x16x4xbf16> to vector<8x16x4xbf16>
    %c0_59 = arith.constant 0 : index
    %c0_60 = arith.constant 0 : index
    %c0_61 = arith.constant 0 : index
    %c0_62 = arith.constant 0 : index
    %54 = vector.load %arg6[%c0_59, %c0_60, %c0_61, %c0_62] : memref<1x1x16x4xbf16, #tpu.memory_space<vmem>>, vector<1x1x16x4xbf16>
    %55 = vector.shape_cast %54 : vector<1x1x16x4xbf16> to vector<1x16x4xbf16>
    %c0_63 = arith.constant 0 : index
    %c0_64 = arith.constant 0 : index
    %c0_65 = arith.constant 0 : index
    %c0_66 = arith.constant 0 : index
    %56 = vector.load %arg7[%c0_63, %c0_64, %c0_65, %c0_66] : memref<1x1x16x4xbf16, #tpu.memory_space<vmem>>, vector<1x1x16x4xbf16>
    %57 = vector.shape_cast %56 : vector<1x1x16x4xbf16> to vector<1x16x4xbf16>
    %c0_i32_67 = arith.constant 0 : i32
    %58 = arith.cmpi eq, %arg1, %c0_i32_67 : i32
    %cst_68 = arith.constant 0.000000e+00 : bf16
    %59 = vector.broadcast %cst_68 : bf16 to vector<1x16x4xbf16>
    %60 = arith.select %58, %59, %55 : vector<1x16x4xbf16>
    %c1_i32_69 = arith.constant 1 : i32
    %61 = arith.cmpi eq, %arg1, %c1_i32_69 : i32
    %cst_70 = arith.constant 0.000000e+00 : bf16
    %62 = vector.broadcast %cst_70 : bf16 to vector<1x16x4xbf16>
    %63 = arith.select %61, %62, %57 : vector<1x16x4xbf16>
    %64 = vector.extract_strided_slice %53 {offsets = [0, 0, 0], sizes = [7, 16, 4], strides = [1, 1, 1]} : vector<8x16x4xbf16> to vector<7x16x4xbf16>
    %65 = tpu.concatenate %60, %64 in 0 : vector<1x16x4xbf16>, vector<7x16x4xbf16> -> vector<8x16x4xbf16>
    %66 = vector.extract_strided_slice %53 {offsets = [1, 0, 0], sizes = [7, 16, 4], strides = [1, 1, 1]} : vector<8x16x4xbf16> to vector<7x16x4xbf16>
    %67 = tpu.concatenate %66, %63 in 0 : vector<7x16x4xbf16>, vector<1x16x4xbf16> -> vector<8x16x4xbf16>
    %68 = vector.shape_cast %65 : vector<8x16x4xbf16> to vector<128x4xbf16>
    %c0_71 = arith.constant 0 : index
    %c0_72 = arith.constant 0 : index
    %c0_73 = arith.constant 0 : index
    %c0_74 = arith.constant 0 : index
    %69 = vector.load %arg9[%c0_71, %c0_72, %c0_73, %c0_74] : memref<3x3x4x4xbf16, #tpu.memory_space<vmem>>, vector<1x1x4x4xbf16>
    %70 = vector.shape_cast %69 : vector<1x1x4x4xbf16> to vector<4x4xbf16>
    %cst_75 = arith.constant dense<0.000000e+00> : vector<128x4xf32>
    %71 = tpu.matmul %68, %70, %cst_75 {dimension_numbers = #tpu.dot_dimension_numbers<[1], [0], [0], [1], [0, 0, 1, 1], [], []>} : vector<128x4xbf16>, vector<4x4xbf16>, vector<128x4xf32> -> vector<128x4xf32>
    %72 = arith.addf %43, %71 : vector<128x4xf32>
    %c0_76 = arith.constant 0 : index
    %c1_77 = arith.constant 1 : index
    %c0_78 = arith.constant 0 : index
    %c0_79 = arith.constant 0 : index
    %73 = vector.load %arg9[%c0_76, %c1_77, %c0_78, %c0_79] : memref<3x3x4x4xbf16, #tpu.memory_space<vmem>>, vector<1x1x4x4xbf16>
    %74 = vector.shape_cast %73 : vector<1x1x4x4xbf16> to vector<4x4xbf16>
    %cst_80 = arith.constant dense<0.000000e+00> : vector<128x4xf32>
    %75 = tpu.matmul %68, %74, %cst_80 {dimension_numbers = #tpu.dot_dimension_numbers<[1], [0], [0], [1], [0, 0, 1, 1], [], []>} : vector<128x4xbf16>, vector<4x4xbf16>, vector<128x4xf32> -> vector<128x4xf32>
    %76 = arith.addf %47, %75 : vector<128x4xf32>
    %c0_81 = arith.constant 0 : index
    %c2_82 = arith.constant 2 : index
    %c0_83 = arith.constant 0 : index
    %c0_84 = arith.constant 0 : index
    %77 = vector.load %arg9[%c0_81, %c2_82, %c0_83, %c0_84] : memref<3x3x4x4xbf16, #tpu.memory_space<vmem>>, vector<1x1x4x4xbf16>
    %78 = vector.shape_cast %77 : vector<1x1x4x4xbf16> to vector<4x4xbf16>
    %cst_85 = arith.constant dense<0.000000e+00> : vector<128x4xf32>
    %79 = tpu.matmul %68, %78, %cst_85 {dimension_numbers = #tpu.dot_dimension_numbers<[1], [0], [0], [1], [0, 0, 1, 1], [], []>} : vector<128x4xbf16>, vector<4x4xbf16>, vector<128x4xf32> -> vector<128x4xf32>
    %80 = arith.addf %51, %79 : vector<128x4xf32>
    %81 = vector.shape_cast %53 : vector<8x16x4xbf16> to vector<128x4xbf16>
    %c1_86 = arith.constant 1 : index
    %c0_87 = arith.constant 0 : index
    %c0_88 = arith.constant 0 : index
    %c0_89 = arith.constant 0 : index
    %82 = vector.load %arg9[%c1_86, %c0_87, %c0_88, %c0_89] : memref<3x3x4x4xbf16, #tpu.memory_space<vmem>>, vector<1x1x4x4xbf16>
    %83 = vector.shape_cast %82 : vector<1x1x4x4xbf16> to vector<4x4xbf16>
    %cst_90 = arith.constant dense<0.000000e+00> : vector<128x4xf32>
    %84 = tpu.matmul %81, %83, %cst_90 {dimension_numbers = #tpu.dot_dimension_numbers<[1], [0], [0], [1], [0, 0, 1, 1], [], []>} : vector<128x4xbf16>, vector<4x4xbf16>, vector<128x4xf32> -> vector<128x4xf32>
    %85 = arith.addf %72, %84 : vector<128x4xf32>
    %c1_91 = arith.constant 1 : index
    %c1_92 = arith.constant 1 : index
    %c0_93 = arith.constant 0 : index
    %c0_94 = arith.constant 0 : index
    %86 = vector.load %arg9[%c1_91, %c1_92, %c0_93, %c0_94] : memref<3x3x4x4xbf16, #tpu.memory_space<vmem>>, vector<1x1x4x4xbf16>
    %87 = vector.shape_cast %86 : vector<1x1x4x4xbf16> to vector<4x4xbf16>
    %cst_95 = arith.constant dense<0.000000e+00> : vector<128x4xf32>
    %88 = tpu.matmul %81, %87, %cst_95 {dimension_numbers = #tpu.dot_dimension_numbers<[1], [0], [0], [1], [0, 0, 1, 1], [], []>} : vector<128x4xbf16>, vector<4x4xbf16>, vector<128x4xf32> -> vector<128x4xf32>
    %89 = arith.addf %76, %88 : vector<128x4xf32>
    %c1_96 = arith.constant 1 : index
    %c2_97 = arith.constant 2 : index
    %c0_98 = arith.constant 0 : index
    %c0_99 = arith.constant 0 : index
    %90 = vector.load %arg9[%c1_96, %c2_97, %c0_98, %c0_99] : memref<3x3x4x4xbf16, #tpu.memory_space<vmem>>, vector<1x1x4x4xbf16>
    %91 = vector.shape_cast %90 : vector<1x1x4x4xbf16> to vector<4x4xbf16>
    %cst_100 = arith.constant dense<0.000000e+00> : vector<128x4xf32>
    %92 = tpu.matmul %81, %91, %cst_100 {dimension_numbers = #tpu.dot_dimension_numbers<[1], [0], [0], [1], [0, 0, 1, 1], [], []>} : vector<128x4xbf16>, vector<4x4xbf16>, vector<128x4xf32> -> vector<128x4xf32>
    %93 = arith.addf %80, %92 : vector<128x4xf32>
    %94 = vector.shape_cast %67 : vector<8x16x4xbf16> to vector<128x4xbf16>
    %c2_101 = arith.constant 2 : index
    %c0_102 = arith.constant 0 : index
    %c0_103 = arith.constant 0 : index
    %c0_104 = arith.constant 0 : index
    %95 = vector.load %arg9[%c2_101, %c0_102, %c0_103, %c0_104] : memref<3x3x4x4xbf16, #tpu.memory_space<vmem>>, vector<1x1x4x4xbf16>
    %96 = vector.shape_cast %95 : vector<1x1x4x4xbf16> to vector<4x4xbf16>
    %cst_105 = arith.constant dense<0.000000e+00> : vector<128x4xf32>
    %97 = tpu.matmul %94, %96, %cst_105 {dimension_numbers = #tpu.dot_dimension_numbers<[1], [0], [0], [1], [0, 0, 1, 1], [], []>} : vector<128x4xbf16>, vector<4x4xbf16>, vector<128x4xf32> -> vector<128x4xf32>
    %98 = arith.addf %85, %97 : vector<128x4xf32>
    %c2_106 = arith.constant 2 : index
    %c1_107 = arith.constant 1 : index
    %c0_108 = arith.constant 0 : index
    %c0_109 = arith.constant 0 : index
    %99 = vector.load %arg9[%c2_106, %c1_107, %c0_108, %c0_109] : memref<3x3x4x4xbf16, #tpu.memory_space<vmem>>, vector<1x1x4x4xbf16>
    %100 = vector.shape_cast %99 : vector<1x1x4x4xbf16> to vector<4x4xbf16>
    %cst_110 = arith.constant dense<0.000000e+00> : vector<128x4xf32>
    %101 = tpu.matmul %94, %100, %cst_110 {dimension_numbers = #tpu.dot_dimension_numbers<[1], [0], [0], [1], [0, 0, 1, 1], [], []>} : vector<128x4xbf16>, vector<4x4xbf16>, vector<128x4xf32> -> vector<128x4xf32>
    %102 = arith.addf %89, %101 : vector<128x4xf32>
    %c2_111 = arith.constant 2 : index
    %c2_112 = arith.constant 2 : index
    %c0_113 = arith.constant 0 : index
    %c0_114 = arith.constant 0 : index
    %103 = vector.load %arg9[%c2_111, %c2_112, %c0_113, %c0_114] : memref<3x3x4x4xbf16, #tpu.memory_space<vmem>>, vector<1x1x4x4xbf16>
    %104 = vector.shape_cast %103 : vector<1x1x4x4xbf16> to vector<4x4xbf16>
    %cst_115 = arith.constant dense<0.000000e+00> : vector<128x4xf32>
    %105 = tpu.matmul %94, %104, %cst_115 {dimension_numbers = #tpu.dot_dimension_numbers<[1], [0], [0], [1], [0, 0, 1, 1], [], []>} : vector<128x4xbf16>, vector<4x4xbf16>, vector<128x4xf32> -> vector<128x4xf32>
    %106 = arith.addf %93, %105 : vector<128x4xf32>
    %107 = vector.shape_cast %98 : vector<128x4xf32> to vector<8x16x4xf32>
    %108 = vector.shape_cast %102 : vector<128x4xf32> to vector<8x16x4xf32>
    %109 = vector.shape_cast %106 : vector<128x4xf32> to vector<8x16x4xf32>
    %cst_116 = arith.constant 0.000000e+00 : f32
    %110 = vector.broadcast %cst_116 : f32 to vector<8x1x4xf32>
    %c0_117 = arith.constant 0 : index
    %c0_118 = arith.constant 0 : index
    %c0_119 = arith.constant 0 : index
    %c0_120 = arith.constant 0 : index
    %111 = vector.load %arg12[%c0_117, %c0_118, %c0_119, %c0_120] : memref<2x8x18x4xf32, #tpu.memory_space<vmem>>, vector<1x8x1x4xf32>
    %112 = vector.shape_cast %111 : vector<1x8x1x4xf32> to vector<8x1x4xf32>
    %113 = vector.shape_cast %110 : vector<8x1x4xf32> to vector<1x8x1x4xf32>
    tpu.vector_store %arg12[%c0_117, %c0_118, %c0_119, %c0_120], %113 {strides = array<i32>} : memref<2x8x18x4xf32, #tpu.memory_space<vmem>>, vector<1x8x1x4xf32>,
    %c0_121 = arith.constant 0 : index
    %c0_122 = arith.constant 0 : index
    %c1_123 = arith.constant 1 : index
    %c0_124 = arith.constant 0 : index
    %114 = vector.load %arg12[%c0_121, %c0_122, %c1_123, %c0_124] : memref<2x8x18x4xf32, #tpu.memory_space<vmem>>, vector<1x8x16x4xf32>
    %115 = vector.shape_cast %114 : vector<1x8x16x4xf32> to vector<8x16x4xf32>
    %116 = vector.shape_cast %107 : vector<8x16x4xf32> to vector<1x8x16x4xf32>
    tpu.vector_store %arg12[%c0_121, %c0_122, %c1_123, %c0_124], %116 {strides = array<i32>} : memref<2x8x18x4xf32, #tpu.memory_space<vmem>>, vector<1x8x16x4xf32>,
    %c1_125 = arith.constant 1 : index
    %c0_126 = arith.constant 0 : index
    %c1_127 = arith.constant 1 : index
    %c0_128 = arith.constant 0 : index
    %117 = vector.load %arg12[%c1_125, %c0_126, %c1_127, %c0_128] : memref<2x8x18x4xf32, #tpu.memory_space<vmem>>, vector<1x8x16x4xf32>
    %118 = vector.shape_cast %117 : vector<1x8x16x4xf32> to vector<8x16x4xf32>
    %119 = vector.shape_cast %109 : vector<8x16x4xf32> to vector<1x8x16x4xf32>
    tpu.vector_store %arg12[%c1_125, %c0_126, %c1_127, %c0_128], %119 {strides = array<i32>} : memref<2x8x18x4xf32, #tpu.memory_space<vmem>>, vector<1x8x16x4xf32>,
    %c1_129 = arith.constant 1 : index
    %c0_130 = arith.constant 0 : index
    %c17 = arith.constant 17 : index
    %c0_131 = arith.constant 0 : index
    %120 = vector.load %arg12[%c1_129, %c0_130, %c17, %c0_131] : memref<2x8x18x4xf32, #tpu.memory_space<vmem>>, vector<1x8x1x4xf32>
    %121 = vector.shape_cast %120 : vector<1x8x1x4xf32> to vector<8x1x4xf32>
    %122 = vector.shape_cast %110 : vector<8x1x4xf32> to vector<1x8x1x4xf32>
    tpu.vector_store %arg12[%c1_129, %c0_130, %c17, %c0_131], %122 {strides = array<i32>} : memref<2x8x18x4xf32, #tpu.memory_space<vmem>>, vector<1x8x1x4xf32>,
    %c0_132 = arith.constant 0 : index
    %c0_133 = arith.constant 0 : index
    %c0_134 = arith.constant 0 : index
    %c0_135 = arith.constant 0 : index
    %123 = vector.load %arg12[%c0_132, %c0_133, %c0_134, %c0_135] : memref<2x8x18x4xf32, #tpu.memory_space<vmem>>, vector<1x8x16x4xf32>
    %124 = vector.shape_cast %123 : vector<1x8x16x4xf32> to vector<8x16x4xf32>
    %c1_136 = arith.constant 1 : index
    %c0_137 = arith.constant 0 : index
    %c2_138 = arith.constant 2 : index
    %c0_139 = arith.constant 0 : index
    %125 = vector.load %arg12[%c1_136, %c0_137, %c2_138, %c0_139] : memref<2x8x18x4xf32, #tpu.memory_space<vmem>>, vector<1x8x16x4xf32>
    %126 = vector.shape_cast %125 : vector<1x8x16x4xf32> to vector<8x16x4xf32>
    %127 = arith.addf %108, %124 : vector<8x16x4xf32>
    %128 = arith.addf %127, %126 : vector<8x16x4xf32>
    %c0_140 = arith.constant 0 : index
    %c0_141 = arith.constant 0 : index
    %c0_142 = arith.constant 0 : index
    %129 = vector.load %arg10[%c0_140, %c0_141, %c0_142] : memref<1x1x4xf32, #tpu.memory_space<vmem>>, vector<1x1x4xf32>
    %130 = vector.broadcast %129 : vector<1x1x4xf32> to vector<8x16x4xf32>
    %131 = arith.addf %128, %130 : vector<8x16x4xf32>
    %cst_143 = arith.constant 0.000000e+00 : f32
    %132 = vector.broadcast %cst_143 : f32 to vector<8x16x4xf32>
    %133 = arith.maximumf %131, %132 : vector<8x16x4xf32>
    %134 = arith.truncf %133 : vector<8x16x4xf32> to vector<8x16x4xbf16>
    %c0_144 = arith.constant 0 : index
    %c0_145 = arith.constant 0 : index
    %c0_146 = arith.constant 0 : index
    %c0_147 = arith.constant 0 : index
    %135 = vector.load %arg11[%c0_144, %c0_145, %c0_146, %c0_147] : memref<1x8x16x4xbf16, #tpu.memory_space<vmem>>, vector<1x8x16x4xbf16>
    %136 = vector.shape_cast %135 : vector<1x8x16x4xbf16> to vector<8x16x4xbf16>
    %137 = vector.shape_cast %134 : vector<8x16x4xbf16> to vector<1x8x16x4xbf16>
    tpu.vector_store %arg11[%c0_144, %c0_145, %c0_146, %c0_147], %137 {strides = array<i32>} : memref<1x8x16x4xbf16, #tpu.memory_space<vmem>>, vector<1x8x16x4xbf16>,
    return
  }
  func.func @transform_0(%arg0: i32, %arg1: i32) -> (i32, i32, i32, i32) {
    %c0_i32 = arith.constant 0 : i32
    %c0_i32_0 = arith.constant 0 : i32
    %c0_i32_1 = arith.constant 0 : i32
    return %arg0, %arg1, %c0_i32, %c0_i32_0 : i32, i32, i32, i32
  }
  func.func @transform_1(%arg0: i32, %arg1: i32) -> (i32, i32, i32, i32) {
    %c8_i32 = arith.constant 8 : i32
    %0 = arith.muli %arg1, %c8_i32 : i32
    %c1_i32 = arith.constant 1 : i32
    %1 = arith.subi %0, %c1_i32 : i32
    %c0_i32 = arith.constant 0 : i32
    %2 = arith.maxsi %1, %c0_i32 : i32
    %c0_i32_0 = arith.constant 0 : i32
    %c0_i32_1 = arith.constant 0 : i32
    %c0_i32_2 = arith.constant 0 : i32
    return %arg0, %2, %c0_i32_0, %c0_i32_1 : i32, i32, i32, i32
  }
  func.func @transform_2(%arg0: i32, %arg1: i32) -> (i32, i32, i32, i32) {
    %c8_i32 = arith.constant 8 : i32
    %0 = arith.muli %arg1, %c8_i32 : i32
    %c8_i32_0 = arith.constant 8 : i32
    %1 = arith.addi %0, %c8_i32_0 : i32
    %c15_i32 = arith.constant 15 : i32
    %2 = arith.minsi %1, %c15_i32 : i32
    %c0_i32 = arith.constant 0 : i32
    %c0_i32_1 = arith.constant 0 : i32
    %c0_i32_2 = arith.constant 0 : i32
    return %arg0, %2, %c0_i32, %c0_i32_1 : i32, i32, i32, i32
  }
  func.func @transform_3(%arg0: i32, %arg1: i32) -> (i32, i32, i32, i32) {
    %c0_i32 = arith.constant 0 : i32
    %c0_i32_0 = arith.constant 0 : i32
    %c0_i32_1 = arith.constant 0 : i32
    return %arg0, %arg1, %c0_i32, %c0_i32_0 : i32, i32, i32, i32
  }
  func.func @transform_4(%arg0: i32, %arg1: i32) -> (i32, i32, i32, i32) {
    %c8_i32 = arith.constant 8 : i32
    %0 = arith.muli %arg1, %c8_i32 : i32
    %c1_i32 = arith.constant 1 : i32
    %1 = arith.subi %0, %c1_i32 : i32
    %c0_i32 = arith.constant 0 : i32
    %2 = arith.maxsi %1, %c0_i32 : i32
    %c0_i32_0 = arith.constant 0 : i32
    %c0_i32_1 = arith.constant 0 : i32
    %c0_i32_2 = arith.constant 0 : i32
    return %arg0, %2, %c0_i32_0, %c0_i32_1 : i32, i32, i32, i32
  }
  func.func @transform_5(%arg0: i32, %arg1: i32) -> (i32, i32, i32, i32) {
    %c8_i32 = arith.constant 8 : i32
    %0 = arith.muli %arg1, %c8_i32 : i32
    %c8_i32_0 = arith.constant 8 : i32
    %1 = arith.addi %0, %c8_i32_0 : i32
    %c15_i32 = arith.constant 15 : i32
    %2 = arith.minsi %1, %c15_i32 : i32
    %c0_i32 = arith.constant 0 : i32
    %c0_i32_1 = arith.constant 0 : i32
    %c0_i32_2 = arith.constant 0 : i32
    return %arg0, %2, %c0_i32, %c0_i32_1 : i32, i32, i32, i32
  }
  func.func @transform_6(%arg0: i32, %arg1: i32) -> (i32, i32, i32, i32) {
    %c0_i32 = arith.constant 0 : i32
    %c0_i32_0 = arith.constant 0 : i32
    %c0_i32_1 = arith.constant 0 : i32
    %c0_i32_2 = arith.constant 0 : i32
    %c0_i32_3 = arith.constant 0 : i32
    return %c0_i32, %c0_i32_0, %c0_i32_1, %c0_i32_2 : i32, i32, i32, i32
  }
  func.func @transform_7(%arg0: i32, %arg1: i32) -> (i32, i32, i32, i32) {
    %c0_i32 = arith.constant 0 : i32
    %c0_i32_0 = arith.constant 0 : i32
    %c0_i32_1 = arith.constant 0 : i32
    %c0_i32_2 = arith.constant 0 : i32
    %c0_i32_3 = arith.constant 0 : i32
    return %c0_i32, %c0_i32_0, %c0_i32_1, %c0_i32_2 : i32, i32, i32, i32
  }
  func.func @transform_8(%arg0: i32, %arg1: i32) -> (i32, i32, i32) {
    %c0_i32 = arith.constant 0 : i32
    %c0_i32_0 = arith.constant 0 : i32
    %c0_i32_1 = arith.constant 0 : i32
    %c0_i32_2 = arith.constant 0 : i32
    return %c0_i32, %c0_i32_0, %c0_i32_1 : i32, i32, i32
  }
  func.func @transform_9(%arg0: i32, %arg1: i32) -> (i32, i32, i32, i32) {
    %c0_i32 = arith.constant 0 : i32
    %c0_i32_0 = arith.constant 0 : i32
    %c0_i32_1 = arith.constant 0 : i32
    return %arg0, %arg1, %c0_i32, %c0_i32_0 : i32, i32, i32, i32
  }
}

module attributes {stable_mosaic.version = 11 : i64} {
  func.func @kernel(%arg0: i32, %arg1: i32, %arg2: memref<1x8x16x4xbf16, #tpu.memory_space<vmem>>, %arg3: memref<1x1x16x4xbf16, #tpu.memory_space<vmem>>, %arg4: memref<1x1x16x4xbf16, #tpu.memory_space<vmem>>, %arg5: memref<3x3x4x4xbf16, #tpu.memory_space<vmem>>, %arg6: memref<1x1x4xf32, #tpu.memory_space<vmem>>, %arg7: memref<1x8x16x4xf32, #tpu.memory_space<vmem>>, %arg8: memref<2x8x18x4xf32, #tpu.memory_space<vmem>>) attributes {dimension_semantics = [#tpu.dimension_semantics<parallel>, #tpu.dimension_semantics<parallel>], iteration_bounds = array<i64: 2, 2>, scalar_prefetch = 0 : i64, scratch_operands = 1 : i64, tpu.core_type = #tpu.core_type<tc>, window_params = [{transform_indices = @transform_0, window_bounds = array<i64: 1, 8, 16, 4>}, {transform_indices = @transform_1, window_bounds = array<i64: 1, 1, 16, 4>}, {transform_indices = @transform_2, window_bounds = array<i64: 1, 1, 16, 4>}, {pipeline_mode = #tpu.pipeline_mode<synchronous>, transform_indices = @transform_3, window_bounds = array<i64: 3, 3, 4, 4>}, {pipeline_mode = #tpu.pipeline_mode<synchronous>, transform_indices = @transform_4, window_bounds = array<i64: 1, 1, 4>}, {transform_indices = @transform_5, window_bounds = array<i64: 1, 8, 16, 4>}]} {
    %c0 = arith.constant 0 : index
    %c0_0 = arith.constant 0 : index
    %c0_1 = arith.constant 0 : index
    %c0_2 = arith.constant 0 : index
    %0 = vector.load %arg2[%c0, %c0_0, %c0_1, %c0_2] : memref<1x8x16x4xbf16, #tpu.memory_space<vmem>>, vector<1x8x16x4xbf16>
    %1 = vector.shape_cast %0 : vector<1x8x16x4xbf16> to vector<8x16x4xbf16>
    %c0_3 = arith.constant 0 : index
    %c0_4 = arith.constant 0 : index
    %c0_5 = arith.constant 0 : index
    %c0_6 = arith.constant 0 : index
    %2 = vector.load %arg3[%c0_3, %c0_4, %c0_5, %c0_6] : memref<1x1x16x4xbf16, #tpu.memory_space<vmem>>, vector<1x1x16x4xbf16>
    %3 = vector.shape_cast %2 : vector<1x1x16x4xbf16> to vector<1x16x4xbf16>
    %c0_7 = arith.constant 0 : index
    %c0_8 = arith.constant 0 : index
    %c0_9 = arith.constant 0 : index
    %c0_10 = arith.constant 0 : index
    %4 = vector.load %arg4[%c0_7, %c0_8, %c0_9, %c0_10] : memref<1x1x16x4xbf16, #tpu.memory_space<vmem>>, vector<1x1x16x4xbf16>
    %5 = vector.shape_cast %4 : vector<1x1x16x4xbf16> to vector<1x16x4xbf16>
    %c0_i32 = arith.constant 0 : i32
    %6 = arith.cmpi eq, %arg1, %c0_i32 : i32
    %cst = arith.constant 0.000000e+00 : bf16
    %7 = vector.broadcast %cst : bf16 to vector<1x16x4xbf16>
    %8 = arith.select %6, %7, %3 : vector<1x16x4xbf16>
    %c1_i32 = arith.constant 1 : i32
    %9 = arith.cmpi eq, %arg1, %c1_i32 : i32
    %cst_11 = arith.constant 0.000000e+00 : bf16
    %10 = vector.broadcast %cst_11 : bf16 to vector<1x16x4xbf16>
    %11 = arith.select %9, %10, %5 : vector<1x16x4xbf16>
    %12 = vector.extract_strided_slice %1 {offsets = [0, 0, 0], sizes = [7, 16, 4], strides = [1, 1, 1]} : vector<8x16x4xbf16> to vector<7x16x4xbf16>
    %13 = tpu.concatenate %8, %12 in 0 : vector<1x16x4xbf16>, vector<7x16x4xbf16> -> vector<8x16x4xbf16>
    %14 = vector.extract_strided_slice %1 {offsets = [1, 0, 0], sizes = [7, 16, 4], strides = [1, 1, 1]} : vector<8x16x4xbf16> to vector<7x16x4xbf16>
    %15 = tpu.concatenate %14, %11 in 0 : vector<7x16x4xbf16>, vector<1x16x4xbf16> -> vector<8x16x4xbf16>
    %16 = vector.shape_cast %13 : vector<8x16x4xbf16> to vector<128x4xbf16>
    %c0_12 = arith.constant 0 : index
    %c0_13 = arith.constant 0 : index
    %c0_14 = arith.constant 0 : index
    %c0_15 = arith.constant 0 : index
    %17 = vector.load %arg5[%c0_12, %c0_13, %c0_14, %c0_15] : memref<3x3x4x4xbf16, #tpu.memory_space<vmem>>, vector<1x1x4x4xbf16>
    %18 = vector.shape_cast %17 : vector<1x1x4x4xbf16> to vector<4x4xbf16>
    %cst_16 = arith.constant dense<0.000000e+00> : vector<128x4xf32>
    %19 = tpu.matmul %16, %18, %cst_16 {dimension_numbers = #tpu.dot_dimension_numbers<[1], [0], [0], [1], [0, 0, 1, 1], [], []>} : vector<128x4xbf16>, vector<4x4xbf16>, vector<128x4xf32> -> vector<128x4xf32>
    %c0_17 = arith.constant 0 : index
    %c1 = arith.constant 1 : index
    %c0_18 = arith.constant 0 : index
    %c0_19 = arith.constant 0 : index
    %20 = vector.load %arg5[%c0_17, %c1, %c0_18, %c0_19] : memref<3x3x4x4xbf16, #tpu.memory_space<vmem>>, vector<1x1x4x4xbf16>
    %21 = vector.shape_cast %20 : vector<1x1x4x4xbf16> to vector<4x4xbf16>
    %cst_20 = arith.constant dense<0.000000e+00> : vector<128x4xf32>
    %22 = tpu.matmul %16, %21, %cst_20 {dimension_numbers = #tpu.dot_dimension_numbers<[1], [0], [0], [1], [0, 0, 1, 1], [], []>} : vector<128x4xbf16>, vector<4x4xbf16>, vector<128x4xf32> -> vector<128x4xf32>
    %c0_21 = arith.constant 0 : index
    %c2 = arith.constant 2 : index
    %c0_22 = arith.constant 0 : index
    %c0_23 = arith.constant 0 : index
    %23 = vector.load %arg5[%c0_21, %c2, %c0_22, %c0_23] : memref<3x3x4x4xbf16, #tpu.memory_space<vmem>>, vector<1x1x4x4xbf16>
    %24 = vector.shape_cast %23 : vector<1x1x4x4xbf16> to vector<4x4xbf16>
    %cst_24 = arith.constant dense<0.000000e+00> : vector<128x4xf32>
    %25 = tpu.matmul %16, %24, %cst_24 {dimension_numbers = #tpu.dot_dimension_numbers<[1], [0], [0], [1], [0, 0, 1, 1], [], []>} : vector<128x4xbf16>, vector<4x4xbf16>, vector<128x4xf32> -> vector<128x4xf32>
    %26 = vector.shape_cast %1 : vector<8x16x4xbf16> to vector<128x4xbf16>
    %c1_25 = arith.constant 1 : index
    %c0_26 = arith.constant 0 : index
    %c0_27 = arith.constant 0 : index
    %c0_28 = arith.constant 0 : index
    %27 = vector.load %arg5[%c1_25, %c0_26, %c0_27, %c0_28] : memref<3x3x4x4xbf16, #tpu.memory_space<vmem>>, vector<1x1x4x4xbf16>
    %28 = vector.shape_cast %27 : vector<1x1x4x4xbf16> to vector<4x4xbf16>
    %cst_29 = arith.constant dense<0.000000e+00> : vector<128x4xf32>
    %29 = tpu.matmul %26, %28, %cst_29 {dimension_numbers = #tpu.dot_dimension_numbers<[1], [0], [0], [1], [0, 0, 1, 1], [], []>} : vector<128x4xbf16>, vector<4x4xbf16>, vector<128x4xf32> -> vector<128x4xf32>
    %30 = arith.addf %19, %29 : vector<128x4xf32>
    %c1_30 = arith.constant 1 : index
    %c1_31 = arith.constant 1 : index
    %c0_32 = arith.constant 0 : index
    %c0_33 = arith.constant 0 : index
    %31 = vector.load %arg5[%c1_30, %c1_31, %c0_32, %c0_33] : memref<3x3x4x4xbf16, #tpu.memory_space<vmem>>, vector<1x1x4x4xbf16>
    %32 = vector.shape_cast %31 : vector<1x1x4x4xbf16> to vector<4x4xbf16>
    %cst_34 = arith.constant dense<0.000000e+00> : vector<128x4xf32>
    %33 = tpu.matmul %26, %32, %cst_34 {dimension_numbers = #tpu.dot_dimension_numbers<[1], [0], [0], [1], [0, 0, 1, 1], [], []>} : vector<128x4xbf16>, vector<4x4xbf16>, vector<128x4xf32> -> vector<128x4xf32>
    %34 = arith.addf %22, %33 : vector<128x4xf32>
    %c1_35 = arith.constant 1 : index
    %c2_36 = arith.constant 2 : index
    %c0_37 = arith.constant 0 : index
    %c0_38 = arith.constant 0 : index
    %35 = vector.load %arg5[%c1_35, %c2_36, %c0_37, %c0_38] : memref<3x3x4x4xbf16, #tpu.memory_space<vmem>>, vector<1x1x4x4xbf16>
    %36 = vector.shape_cast %35 : vector<1x1x4x4xbf16> to vector<4x4xbf16>
    %cst_39 = arith.constant dense<0.000000e+00> : vector<128x4xf32>
    %37 = tpu.matmul %26, %36, %cst_39 {dimension_numbers = #tpu.dot_dimension_numbers<[1], [0], [0], [1], [0, 0, 1, 1], [], []>} : vector<128x4xbf16>, vector<4x4xbf16>, vector<128x4xf32> -> vector<128x4xf32>
    %38 = arith.addf %25, %37 : vector<128x4xf32>
    %39 = vector.shape_cast %15 : vector<8x16x4xbf16> to vector<128x4xbf16>
    %c2_40 = arith.constant 2 : index
    %c0_41 = arith.constant 0 : index
    %c0_42 = arith.constant 0 : index
    %c0_43 = arith.constant 0 : index
    %40 = vector.load %arg5[%c2_40, %c0_41, %c0_42, %c0_43] : memref<3x3x4x4xbf16, #tpu.memory_space<vmem>>, vector<1x1x4x4xbf16>
    %41 = vector.shape_cast %40 : vector<1x1x4x4xbf16> to vector<4x4xbf16>
    %cst_44 = arith.constant dense<0.000000e+00> : vector<128x4xf32>
    %42 = tpu.matmul %39, %41, %cst_44 {dimension_numbers = #tpu.dot_dimension_numbers<[1], [0], [0], [1], [0, 0, 1, 1], [], []>} : vector<128x4xbf16>, vector<4x4xbf16>, vector<128x4xf32> -> vector<128x4xf32>
    %43 = arith.addf %30, %42 : vector<128x4xf32>
    %c2_45 = arith.constant 2 : index
    %c1_46 = arith.constant 1 : index
    %c0_47 = arith.constant 0 : index
    %c0_48 = arith.constant 0 : index
    %44 = vector.load %arg5[%c2_45, %c1_46, %c0_47, %c0_48] : memref<3x3x4x4xbf16, #tpu.memory_space<vmem>>, vector<1x1x4x4xbf16>
    %45 = vector.shape_cast %44 : vector<1x1x4x4xbf16> to vector<4x4xbf16>
    %cst_49 = arith.constant dense<0.000000e+00> : vector<128x4xf32>
    %46 = tpu.matmul %39, %45, %cst_49 {dimension_numbers = #tpu.dot_dimension_numbers<[1], [0], [0], [1], [0, 0, 1, 1], [], []>} : vector<128x4xbf16>, vector<4x4xbf16>, vector<128x4xf32> -> vector<128x4xf32>
    %47 = arith.addf %34, %46 : vector<128x4xf32>
    %c2_50 = arith.constant 2 : index
    %c2_51 = arith.constant 2 : index
    %c0_52 = arith.constant 0 : index
    %c0_53 = arith.constant 0 : index
    %48 = vector.load %arg5[%c2_50, %c2_51, %c0_52, %c0_53] : memref<3x3x4x4xbf16, #tpu.memory_space<vmem>>, vector<1x1x4x4xbf16>
    %49 = vector.shape_cast %48 : vector<1x1x4x4xbf16> to vector<4x4xbf16>
    %cst_54 = arith.constant dense<0.000000e+00> : vector<128x4xf32>
    %50 = tpu.matmul %39, %49, %cst_54 {dimension_numbers = #tpu.dot_dimension_numbers<[1], [0], [0], [1], [0, 0, 1, 1], [], []>} : vector<128x4xbf16>, vector<4x4xbf16>, vector<128x4xf32> -> vector<128x4xf32>
    %51 = arith.addf %38, %50 : vector<128x4xf32>
    %52 = vector.shape_cast %43 : vector<128x4xf32> to vector<8x16x4xf32>
    %53 = vector.shape_cast %47 : vector<128x4xf32> to vector<8x16x4xf32>
    %54 = vector.shape_cast %51 : vector<128x4xf32> to vector<8x16x4xf32>
    %cst_55 = arith.constant 0.000000e+00 : f32
    %55 = vector.broadcast %cst_55 : f32 to vector<8x1x4xf32>
    %c0_56 = arith.constant 0 : index
    %c0_57 = arith.constant 0 : index
    %c0_58 = arith.constant 0 : index
    %c0_59 = arith.constant 0 : index
    %56 = vector.load %arg8[%c0_56, %c0_57, %c0_58, %c0_59] : memref<2x8x18x4xf32, #tpu.memory_space<vmem>>, vector<1x8x1x4xf32>
    %57 = vector.shape_cast %56 : vector<1x8x1x4xf32> to vector<8x1x4xf32>
    %58 = vector.shape_cast %55 : vector<8x1x4xf32> to vector<1x8x1x4xf32>
    tpu.vector_store %arg8[%c0_56, %c0_57, %c0_58, %c0_59], %58 {strides = array<i32>} : memref<2x8x18x4xf32, #tpu.memory_space<vmem>>, vector<1x8x1x4xf32>,
    %c0_60 = arith.constant 0 : index
    %c0_61 = arith.constant 0 : index
    %c1_62 = arith.constant 1 : index
    %c0_63 = arith.constant 0 : index
    %59 = vector.load %arg8[%c0_60, %c0_61, %c1_62, %c0_63] : memref<2x8x18x4xf32, #tpu.memory_space<vmem>>, vector<1x8x16x4xf32>
    %60 = vector.shape_cast %59 : vector<1x8x16x4xf32> to vector<8x16x4xf32>
    %61 = vector.shape_cast %52 : vector<8x16x4xf32> to vector<1x8x16x4xf32>
    tpu.vector_store %arg8[%c0_60, %c0_61, %c1_62, %c0_63], %61 {strides = array<i32>} : memref<2x8x18x4xf32, #tpu.memory_space<vmem>>, vector<1x8x16x4xf32>,
    %c1_64 = arith.constant 1 : index
    %c0_65 = arith.constant 0 : index
    %c1_66 = arith.constant 1 : index
    %c0_67 = arith.constant 0 : index
    %62 = vector.load %arg8[%c1_64, %c0_65, %c1_66, %c0_67] : memref<2x8x18x4xf32, #tpu.memory_space<vmem>>, vector<1x8x16x4xf32>
    %63 = vector.shape_cast %62 : vector<1x8x16x4xf32> to vector<8x16x4xf32>
    %64 = vector.shape_cast %54 : vector<8x16x4xf32> to vector<1x8x16x4xf32>
    tpu.vector_store %arg8[%c1_64, %c0_65, %c1_66, %c0_67], %64 {strides = array<i32>} : memref<2x8x18x4xf32, #tpu.memory_space<vmem>>, vector<1x8x16x4xf32>,
    %c1_68 = arith.constant 1 : index
    %c0_69 = arith.constant 0 : index
    %c17 = arith.constant 17 : index
    %c0_70 = arith.constant 0 : index
    %65 = vector.load %arg8[%c1_68, %c0_69, %c17, %c0_70] : memref<2x8x18x4xf32, #tpu.memory_space<vmem>>, vector<1x8x1x4xf32>
    %66 = vector.shape_cast %65 : vector<1x8x1x4xf32> to vector<8x1x4xf32>
    %67 = vector.shape_cast %55 : vector<8x1x4xf32> to vector<1x8x1x4xf32>
    tpu.vector_store %arg8[%c1_68, %c0_69, %c17, %c0_70], %67 {strides = array<i32>} : memref<2x8x18x4xf32, #tpu.memory_space<vmem>>, vector<1x8x1x4xf32>,
    %c0_71 = arith.constant 0 : index
    %c0_72 = arith.constant 0 : index
    %c0_73 = arith.constant 0 : index
    %c0_74 = arith.constant 0 : index
    %68 = vector.load %arg8[%c0_71, %c0_72, %c0_73, %c0_74] : memref<2x8x18x4xf32, #tpu.memory_space<vmem>>, vector<1x8x16x4xf32>
    %69 = vector.shape_cast %68 : vector<1x8x16x4xf32> to vector<8x16x4xf32>
    %c1_75 = arith.constant 1 : index
    %c0_76 = arith.constant 0 : index
    %c2_77 = arith.constant 2 : index
    %c0_78 = arith.constant 0 : index
    %70 = vector.load %arg8[%c1_75, %c0_76, %c2_77, %c0_78] : memref<2x8x18x4xf32, #tpu.memory_space<vmem>>, vector<1x8x16x4xf32>
    %71 = vector.shape_cast %70 : vector<1x8x16x4xf32> to vector<8x16x4xf32>
    %72 = arith.addf %53, %69 : vector<8x16x4xf32>
    %73 = arith.addf %72, %71 : vector<8x16x4xf32>
    %c0_79 = arith.constant 0 : index
    %c0_80 = arith.constant 0 : index
    %c0_81 = arith.constant 0 : index
    %74 = vector.load %arg6[%c0_79, %c0_80, %c0_81] : memref<1x1x4xf32, #tpu.memory_space<vmem>>, vector<1x1x4xf32>
    %75 = vector.broadcast %74 : vector<1x1x4xf32> to vector<8x16x4xf32>
    %76 = arith.addf %73, %75 : vector<8x16x4xf32>
    %cst_82 = arith.constant 0.000000e+00 : f32
    %77 = vector.broadcast %cst_82 : f32 to vector<8x16x4xf32>
    %78 = arith.maximumf %76, %77 : vector<8x16x4xf32>
    %c0_83 = arith.constant 0 : index
    %c0_84 = arith.constant 0 : index
    %c0_85 = arith.constant 0 : index
    %c0_86 = arith.constant 0 : index
    %79 = vector.load %arg7[%c0_83, %c0_84, %c0_85, %c0_86] : memref<1x8x16x4xf32, #tpu.memory_space<vmem>>, vector<1x8x16x4xf32>
    %80 = vector.shape_cast %79 : vector<1x8x16x4xf32> to vector<8x16x4xf32>
    %81 = vector.shape_cast %78 : vector<8x16x4xf32> to vector<1x8x16x4xf32>
    tpu.vector_store %arg7[%c0_83, %c0_84, %c0_85, %c0_86], %81 {strides = array<i32>} : memref<1x8x16x4xf32, #tpu.memory_space<vmem>>, vector<1x8x16x4xf32>,
    return
  }
  func.func @transform_0(%arg0: i32, %arg1: i32) -> (i32, i32, i32, i32) {
    %c0_i32 = arith.constant 0 : i32
    %c0_i32_0 = arith.constant 0 : i32
    %c0_i32_1 = arith.constant 0 : i32
    return %arg0, %arg1, %c0_i32, %c0_i32_0 : i32, i32, i32, i32
  }
  func.func @transform_1(%arg0: i32, %arg1: i32) -> (i32, i32, i32, i32) {
    %c8_i32 = arith.constant 8 : i32
    %0 = arith.muli %arg1, %c8_i32 : i32
    %c1_i32 = arith.constant 1 : i32
    %1 = arith.subi %0, %c1_i32 : i32
    %c0_i32 = arith.constant 0 : i32
    %2 = arith.maxsi %1, %c0_i32 : i32
    %c0_i32_0 = arith.constant 0 : i32
    %c0_i32_1 = arith.constant 0 : i32
    %c0_i32_2 = arith.constant 0 : i32
    return %arg0, %2, %c0_i32_0, %c0_i32_1 : i32, i32, i32, i32
  }
  func.func @transform_2(%arg0: i32, %arg1: i32) -> (i32, i32, i32, i32) {
    %c8_i32 = arith.constant 8 : i32
    %0 = arith.muli %arg1, %c8_i32 : i32
    %c8_i32_0 = arith.constant 8 : i32
    %1 = arith.addi %0, %c8_i32_0 : i32
    %c15_i32 = arith.constant 15 : i32
    %2 = arith.minsi %1, %c15_i32 : i32
    %c0_i32 = arith.constant 0 : i32
    %c0_i32_1 = arith.constant 0 : i32
    %c0_i32_2 = arith.constant 0 : i32
    return %arg0, %2, %c0_i32, %c0_i32_1 : i32, i32, i32, i32
  }
  func.func @transform_3(%arg0: i32, %arg1: i32) -> (i32, i32, i32, i32) {
    %c0_i32 = arith.constant 0 : i32
    %c0_i32_0 = arith.constant 0 : i32
    %c0_i32_1 = arith.constant 0 : i32
    %c0_i32_2 = arith.constant 0 : i32
    %c0_i32_3 = arith.constant 0 : i32
    return %c0_i32, %c0_i32_0, %c0_i32_1, %c0_i32_2 : i32, i32, i32, i32
  }
  func.func @transform_4(%arg0: i32, %arg1: i32) -> (i32, i32, i32) {
    %c0_i32 = arith.constant 0 : i32
    %c0_i32_0 = arith.constant 0 : i32
    %c0_i32_1 = arith.constant 0 : i32
    %c0_i32_2 = arith.constant 0 : i32
    return %c0_i32, %c0_i32_0, %c0_i32_1 : i32, i32, i32
  }
  func.func @transform_5(%arg0: i32, %arg1: i32) -> (i32, i32, i32, i32) {
    %c0_i32 = arith.constant 0 : i32
    %c0_i32_0 = arith.constant 0 : i32
    %c0_i32_1 = arith.constant 0 : i32
    return %arg0, %arg1, %c0_i32, %c0_i32_0 : i32, i32, i32, i32
  }
}

</mosaic_0001>

<llo_original>
// kernel: tile.8
$region0: #{tile.8}
  #allocation0 [shape = 's32[1]{0}', space=sflag, size = 0x4, scoped, tag = 'scoped memory for tile.8']
  %s0 = inlined_call_operand.vmem [shape: f32[4], index: 0, kind: input, shape index: {}]
  %s1 = inlined_call_operand.vmem [shape: f32[2,4], index: 1, kind: output, shape index: {}]
  // Predicated region
  $region2: #{tile.8} parent=0 // pred_check
    _
  $region3: #{tile.8} parent=0 // pred_check_branch
    %3 = sbr.rel (0) target = $region5
  $region4: #{tile.8} parent=0 // pred_region
    _
  $region5: #{tile.8} parent=0 // pred_fallthru
    _
  %v4 = vld [vmem:[%s0] ss:$0 sm:$0xff]
  %5 = vst [vmem:[%s1] sm:$0x3] %v4

// kernel: tile.9
$region0: #{tile.9}
  %s0 = inlined_call_operand.vmem [shape: f32[2,4], index: 0, kind: input, shape index: {}]
  %s1 = inlined_call_operand.vmem [shape: f32[1,8], index: 1, kind: output, shape index: {}]
  $region1: #{tile.9} parent=0
    #allocation0 [shape = 'u8[4096]{0}', space=vmem, size = 0x1000, scoped, tag = 'scoped mem for output reshape']
    #allocation1 [shape = 'u8[4096]{0}', space=vmem, size = 0x1000, scoped, tag = 'scoped mem for input reshape']
    %s3 = sshll.u32 1, 2
    %s4 = ssub.s32 %s3, 1
    %v5 = vld [vmem:[%s0] sm:%s4]
    %6 = vst [vmem:[#allocation1] sm:%s4] %v5
    %v7 = vld [vmem:[#allocation1] sm:$0x1]
    %vm8 = vcmask 31744
    %9 = vst.msk [vmem:[#allocation0] sm:$0x1] %vm8, %v7
    %s10 = scalar_lea.vmem [#allocation1], 1
    %v11 = vld [vmem:[%s10] sm:$0x1]
    %12 = vrot.lane.b32.xlu0 %v11, 4
    %v13 = vpop.permute.xlu0 %12
    %vm14 = vcmask 64544
    %15 = vst.msk [vmem:[#allocation0] sm:$0x1] %vm14, %v13
    %s17 = sshll.u32 1, 1
    %s18 = ssub.s32 %s17, 1
    %v20 = vld [vmem:[#allocation0] sm:%s18]
    %s21 = sshll.u32 1, 1
    %s22 = ssub.s32 %s21, 1
    %23 = vst [vmem:[%s1] sm:%s22] %v20

// kernel: upconv_forward.3
$region0: #{upconv_forward.3}
  #allocation0 [shape = 'u32[]', space=smem, size = 0x4, offset = 0x4, fixed_abs, tag = 'smem constant byte address 0x4 - core index']
  #allocation1 [shape = 'u32[144,128]{1,0:T(1,128)}', space=vmem, size = 0x12000, scoped, tag = 'internal scratch']
  %s0 = inlined_call_operand.vmem [shape: bf16[2,8,8,8], index: 0, kind: input, shape index: {}]
  %s1 = inlined_call_operand.vmem [shape: bf16[2,8,8], index: 1, kind: input, shape index: {}]
  %s2 = inlined_call_operand.vmem [shape: f32[1,8], index: 2, kind: input, shape index: {}]
  %s3 = inlined_call_operand.vmem [shape: bf16[2,8,2,8,8], index: 3, kind: output, shape index: {}]
  %s4 = sld [smem:[#allocation0]]
  $region45: #{upconv_forward.3} parent=0
    _
  %s6 = ssub.s32 1, %s4
  %s7 = scalar_select 0, %s6, %s4
  loop: start=0, step=1, limit=4
  $region2: #{upconv_forward.3} parent=0 // loop_pre_header
    _
  $region3: #{upconv_forward.3} parent=0 // loop_header
    %s9 = sphi 0, %s13
    %p10 = scmp.ge.s32.totalorder %s9, 4
    %s16 = sphi 0, %s28
    %s17 = sphi 0, %s24
    %s18 = sphi 0, %s16
    %s19 = sphi 0, %s17
    %s20 = sphi 0, %s18
    %s21 = sphi 0, %s19
    %s33 = sphi 0, %s35
    %s36 = sphi 0, %s33
    %s37 = sphi 0, %s36
    %s53 = sphi 0, %s37
    %s57 = sphi 0, %s57
    %s59 = sphi 0, %s57
    %s60 = sphi 0, %s59
    %s74 = sphi 0, %s60
    %s78 = sphi 0, %s78
    %s80 = sphi 0, %s78
    %s81 = sphi 0, %s80
    %s95 = sphi 0, %s81
    %s103 = sphi 0, %s105
    %s106 = sphi 0, %s103
    %s107 = sphi 0, %s106
    %s123 = sphi 0, %s107
  $region4: #{upconv_forward.3} parent=0 // loop_header_branch
    %12 = sbr.rel (%p10) target = $region8
  $region5: #{upconv_forward.3} parent=0 // loop_body
    %s14 = ssub.s32 %s9, 1
    %s15 = ssub.s32 %s9, 2
    %s22 = sadd.s32 1, %s17
    %p23 = scmp.ge.s32.totalorder %s22, 1
    %s24 = scalar_select %p23, 0, %s22
    %s25 = sadd.s32 1, %s16
    %s26 = scalar_select %p23, %s25, %s16
    %p27 = scmp.ge.s32.totalorder %s26, 2
    %s28 = scalar_select %p27, 0, %s26
    %s29 = ssub.s32 %s16, %s28
    %s30 = ssub.s32 %s17, %s24
    %s31 = sor.u32 %s29, %s30
    %p32 = scmp.eq.s32.totalorder %s31, 0
    %s34 = sadd.s32 %s33, 1
    %s35 = scalar_select %p32, %s33, %s34
    %p38 = pneg %p32
    %p39 = scmp.eq.s32.totalorder %s9, 1
    %p40 = por %p38, %p39
    %p41 = scmp.ne.s32.totalorder %s33, %s36
    %p42 = scmp.eq.s32.totalorder %s9, 0
    %p43 = por %p41, %p42
    %p44 = scmp.ne.s32.totalorder %s33, %s36
    %p45 = scmp.eq.s32.totalorder %s14, 1
    %p46 = por %p44, %p45
    %p47 = scmp.ne.s32.totalorder %s36, %s37
    %p48 = scmp.eq.s32.totalorder %s14, 0
    %p49 = por %p47, %p48
    %p50 = scmp.ne.s32.totalorder %s36, %s37
    %p51 = scmp.eq.s32.totalorder %s15, 1
    %p52 = por %p50, %p51
    %p54 = scmp.ne.s32.totalorder %s37, %s53
    %p55 = scmp.eq.s32.totalorder %s15, 0
    %p56 = por %p54, %p55
    %s58 = sadd.s32 %s57, 1
    %p61 = scmp.eq.s32.totalorder %s9, 1
    %p62 = scmp.ne.s32.totalorder %s57, %s59
    %p63 = scmp.eq.s32.totalorder %s9, 0
    %p64 = por %p62, %p63
    %p65 = scmp.ne.s32.totalorder %s57, %s59
    %p66 = scmp.eq.s32.totalorder %s14, 1
    %p67 = por %p65, %p66
    %p68 = scmp.ne.s32.totalorder %s59, %s60
    %p69 = scmp.eq.s32.totalorder %s14, 0
    %p70 = por %p68, %p69
    %p71 = scmp.ne.s32.totalorder %s59, %s60
    %p72 = scmp.eq.s32.totalorder %s15, 1
    %p73 = por %p71, %p72
    %p75 = scmp.ne.s32.totalorder %s60, %s74
    %p76 = scmp.eq.s32.totalorder %s15, 0
    %p77 = por %p75, %p76
    %s79 = sadd.s32 %s78, 1
    %p82 = scmp.eq.s32.totalorder %s9, 1
    %p83 = scmp.ne.s32.totalorder %s78, %s80
    %p84 = scmp.eq.s32.totalorder %s9, 0
    %p85 = por %p83, %p84
    %p86 = scmp.ne.s32.totalorder %s78, %s80
    %p87 = scmp.eq.s32.totalorder %s14, 1
    %p88 = por %p86, %p87
    %p89 = scmp.ne.s32.totalorder %s80, %s81
    %p90 = scmp.eq.s32.totalorder %s14, 0
    %p91 = por %p89, %p90
    %p92 = scmp.ne.s32.totalorder %s80, %s81
    %p93 = scmp.eq.s32.totalorder %s15, 1
    %p94 = por %p92, %p93
    %p96 = scmp.ne.s32.totalorder %s81, %s95
    %p97 = scmp.eq.s32.totalorder %s15, 0
    %p98 = por %p96, %p97
    %s99 = ssub.s32 %s16, %s28
    %s100 = ssub.s32 %s17, %s24
    %s101 = sor.u32 %s99, %s100
    %p102 = scmp.eq.s32.totalorder %s101, 0
    %s104 = sadd.s32 %s103, 1
    %s105 = scalar_select %p102, %s103, %s104
    %p108 = pneg %p102
    %p109 = scmp.eq.s32.totalorder %s9, 1
    %p110 = por %p108, %p109
    %p111 = scmp.ne.s32.totalorder %s103, %s106
    %p112 = scmp.eq.s32.totalorder %s9, 0
    %p113 = por %p111, %p112
    %p114 = scmp.ne.s32.totalorder %s103, %s106
    %p115 = scmp.eq.s32.totalorder %s14, 1
    %p116 = por %p114, %p115
    %p117 = scmp.ne.s32.totalorder %s106, %s107
    %p118 = scmp.eq.s32.totalorder %s14, 0
    %p119 = por %p117, %p118
    %p120 = scmp.ne.s32.totalorder %s106, %s107
    %p121 = scmp.eq.s32.totalorder %s15, 1
    %p122 = por %p120, %p121
    %p124 = scmp.ne.s32.totalorder %s107, %s123
    %p125 = scmp.eq.s32.totalorder %s15, 0
    %p126 = por %p124, %p125
    %p127 = scmp.le.s32.totalorder 1, %s9
    %p128 = scmp.lt.s32.totalorder %s9, 3
    %p129 = pnand %p127, %p128
    %p130 = pneg %p129
    // Predicated region
    $region9: #{upconv_forward.3} parent=5 // pred_check
      _
    $region10: #{upconv_forward.3} parent=5 // pred_check_branch
      %132 = sbr.rel (%p129) target = $region12
    $region11: #{upconv_forward.3} parent=5 // pred_region
      %s133 = ssub.s32 %s9, 1
      // Predicated region
      $region13: #{upconv_forward.3} parent=11 // pred_check
        %p134 = pneg %p70
      $region14: #{upconv_forward.3} parent=11 // pred_check_branch
        %136 = sbr.rel (%p134) target = $region16
      $region15: #{upconv_forward.3} parent=11 // pred_region
        _
      $region16: #{upconv_forward.3} parent=11 // pred_fallthru
        _
      // Predicated region
      $region17: #{upconv_forward.3} parent=11 // pred_check
        %p137 = pneg %p91
      $region18: #{upconv_forward.3} parent=11 // pred_check_branch
        %139 = sbr.rel (%p137) target = $region20
      $region19: #{upconv_forward.3} parent=11 // pred_region
        _
      $region20: #{upconv_forward.3} parent=11 // pred_fallthru
        _
    $region12: #{upconv_forward.3} parent=5 // pred_fallthru
      _
    %p140 = scmp.lt.s32.totalorder %s9, 2
    // Predicated region
    $region21: #{upconv_forward.3} parent=5 // pred_check
      %p141 = pneg %p140
    $region22: #{upconv_forward.3} parent=5 // pred_check_branch
      %143 = sbr.rel (%p141) target = $region24
    $region23: #{upconv_forward.3} parent=5 // pred_region
      // Predicated region
      $region25: #{upconv_forward.3} parent=23 // pred_check
        %p144 = pneg %p43
      $region26: #{upconv_forward.3} parent=23 // pred_check_branch
        %146 = sbr.rel (%p144) target = $region28
      $region27: #{upconv_forward.3} parent=23 // pred_region
        %s147 = smul.u32 8, %s17
        %p148 = scmp.lt.s32.totalorder %s16, 1
        %s149 = scalar_select %p148, %s16, 1
        %p150 = scmp.lt.s32.totalorder %s147, 7
        %s151 = scalar_select %p150, %s147, 7
        %s152 = smul.addr %s149, 8
        %s153 = sadd.s32 %s151, %s152
        %s154 = smul.addr %s153, 4
        %s155 = scalar_lea.vmem %s0, %s154
        %s156 = smul.u32 8, %s17
      $region28: #{upconv_forward.3} parent=23 // pred_fallthru
        _
    $region24: #{upconv_forward.3} parent=5 // pred_fallthru
      _
    %p157 = scmp.le.s32.totalorder 1, %s9
    %p158 = scmp.lt.s32.totalorder %s9, 3
    %p159 = pnand %p157, %p158
    %p160 = pneg %p159
    // Predicated region
    $region29: #{upconv_forward.3} parent=5 // pred_check
      _
    $region30: #{upconv_forward.3} parent=5 // pred_check_branch
      %162 = sbr.rel (%p159) target = $region32
    $region31: #{upconv_forward.3} parent=5 // pred_region
      %s163 = ssub.s32 %s9, 1
      %s164 = smul.u32 8, %s19
      %p165 = scmp.lt.s32.totalorder %s18, 1
      %s166 = scalar_select %p165, %s18, 1
      %p167 = scmp.lt.s32.totalorder %s164, 7
      %s168 = scalar_select %p167, %s164, 7
      %s169 = smul.addr %s166, 8
      %s170 = sadd.s32 %s168, %s169
      %s171 = smul.addr %s170, 4
      %s172 = scalar_lea.vmem %s0, %s171
      %p173 = pneg %p49
      %p174 = pneg %p46
      %p175 = pneg %p70
      %p176 = pneg %p67
      %p177 = pneg %p91
      %p178 = pneg %p88
      %p179 = pneg %p119
      %p180 = pneg %p116
      %s181 = smul.u32 8, %s19
      %p182 = scmp.lt.s32.totalorder %s18, 1
      %s183 = scalar_select %p182, %s18, 1
      %p184 = scmp.lt.s32.totalorder %s181, 7
      %s185 = scalar_select %p184, %s181, 7
      %s186 = smul.addr %s185, 2
      %s187 = smul.addr %s183, 16
      %s188 = sadd.s32 %s186, %s187
      %s189 = smul.addr %s188, 4
      %s190 = scalar_lea.vmem %s3, %s189
      %s191 = smul.u32 8, %s19
      %p192 = scmp.lt.s32.totalorder %s18, 1
      %s193 = scalar_select %p192, %s18, 1
      %p194 = scmp.lt.s32.totalorder %s191, 7
      %s195 = scalar_select %p194, %s191, 7
      %s196 = smul.addr %s193, 8
      %s197 = sadd.s32 %s195, %s196
      %s198 = smul.addr %s197, 4
      %s199 = scalar_lea.vmem %s0, %s198
      %s200 = smul.u32 8, %s19
      %s201 = smul.u32 8, %s19
      %p202 = scmp.lt.s32.totalorder %s18, 1
      %s203 = scalar_select %p202, %s18, 1
      %p204 = scmp.lt.s32.totalorder %s201, 7
      %s205 = scalar_select %p204, %s201, 7
      %s206 = smul.addr %s205, 2
      %s207 = smul.addr %s203, 16
      %s208 = sadd.s32 %s206, %s207
      %s209 = smul.addr %s208, 4
      %s210 = scalar_lea.vmem %s3, %s209
      %s211 = smul.u32 8, %s19
      %v213 = vld [vmem:[%s199] sm:$0xf]
      %v214 = vld [vmem:[%s199 + $0x4] sm:$0xf]
      %v215 = vld [vmem:[%s199 + $0x8] sm:$0xf]
      %v216 = vld [vmem:[%s199 + $0xc] sm:$0xf]
      %v217 = vld [vmem:[%s199 + $0x10] sm:$0xf]
      %v218 = vld [vmem:[%s199 + $0x14] sm:$0xf]
      %v219 = vld [vmem:[%s199 + $0x18] sm:$0xf]
      %v220 = vld [vmem:[%s199 + $0x1c] sm:$0xf]
      %v221 = vld [vmem:[%s1] sm:$0xf]
      %v222 = vld [vmem:[%s2] sm:$0x1]
      %v224 = vlaneseq
      %v225 = vshrl.u32 %v224, 7
      %v226 = vsub.s32 0, %v225
      %v227 = vrot.slane %v222, %v226
      %v237 = vunpack.c.l.b16 %v213
      %v238 = vunpack.c.l.b16 %v214
      %v239 = vunpack.c.l.b16 %v215
      %v240 = vunpack.c.l.b16 %v216
      %v241 = vunpack.c.l.b16 %v217
      %v242 = vunpack.c.l.b16 %v218
      %v243 = vunpack.c.l.b16 %v219
      %v244 = vunpack.c.l.b16 %v220
      %v245 = vpack.c.b16 %v238, %v237
      %v246 = vpack.c.b16 %v240, %v239
      %v247 = vpack.c.b16 %v242, %v241
      %v248 = vpack.c.b16 %v244, %v243
      %vm249 = vcmask 64512
      %v251 = vsel %vm249, %v245, 0
      %v254 = vsel %vm249, %v246, 0
      %v257 = vsel %vm249, %v247, 0
      %v260 = vsel %vm249, %v248, 0
      %vm262 = vcmask 1043456
      %v264 = vsel %vm262, %v221, 0
      %266 = vmatprep.subr.bf16.mxu0 0
      %267 = vmatpush1.bf16.msra.mxu0 0
      %268 = vmatprep.subr.bf16.mxu0 0
      %269 = vmatpush1.bf16.msra.mxu0 0
      %270 = vmatprep.subr.bf16.mxu0 0
      %271 = vmatpush1.bf16.msra.mxu0 0
      %272 = vmatprep.subr.bf16.mxu0 0
      %273 = vmatpush1.bf16.msra.mxu0 0
      %274 = vmatprep.subr.bf16.mxu0 0
      %275 = vmatpush1.bf16.msra.mxu0 0
      %276 = vmatprep.subr.bf16.mxu0 0
      %277 = vmatpush1.bf16.msra.mxu0 0
      %278 = vmatprep.subr.bf16.mxu0 0
      %279 = vmatpush1.bf16.msra.mxu0 0
      %280 = vmatprep.subr.bf16.mxu0 0
      %281 = vmatpush1.bf16.msra.mxu0 %v264
      %282 = vmatprep.subr.bf16.mxu0 0
      %283 = vmatpush2.bf16.msra.mxu0 0
      %284 = vmatprep.subr.bf16.mxu0 0
      %285 = vmatpush2.bf16.msra.mxu0 0
      %286 = vmatprep.subr.bf16.mxu0 0
      %287 = vmatpush2.bf16.msra.mxu0 0
      %288 = vmatprep.subr.bf16.mxu0 0
      %289 = vmatpush2.bf16.msra.mxu0 0
      %290 = vmatprep.subr.bf16.mxu0 0
      %291 = vmatpush2.bf16.msra.mxu0 0
      %292 = vmatprep.subr.bf16.mxu0 0
      %293 = vmatpush2.bf16.msra.mxu0 0
      %294 = vmatprep.subr.bf16.mxu0 0
      %295 = vmatpush2.bf16.msra.mxu0 0
      %296 = vmatprep.subr.bf16.mxu0 0
      %297 = vmatpush2.bf16.msra.mxu0 0
      %298 = vmatprep.mubr.bf16.mxu0 0
      %299 = vmatmul.mubr.bf16.gmra.mxu0 %v251
      %v300 = vpop.f32.mrf.mxu0
      %v301 = vadd.f32 %v227, %v300
      %v302 = vpop.f32.mrf.mxu0
      %v303 = vpop.f32.mrf.mxu0
      %v304 = vadd.f32 %v227, %v303
      %v305 = vpop.f32.mrf.mxu0
      %306 = vmatprep.mubr.bf16.mxu0 0
      %307 = vmatmul.mubr.bf16.gmra.mxu0 %v254
      %v308 = vpop.f32.mrf.mxu0
      %v309 = vadd.f32 %v227, %v308
      %v310 = vpop.f32.mrf.mxu0
      %v311 = vpop.f32.mrf.mxu0
      %v312 = vadd.f32 %v227, %v311
      %v313 = vpop.f32.mrf.mxu0
      %314 = vmatprep.mubr.bf16.mxu0 0
      %315 = vmatmul.mubr.bf16.gmra.mxu0 %v257
      %v316 = vpop.f32.mrf.mxu0
      %v317 = vadd.f32 %v227, %v316
      %v318 = vpop.f32.mrf.mxu0
      %v319 = vpop.f32.mrf.mxu0
      %v320 = vadd.f32 %v227, %v319
      %v321 = vpop.f32.mrf.mxu0
      %322 = vmatprep.mubr.bf16.mxu0 0
      %323 = vmatmul.mubr.bf16.gmra.mxu0 %v260
      %v324 = vpop.f32.mrf.mxu0
      %v325 = vadd.f32 %v227, %v324
      %v326 = vpop.f32.mrf.mxu0
      %v327 = vpop.f32.mrf.mxu0
      %v328 = vadd.f32 %v227, %v327
      %v329 = vpop.f32.mrf.mxu0
      %330 = vdwg.mxu0
      %v331 = vpack.c.bf16 %v301, %v301
      %v332 = vpack.c.bf16 %v304, %v304
      %v333 = vpack.c.bf16 %v309, %v309
      %v334 = vpack.c.bf16 %v312, %v312
      %v335 = vpack.c.bf16 %v317, %v317
      %v336 = vpack.c.bf16 %v320, %v320
      %v337 = vpack.c.bf16 %v325, %v325
      %v338 = vpack.c.bf16 %v328, %v328
      %vm339 = vcmask 60416
      %340 = vst.msk [vmem:[%s210] sm:$0xf] %vm339, %v331
      %341 = vst.msk [vmem:[%s210 + $0x8] sm:$0xf] %vm339, %v332
      %342 = vst.msk [vmem:[%s210 + $0x10] sm:$0xf] %vm339, %v333
      %343 = vst.msk [vmem:[%s210 + $0x18] sm:$0xf] %vm339, %v334
      %344 = vst.msk [vmem:[%s210 + $0x20] sm:$0xf] %vm339, %v335
      %345 = vst.msk [vmem:[%s210 + $0x28] sm:$0xf] %vm339, %v336
      %346 = vst.msk [vmem:[%s210 + $0x30] sm:$0xf] %vm339, %v337
      %347 = vst.msk [vmem:[%s210 + $0x38] sm:$0xf] %vm339, %v338
      %s348 = scalar_lea.vmem %s1, 4
      %v349 = vld [vmem:[%s348] sm:$0xf]
      %v350 = vld [vmem:[%s2] sm:$0x1]
      %v352 = vlaneseq
      %v353 = vshrl.u32 %v352, 7
      %v354 = vsub.s32 0, %v353
      %v355 = vrot.slane %v350, %v354
      %v358 = vsel %vm262, %v349, 0
      %360 = vmatprep.subr.bf16.mxu0 0
      %361 = vmatpush1.bf16.msra.mxu0 0
      %362 = vmatprep.subr.bf16.mxu0 0
      %363 = vmatpush1.bf16.msra.mxu0 0
      %364 = vmatprep.subr.bf16.mxu0 0
      %365 = vmatpush1.bf16.msra.mxu0 0
      %366 = vmatprep.subr.bf16.mxu0 0
      %367 = vmatpush1.bf16.msra.mxu0 0
      %368 = vmatprep.subr.bf16.mxu0 0
      %369 = vmatpush1.bf16.msra.mxu0 0
      %370 = vmatprep.subr.bf16.mxu0 0
      %371 = vmatpush1.bf16.msra.mxu0 0
      %372 = vmatprep.subr.bf16.mxu0 0
      %373 = vmatpush1.bf16.msra.mxu0 0
      %374 = vmatprep.subr.bf16.mxu0 0
      %375 = vmatpush1.bf16.msra.mxu0 %v358
      %376 = vmatprep.subr.bf16.mxu0 0
      %377 = vmatpush2.bf16.msra.mxu0 0
      %378 = vmatprep.subr.bf16.mxu0 0
      %379 = vmatpush2.bf16.msra.mxu0 0
      %380 = vmatprep.subr.bf16.mxu0 0
      %381 = vmatpush2.bf16.msra.mxu0 0
      %382 = vmatprep.subr.bf16.mxu0 0
      %383 = vmatpush2.bf16.msra.mxu0 0
      %384 = vmatprep.subr.bf16.mxu0 0
      %385 = vmatpush2.bf16.msra.mxu0 0
      %386 = vmatprep.subr.bf16.mxu0 0
      %387 = vmatpush2.bf16.msra.mxu0 0
      %388 = vmatprep.subr.bf16.mxu0 0
      %389 = vmatpush2.bf16.msra.mxu0 0
      %390 = vmatprep.subr.bf16.mxu0 0
      %391 = vmatpush2.bf16.msra.mxu0 0
      %392 = vmatprep.mubr.bf16.mxu0 0
      %393 = vmatmul.mubr.bf16.gmra.mxu0 %v251
      %v394 = vpop.f32.mrf.mxu0
      %v395 = vadd.f32 %v355, %v394
      %v396 = vpop.f32.mrf.mxu0
      %v397 = vpop.f32.mrf.mxu0
      %v398 = vadd.f32 %v355, %v397
      %v399 = vpop.f32.mrf.mxu0
      %400 = vmatprep.mubr.bf16.mxu0 0
      %401 = vmatmul.mubr.bf16.gmra.mxu0 %v254
      %v402 = vpop.f32.mrf.mxu0
      %v403 = vadd.f32 %v355, %v402
      %v404 = vpop.f32.mrf.mxu0
      %v405 = vpop.f32.mrf.mxu0
      %v406 = vadd.f32 %v355, %v405
      %v407 = vpop.f32.mrf.mxu0
      %408 = vmatprep.mubr.bf16.mxu0 0
      %409 = vmatmul.mubr.bf16.gmra.mxu0 %v257
      %v410 = vpop.f32.mrf.mxu0
      %v411 = vadd.f32 %v355, %v410
      %v412 = vpop.f32.mrf.mxu0
      %v413 = vpop.f32.mrf.mxu0
      %v414 = vadd.f32 %v355, %v413
      %v415 = vpop.f32.mrf.mxu0
      %416 = vmatprep.mubr.bf16.mxu0 0
      %417 = vmatmul.mubr.bf16.gmra.mxu0 %v260
      %v418 = vpop.f32.mrf.mxu0
      %v419 = vadd.f32 %v355, %v418
      %v420 = vpop.f32.mrf.mxu0
      %v421 = vpop.f32.mrf.mxu0
      %v422 = vadd.f32 %v355, %v421
      %v423 = vpop.f32.mrf.mxu0
      %424 = vdwg.mxu0
      %v425 = vpack.c.bf16 %v395, %v395
      %v426 = vpack.c.bf16 %v398, %v398
      %v427 = vpack.c.bf16 %v403, %v403
      %v428 = vpack.c.bf16 %v406, %v406
      %v429 = vpack.c.bf16 %v411, %v411
      %v430 = vpack.c.bf16 %v414, %v414
      %v431 = vpack.c.bf16 %v419, %v419
      %v432 = vpack.c.bf16 %v422, %v422
      %s433 = scalar_lea.vmem %s210, 4
      %434 = vst.msk [vmem:[%s433] sm:$0xf] %vm339, %v425
      %435 = vst.msk [vmem:[%s433 + $0x8] sm:$0xf] %vm339, %v426
      %436 = vst.msk [vmem:[%s433 + $0x10] sm:$0xf] %vm339, %v427
      %437 = vst.msk [vmem:[%s433 + $0x18] sm:$0xf] %vm339, %v428
      %438 = vst.msk [vmem:[%s433 + $0x20] sm:$0xf] %vm339, %v429
      %439 = vst.msk [vmem:[%s433 + $0x28] sm:$0xf] %vm339, %v430
      %440 = vst.msk [vmem:[%s433 + $0x30] sm:$0xf] %vm339, %v431
      %441 = vst.msk [vmem:[%s433 + $0x38] sm:$0xf] %vm339, %v432
      %s442 = smul.u32 8, %s19
      %p443 = scmp.lt.s32.totalorder %s18, 1
      %s444 = scalar_select %p443, %s18, 1
      %p445 = scmp.lt.s32.totalorder %s442, 7
      %s446 = scalar_select %p445, %s442, 7
      %s447 = smul.addr %s446, 2
      %s448 = smul.addr %s444, 16
      %s449 = sadd.s32 %s447, %s448
      %s450 = smul.addr %s449, 4
      %s451 = scalar_lea.vmem %s3, %s450
      // Predicated region
      $region33: #{upconv_forward.3} parent=31 // pred_check
        %p452 = pneg %p116
      $region34: #{upconv_forward.3} parent=31 // pred_check_branch
        %454 = sbr.rel (%p452) target = $region36
      $region35: #{upconv_forward.3} parent=31 // pred_region
        %s455 = smul.u32 8, %s19
      $region36: #{upconv_forward.3} parent=31 // pred_fallthru
        _
    $region32: #{upconv_forward.3} parent=5 // pred_fallthru
      _
    %p456 = scmp.le.s32.totalorder 2, %s9
    // Predicated region
    $region37: #{upconv_forward.3} parent=5 // pred_check
      %p457 = pneg %p456
    $region38: #{upconv_forward.3} parent=5 // pred_check_branch
      %459 = sbr.rel (%p457) target = $region40
    $region39: #{upconv_forward.3} parent=5 // pred_region
      %s460 = ssub.s32 %s9, 2
      // Predicated region
      $region41: #{upconv_forward.3} parent=39 // pred_check
        %p461 = pneg %p122
      $region42: #{upconv_forward.3} parent=39 // pred_check_branch
        %463 = sbr.rel (%p461) target = $region44
      $region43: #{upconv_forward.3} parent=39 // pred_region
        %s464 = smul.u32 8, %s21
        %p465 = scmp.lt.s32.totalorder %s20, 1
        %s466 = scalar_select %p465, %s20, 1
        %p467 = scmp.lt.s32.totalorder %s464, 7
        %s468 = scalar_select %p467, %s464, 7
        %s469 = smul.addr %s468, 2
        %s470 = smul.addr %s466, 16
        %s471 = sadd.s32 %s469, %s470
        %s472 = smul.addr %s471, 4
        %s473 = scalar_lea.vmem %s3, %s472
      $region44: #{upconv_forward.3} parent=39 // pred_fallthru
        _
    $region40: #{upconv_forward.3} parent=5 // pred_fallthru
      _
  $region6: #{upconv_forward.3} parent=0 // loop_footer
    %s13 = sadd.s32 1, %s9
  $region7: #{upconv_forward.3} parent=0 // loop_footer_branch
    %8 = sbr.rel target = $region3
  $region8: #{upconv_forward.3} parent=0 // loop_exit
    _

// kernel: upconv_forward.5
$region0: #{upconv_forward.5}
  #allocation0 [shape = 'u32[]', space=smem, size = 0x4, offset = 0x4, fixed_abs, tag = 'smem constant byte address 0x4 - core index']
  #allocation1 [shape = 'u32[144,128]{1,0:T(1,128)}', space=vmem, size = 0x12000, scoped, tag = 'internal scratch']
  #allocation2 [shape = 'f32[2,8,18,4]{3,2,1,0:T(8,128)}', space=vmem, size = 0x30000, scoped, tag = 'scratch operand']
  %s0 = inlined_call_operand.vmem [shape: bf16[2,16,16,4], index: 0, kind: input, shape index: {}, may-alias: {0,1,2}]
  %s1 = inlined_call_operand.vmem [shape: bf16[2,16,16,4], index: 1, kind: input, shape index: {}, may-alias: {0,1,2}]
  %s2 = inlined_call_operand.vmem [shape: bf16[2,16,16,4], index: 2, kind: input, shape index: {}, may-alias: {0,1,2}]
  %s3 = inlined_call_operand.vmem [shape: bf16[3,3,4,4], index: 3, kind: input, shape index: {}]
  %s4 = inlined_call_operand.vmem [shape: f32[1,1,4], index: 4, kind: input, shape index: {}]
  %s5 = inlined_call_operand.vmem [shape: f32[2,16,16,4], index: 5, kind: output, shape index: {}]
  %s6 = sld [smem:[#allocation0]]
  $region53: #{upconv_forward.5} parent=0
    _
  %s8 = ssub.s32 1, %s6
  %s9 = scalar_select 0, %s8, %s6
  loop: start=0, step=1, limit=6
  $region2: #{upconv_forward.5} parent=0 // loop_pre_header
    _
  $region3: #{upconv_forward.5} parent=0 // loop_header
    %s11 = sphi 0, %s15
    %p12 = scmp.ge.s32.totalorder %s11, 6
    %s18 = sphi 0, %s30
    %s19 = sphi 0, %s26
    %s20 = sphi 0, %s18
    %s21 = sphi 0, %s19
    %s22 = sphi 0, %s20
    %s23 = sphi 0, %s21
    %s35 = sphi 0, %s37
    %s38 = sphi 0, %s35
    %s39 = sphi 0, %s38
    %s55 = sphi 0, %s39
    %s71 = sphi 0, %s73
    %s74 = sphi 0, %s71
    %s75 = sphi 0, %s74
    %s91 = sphi 0, %s75
    %s107 = sphi 0, %s109
    %s110 = sphi 0, %s107
    %s111 = sphi 0, %s110
    %s127 = sphi 0, %s111
    %s131 = sphi 0, %s131
    %s133 = sphi 0, %s131
    %s134 = sphi 0, %s133
    %s148 = sphi 0, %s134
    %s152 = sphi 0, %s152
    %s154 = sphi 0, %s152
    %s155 = sphi 0, %s154
    %s169 = sphi 0, %s155
    %s177 = sphi 0, %s179
    %s180 = sphi 0, %s177
    %s181 = sphi 0, %s180
    %s197 = sphi 0, %s181
  $region4: #{upconv_forward.5} parent=0 // loop_header_branch
    %14 = sbr.rel (%p12) target = $region8
  $region5: #{upconv_forward.5} parent=0 // loop_body
    %s16 = ssub.s32 %s11, 1
    %s17 = ssub.s32 %s11, 2
    %s24 = sadd.s32 1, %s19
    %p25 = scmp.ge.s32.totalorder %s24, 2
    %s26 = scalar_select %p25, 0, %s24
    %s27 = sadd.s32 1, %s18
    %s28 = scalar_select %p25, %s27, %s18
    %p29 = scmp.ge.s32.totalorder %s28, 2
    %s30 = scalar_select %p29, 0, %s28
    %s31 = ssub.s32 %s18, %s30
    %s32 = ssub.s32 %s19, %s26
    %s33 = sor.u32 %s31, %s32
    %p34 = scmp.eq.s32.totalorder %s33, 0
    %s36 = sadd.s32 %s35, 1
    %s37 = scalar_select %p34, %s35, %s36
    %p40 = pneg %p34
    %p41 = scmp.eq.s32.totalorder %s11, 3
    %p42 = por %p40, %p41
    %p43 = scmp.ne.s32.totalorder %s35, %s38
    %p44 = scmp.eq.s32.totalorder %s11, 0
    %p45 = por %p43, %p44
    %p46 = scmp.ne.s32.totalorder %s35, %s38
    %p47 = scmp.eq.s32.totalorder %s16, 3
    %p48 = por %p46, %p47
    %p49 = scmp.ne.s32.totalorder %s38, %s39
    %p50 = scmp.eq.s32.totalorder %s16, 0
    %p51 = por %p49, %p50
    %p52 = scmp.ne.s32.totalorder %s38, %s39
    %p53 = scmp.eq.s32.totalorder %s17, 3
    %p54 = por %p52, %p53
    %p56 = scmp.ne.s32.totalorder %s39, %s55
    %p57 = scmp.eq.s32.totalorder %s17, 0
    %p58 = por %p56, %p57
    %s59 = smul.u32 %s19, 8
    %s60 = ssub.s32 %s59, 1
    %p61 = scmp.gt.s32.totalorder %s60, 0
    %s62 = scalar_select %p61, %s60, 0
    %s63 = smul.u32 %s26, 8
    %s64 = ssub.s32 %s63, 1
    %p65 = scmp.gt.s32.totalorder %s64, 0
    %s66 = scalar_select %p65, %s64, 0
    %s67 = ssub.s32 %s18, %s30
    %s68 = ssub.s32 %s62, %s66
    %s69 = sor.u32 %s67, %s68
    %p70 = scmp.eq.s32.totalorder %s69, 0
    %s72 = sadd.s32 %s71, 1
    %s73 = scalar_select %p70, %s71, %s72
    %p76 = pneg %p70
    %p77 = scmp.eq.s32.totalorder %s11, 3
    %p78 = por %p76, %p77
    %p79 = scmp.ne.s32.totalorder %s71, %s74
    %p80 = scmp.eq.s32.totalorder %s11, 0
    %p81 = por %p79, %p80
    %p82 = scmp.ne.s32.totalorder %s71, %s74
    %p83 = scmp.eq.s32.totalorder %s16, 3
    %p84 = por %p82, %p83
    %p85 = scmp.ne.s32.totalorder %s74, %s75
    %p86 = scmp.eq.s32.totalorder %s16, 0
    %p87 = por %p85, %p86
    %p88 = scmp.ne.s32.totalorder %s74, %s75
    %p89 = scmp.eq.s32.totalorder %s17, 3
    %p90 = por %p88, %p89
    %p92 = scmp.ne.s32.totalorder %s75, %s91
    %p93 = scmp.eq.s32.totalorder %s17, 0
    %p94 = por %p92, %p93
    %s95 = smul.u32 %s19, 8
    %s96 = sadd.s32 %s95, 8
    %p97 = scmp.lt.s32.totalorder %s96, 15
    %s98 = scalar_select %p97, %s96, 15
    %s99 = smul.u32 %s26, 8
    %s100 = sadd.s32 %s99, 8
    %p101 = scmp.lt.s32.totalorder %s100, 15
    %s102 = scalar_select %p101, %s100, 15
    %s103 = ssub.s32 %s18, %s30
    %s104 = ssub.s32 %s98, %s102
    %s105 = sor.u32 %s103, %s104
    %p106 = scmp.eq.s32.totalorder %s105, 0
    %s108 = sadd.s32 %s107, 1
    %s109 = scalar_select %p106, %s107, %s108
    %p112 = pneg %p106
    %p113 = scmp.eq.s32.totalorder %s11, 3
    %p114 = por %p112, %p113
    %p115 = scmp.ne.s32.totalorder %s107, %s110
    %p116 = scmp.eq.s32.totalorder %s11, 0
    %p117 = por %p115, %p116
    %p118 = scmp.ne.s32.totalorder %s107, %s110
    %p119 = scmp.eq.s32.totalorder %s16, 3
    %p120 = por %p118, %p119
    %p121 = scmp.ne.s32.totalorder %s110, %s111
    %p122 = scmp.eq.s32.totalorder %s16, 0
    %p123 = por %p121, %p122
    %p124 = scmp.ne.s32.totalorder %s110, %s111
    %p125 = scmp.eq.s32.totalorder %s17, 3
    %p126 = por %p124, %p125
    %p128 = scmp.ne.s32.totalorder %s111, %s127
    %p129 = scmp.eq.s32.totalorder %s17, 0
    %p130 = por %p128, %p129
    %s132 = sadd.s32 %s131, 1
    %p135 = scmp.eq.s32.totalorder %s11, 3
    %p136 = scmp.ne.s32.totalorder %s131, %s133
    %p137 = scmp.eq.s32.totalorder %s11, 0
    %p138 = por %p136, %p137
    %p139 = scmp.ne.s32.totalorder %s131, %s133
    %p140 = scmp.eq.s32.totalorder %s16, 3
    %p141 = por %p139, %p140
    %p142 = scmp.ne.s32.totalorder %s133, %s134
    %p143 = scmp.eq.s32.totalorder %s16, 0
    %p144 = por %p142, %p143
    %p145 = scmp.ne.s32.totalorder %s133, %s134
    %p146 = scmp.eq.s32.totalorder %s17, 3
    %p147 = por %p145, %p146
    %p149 = scmp.ne.s32.totalorder %s134, %s148
    %p150 = scmp.eq.s32.totalorder %s17, 0
    %p151 = por %p149, %p150
    %s153 = sadd.s32 %s152, 1
    %p156 = scmp.eq.s32.totalorder %s11, 3
    %p157 = scmp.ne.s32.totalorder %s152, %s154
    %p158 = scmp.eq.s32.totalorder %s11, 0
    %p159 = por %p157, %p158
    %p160 = scmp.ne.s32.totalorder %s152, %s154
    %p161 = scmp.eq.s32.totalorder %s16, 3
    %p162 = por %p160, %p161
    %p163 = scmp.ne.s32.totalorder %s154, %s155
    %p164 = scmp.eq.s32.totalorder %s16, 0
    %p165 = por %p163, %p164
    %p166 = scmp.ne.s32.totalorder %s154, %s155
    %p167 = scmp.eq.s32.totalorder %s17, 3
    %p168 = por %p166, %p167
    %p170 = scmp.ne.s32.totalorder %s155, %s169
    %p171 = scmp.eq.s32.totalorder %s17, 0
    %p172 = por %p170, %p171
    %s173 = ssub.s32 %s18, %s30
    %s174 = ssub.s32 %s19, %s26
    %s175 = sor.u32 %s173, %s174
    %p176 = scmp.eq.s32.totalorder %s175, 0
    %s178 = sadd.s32 %s177, 1
    %s179 = scalar_select %p176, %s177, %s178
    %p182 = pneg %p176
    %p183 = scmp.eq.s32.totalorder %s11, 3
    %p184 = por %p182, %p183
    %p185 = scmp.ne.s32.totalorder %s177, %s180
    %p186 = scmp.eq.s32.totalorder %s11, 0
    %p187 = por %p185, %p186
    %p188 = scmp.ne.s32.totalorder %s177, %s180
    %p189 = scmp.eq.s32.totalorder %s16, 3
    %p190 = por %p188, %p189
    %p191 = scmp.ne.s32.totalorder %s180, %s181
    %p192 = scmp.eq.s32.totalorder %s16, 0
    %p193 = por %p191, %p192
    %p194 = scmp.ne.s32.totalorder %s180, %s181
    %p195 = scmp.eq.s32.totalorder %s17, 3
    %p196 = por %p194, %p195
    %p198 = scmp.ne.s32.totalorder %s181, %s197
    %p199 = scmp.eq.s32.totalorder %s17, 0
    %p200 = por %p198, %p199
    %p201 = scmp.le.s32.totalorder 1, %s11
    %p202 = scmp.lt.s32.totalorder %s11, 5
    %p203 = pnand %p201, %p202
    %p204 = pneg %p203
    // Predicated region
    $region9: #{upconv_forward.5} parent=5 // pred_check
      _
    $region10: #{upconv_forward.5} parent=5 // pred_check_branch
      %206 = sbr.rel (%p203) target = $region12
    $region11: #{upconv_forward.5} parent=5 // pred_region
      %s207 = ssub.s32 %s11, 1
      // Predicated region
      $region13: #{upconv_forward.5} parent=11 // pred_check
        %p208 = pneg %p144
      $region14: #{upconv_forward.5} parent=11 // pred_check_branch
        %210 = sbr.rel (%p208) target = $region16
      $region15: #{upconv_forward.5} parent=11 // pred_region
        _
      $region16: #{upconv_forward.5} parent=11 // pred_fallthru
        _
      // Predicated region
      $region17: #{upconv_forward.5} parent=11 // pred_check
        %p211 = pneg %p165
      $region18: #{upconv_forward.5} parent=11 // pred_check_branch
        %213 = sbr.rel (%p211) target = $region20
      $region19: #{upconv_forward.5} parent=11 // pred_region
        _
      $region20: #{upconv_forward.5} parent=11 // pred_fallthru
        _
    $region12: #{upconv_forward.5} parent=5 // pred_fallthru
      _
    %p214 = scmp.lt.s32.totalorder %s11, 4
    // Predicated region
    $region21: #{upconv_forward.5} parent=5 // pred_check
      %p215 = pneg %p214
    $region22: #{upconv_forward.5} parent=5 // pred_check_branch
      %217 = sbr.rel (%p215) target = $region24
    $region23: #{upconv_forward.5} parent=5 // pred_region
      // Predicated region
      $region25: #{upconv_forward.5} parent=23 // pred_check
        %p218 = pneg %p45
      $region26: #{upconv_forward.5} parent=23 // pred_check_branch
        %220 = sbr.rel (%p218) target = $region28
      $region27: #{upconv_forward.5} parent=23 // pred_region
        %s221 = smul.u32 8, %s19
        %p222 = scmp.lt.s32.totalorder %s18, 1
        %s223 = scalar_select %p222, %s18, 1
        %p224 = scmp.lt.s32.totalorder %s221, 15
        %s225 = scalar_select %p224, %s221, 15
        %s226 = smul.addr %s225, 2
        %s227 = smul.addr %s223, 32
        %s228 = sadd.s32 %s226, %s227
        %s229 = smul.addr %s228, 4
        %s230 = scalar_lea.vmem %s0, %s229
        %s231 = smul.u32 8, %s19
      $region28: #{upconv_forward.5} parent=23 // pred_fallthru
        _
      // Predicated region
      $region29: #{upconv_forward.5} parent=23 // pred_check
        %p232 = pneg %p81
      $region30: #{upconv_forward.5} parent=23 // pred_check_branch
        %234 = sbr.rel (%p232) target = $region32
      $region31: #{upconv_forward.5} parent=23 // pred_region
        %s235 = smul.u32 %s19, 8
        %s236 = ssub.s32 %s235, 1
        %p237 = scmp.gt.s32.totalorder %s236, 0
        %s238 = scalar_select %p237, %s236, 0
        %p239 = scmp.lt.s32.totalorder %s18, 1
        %s240 = scalar_select %p239, %s18, 1
        %p241 = scmp.lt.s32.totalorder %s238, 15
        %s242 = scalar_select %p241, %s238, 15
        %s243 = smul.addr %s242, 2
        %s244 = smul.addr %s240, 32
        %s245 = sadd.s32 %s243, %s244
        %s246 = smul.addr %s245, 4
        %s247 = scalar_lea.vmem %s1, %s246
        %s248 = smul.u32 %s19, 8
        %s249 = ssub.s32 %s248, 1
        %p250 = scmp.gt.s32.totalorder %s249, 0
        %s251 = scalar_select %p250, %s249, 0
      $region32: #{upconv_forward.5} parent=23 // pred_fallthru
        _
      // Predicated region
      $region33: #{upconv_forward.5} parent=23 // pred_check
        %p252 = pneg %p117
      $region34: #{upconv_forward.5} parent=23 // pred_check_branch
        %254 = sbr.rel (%p252) target = $region36
      $region35: #{upconv_forward.5} parent=23 // pred_region
        %s255 = smul.u32 %s19, 8
        %s256 = sadd.s32 %s255, 8
        %p257 = scmp.lt.s32.totalorder %s256, 15
        %s258 = scalar_select %p257, %s256, 15
        %p259 = scmp.lt.s32.totalorder %s18, 1
        %s260 = scalar_select %p259, %s18, 1
        %p261 = scmp.lt.s32.totalorder %s258, 15
        %s262 = scalar_select %p261, %s258, 15
        %s263 = smul.addr %s262, 2
        %s264 = smul.addr %s260, 32
        %s265 = sadd.s32 %s263, %s264
        %s266 = smul.addr %s265, 4
        %s267 = scalar_lea.vmem %s2, %s266
        %s268 = smul.u32 %s19, 8
        %s269 = sadd.s32 %s268, 8
        %p270 = scmp.lt.s32.totalorder %s269, 15
        %s271 = scalar_select %p270, %s269, 15
      $region36: #{upconv_forward.5} parent=23 // pred_fallthru
        _
    $region24: #{upconv_forward.5} parent=5 // pred_fallthru
      _
    %p272 = scmp.le.s32.totalorder 1, %s11
    %p273 = scmp.lt.s32.totalorder %s11, 5
    %p274 = pnand %p272, %p273
    %p275 = pneg %p274
    // Predicated region
    $region37: #{upconv_forward.5} parent=5 // pred_check
      _
    $region38: #{upconv_forward.5} parent=5 // pred_check_branch
      %277 = sbr.rel (%p274) target = $region40
    $region39: #{upconv_forward.5} parent=5 // pred_region
      %s278 = ssub.s32 %s11, 1
      %s279 = smul.u32 8, %s21
      %p280 = scmp.lt.s32.totalorder %s20, 1
      %s281 = scalar_select %p280, %s20, 1
      %p282 = scmp.lt.s32.totalorder %s279, 15
      %s283 = scalar_select %p282, %s279, 15
      %s284 = smul.addr %s283, 2
      %s285 = smul.addr %s281, 32
      %s286 = sadd.s32 %s284, %s285
      %s287 = smul.addr %s286, 4
      %s288 = scalar_lea.vmem %s0, %s287
      %p289 = pneg %p51
      %p290 = pneg %p48
      %s291 = smul.u32 %s21, 8
      %s292 = ssub.s32 %s291, 1
      %p293 = scmp.gt.s32.totalorder %s292, 0
      %s294 = scalar_select %p293, %s292, 0
      %p295 = scmp.lt.s32.totalorder %s20, 1
      %s296 = scalar_select %p295, %s20, 1
      %p297 = scmp.lt.s32.totalorder %s294, 15
      %s298 = scalar_select %p297, %s294, 15
      %s299 = smul.addr %s298, 2
      %s300 = smul.addr %s296, 32
      %s301 = sadd.s32 %s299, %s300
      %s302 = smul.addr %s301, 4
      %s303 = scalar_lea.vmem %s1, %s302
      %p304 = pneg %p87
      %p305 = pneg %p84
      %s306 = smul.u32 %s21, 8
      %s307 = sadd.s32 %s306, 8
      %p308 = scmp.lt.s32.totalorder %s307, 15
      %s309 = scalar_select %p308, %s307, 15
      %p310 = scmp.lt.s32.totalorder %s20, 1
      %s311 = scalar_select %p310, %s20, 1
      %p312 = scmp.lt.s32.totalorder %s309, 15
      %s313 = scalar_select %p312, %s309, 15
      %s314 = smul.addr %s313, 2
      %s315 = smul.addr %s311, 32
      %s316 = sadd.s32 %s314, %s315
      %s317 = smul.addr %s316, 4
      %s318 = scalar_lea.vmem %s2, %s317
      %p319 = pneg %p123
      %p320 = pneg %p120
      %p321 = pneg %p144
      %p322 = pneg %p141
      %p323 = pneg %p165
      %p324 = pneg %p162
      %p325 = pneg %p193
      %p326 = pneg %p190
      %s327 = smul.u32 8, %s21
      %p328 = scmp.lt.s32.totalorder %s20, 1
      %s329 = scalar_select %p328, %s20, 1
      %p330 = scmp.lt.s32.totalorder %s327, 15
      %s331 = scalar_select %p330, %s327, 15
      %s332 = smul.addr %s331, 2
      %s333 = smul.addr %s329, 32
      %s334 = sadd.s32 %s332, %s333
      %s335 = smul.addr %s334, 8
      %s336 = scalar_lea.vmem %s5, %s335
      %s337 = smul.u32 8, %s21
      %p338 = scmp.lt.s32.totalorder %s20, 1
      %s339 = scalar_select %p338, %s20, 1
      %p340 = scmp.lt.s32.totalorder %s337, 15
      %s341 = scalar_select %p340, %s337, 15
      %s342 = smul.addr %s341, 2
      %s343 = smul.addr %s339, 32
      %s344 = sadd.s32 %s342, %s343
      %s345 = smul.addr %s344, 4
      %s346 = scalar_lea.vmem %s0, %s345
      %s347 = smul.u32 8, %s21
      %s348 = smul.u32 %s21, 8
      %s349 = ssub.s32 %s348, 1
      %p350 = scmp.gt.s32.totalorder %s349, 0
      %s351 = scalar_select %p350, %s349, 0
      %p352 = scmp.lt.s32.totalorder %s20, 1
      %s353 = scalar_select %p352, %s20, 1
      %p354 = scmp.lt.s32.totalorder %s351, 15
      %s355 = scalar_select %p354, %s351, 15
      %s356 = smul.addr %s355, 2
      %s357 = smul.addr %s353, 32
      %s358 = sadd.s32 %s356, %s357
      %s359 = smul.addr %s358, 4
      %s360 = scalar_lea.vmem %s1, %s359
      %s361 = smul.u32 %s21, 8
      %s362 = ssub.s32 %s361, 1
      %p363 = scmp.gt.s32.totalorder %s362, 0
      %s364 = scalar_select %p363, %s362, 0
      %s365 = smul.u32 %s21, 8
      %s366 = sadd.s32 %s365, 8
      %p367 = scmp.lt.s32.totalorder %s366, 15
      %s368 = scalar_select %p367, %s366, 15
      %p369 = scmp.lt.s32.totalorder %s20, 1
      %s370 = scalar_select %p369, %s20, 1
      %p371 = scmp.lt.s32.totalorder %s368, 15
      %s372 = scalar_select %p371, %s368, 15
      %s373 = smul.addr %s372, 2
      %s374 = smul.addr %s370, 32
      %s375 = sadd.s32 %s373, %s374
      %s376 = smul.addr %s375, 4
      %s377 = scalar_lea.vmem %s2, %s376
      %s378 = smul.u32 %s21, 8
      %s379 = sadd.s32 %s378, 8
      %p380 = scmp.lt.s32.totalorder %s379, 15
      %s381 = scalar_select %p380, %s379, 15
      %s382 = smul.u32 8, %s21
      %p383 = scmp.lt.s32.totalorder %s20, 1
      %s384 = scalar_select %p383, %s20, 1
      %p385 = scmp.lt.s32.totalorder %s382, 15
      %s386 = scalar_select %p385, %s382, 15
      %s387 = smul.addr %s386, 2
      %s388 = smul.addr %s384, 32
      %s389 = sadd.s32 %s387, %s388
      %s390 = smul.addr %s389, 8
      %s391 = scalar_lea.vmem %s5, %s390
      %s392 = smul.u32 8, %s21
      %v394 = vld [vmem:[%s346] sm:$0xf]
      %v395 = vld [vmem:[%s346 + $0x4] sm:$0xf]
      %v396 = vld [vmem:[%s346 + $0x8] sm:$0xf]
      %v397 = vld [vmem:[%s346 + $0xc] sm:$0xf]
      %v398 = vld [vmem:[%s346 + $0x10] sm:$0xf]
      %v399 = vld [vmem:[%s346 + $0x14] sm:$0xf]
      %v400 = vld [vmem:[%s346 + $0x18] sm:$0xf]
      %v401 = vld [vmem:[%s346 + $0x1c] sm:$0xf]
      %v402 = vld [vmem:[%s346 + $0x20] sm:$0xf]
      %v403 = vld [vmem:[%s346 + $0x24] sm:$0xf]
      %v404 = vld [vmem:[%s346 + $0x28] sm:$0xf]
      %v405 = vld [vmem:[%s346 + $0x2c] sm:$0xf]
      %v406 = vld [vmem:[%s346 + $0x30] sm:$0xf]
      %v407 = vld [vmem:[%s346 + $0x34] sm:$0xf]
      %v408 = vld [vmem:[%s346 + $0x38] sm:$0xf]
      %v409 = vld [vmem:[%s346 + $0x3c] sm:$0xf]
      %v410 = vld [vmem:[%s360] sm:$0xf]
      %v411 = vld [vmem:[%s360 + $0x4] sm:$0xf]
      %v412 = vld [vmem:[%s377] sm:$0xf]
      %v413 = vld [vmem:[%s377 + $0x4] sm:$0xf]
      %p414 = scmp.eq.s32.totalorder %s21, 0
      %s415 = scalar_select %p414, 1, 0
      %v416 = vstv %s415
      %vm417 = vcmp.eq.s32.totalorder %v416, 1
      %v418 = vsel %vm417, 0, %v410
      %v419 = vsel %vm417, 0, %v411
      %p420 = scmp.eq.s32.totalorder %s21, 1
      %s421 = scalar_select %p420, 1, 0
      %v422 = vstv %s421
      %vm423 = vcmp.eq.s32.totalorder %v422, 1
      %v424 = vsel %vm423, 0, %v412
      %v425 = vsel %vm423, 0, %v413
      %v426 = vld [vmem:[%s3] sm:$0x3]
      %s427 = scalar_lea.vmem %s3, 2
      %v428 = vld [vmem:[%s427] sm:$0x3]
      %s429 = scalar_lea.vmem %s3, 4
      %v430 = vld [vmem:[%s429] sm:$0x3]
      %s431 = scalar_lea.vmem %s3, 6
      %v432 = vld [vmem:[%s431] sm:$0x3]
      %v449 = vunpack.c.l.b16 %v394
      %v450 = vunpack.c.l.b16 %v395
      %v451 = vunpack.c.l.b16 %v396
      %v452 = vunpack.c.l.b16 %v397
      %v453 = vunpack.c.l.b16 %v398
      %v454 = vunpack.c.l.b16 %v399
      %v455 = vunpack.c.l.b16 %v400
      %v456 = vunpack.c.l.b16 %v401
      %v457 = vunpack.c.l.b16 %v402
      %v458 = vunpack.c.l.b16 %v403
      %v459 = vunpack.c.l.b16 %v404
      %v460 = vunpack.c.l.b16 %v405
      %v461 = vunpack.c.l.b16 %v406
      %v462 = vunpack.c.l.b16 %v407
      %v463 = vunpack.c.l.b16 %v408
      %v464 = vunpack.c.l.b16 %v409
      %v465 = vpack.c.b16 %v450, %v449
      %v466 = vpack.c.b16 %v452, %v451
      %v467 = vpack.c.b16 %v454, %v453
      %v468 = vpack.c.b16 %v456, %v455
      %v469 = vpack.c.b16 %v458, %v457
      %v470 = vpack.c.b16 %v460, %v459
      %v471 = vpack.c.b16 %v462, %v461
      %v472 = vpack.c.b16 %v464, %v463
      %vm473 = vcmask 31744
      %v475 = vsel %vm473, %v465, 0
      %v478 = vsel %vm473, %v466, 0
      %v481 = vsel %vm473, %v467, 0
      %v484 = vsel %vm473, %v468, 0
      %v487 = vsel %vm473, %v469, 0
      %v490 = vsel %vm473, %v470, 0
      %v493 = vsel %vm473, %v471, 0
      %v496 = vsel %vm473, %v472, 0
      %vm498 = vcmask 1041408
      %v500 = vsel %vm498, %v432, 0
      %502 = vmatprep.subr.bf16.mxu0 0
      %503 = vmatpush1.bf16.msra.mxu0 0
      %504 = vmatprep.subr.bf16.mxu0 0
      %505 = vmatpush1.bf16.msra.mxu0 0
      %506 = vmatprep.subr.bf16.mxu0 0
      %507 = vmatpush1.bf16.msra.mxu0 0
      %508 = vmatprep.subr.bf16.mxu0 0
      %509 = vmatpush1.bf16.msra.mxu0 0
      %510 = vmatprep.subr.bf16.mxu0 0
      %511 = vmatpush1.bf16.msra.mxu0 0
      %512 = vmatprep.subr.bf16.mxu0 0
      %513 = vmatpush1.bf16.msra.mxu0 0
      %514 = vmatprep.subr.bf16.mxu0 0
      %515 = vmatpush1.bf16.msra.mxu0 0
      %516 = vmatprep.subr.bf16.mxu0 0
      %517 = vmatpush1.bf16.msra.mxu0 %v500
      %518 = vmatprep.subr.bf16.mxu0 0
      %519 = vmatpush2.bf16.msra.mxu0 0
      %520 = vmatprep.subr.bf16.mxu0 0
      %521 = vmatpush2.bf16.msra.mxu0 0
      %522 = vmatprep.subr.bf16.mxu0 0
      %523 = vmatpush2.bf16.msra.mxu0 0
      %524 = vmatprep.subr.bf16.mxu0 0
      %525 = vmatpush2.bf16.msra.mxu0 0
      %526 = vmatprep.subr.bf16.mxu0 0
      %527 = vmatpush2.bf16.msra.mxu0 0
      %528 = vmatprep.subr.bf16.mxu0 0
      %529 = vmatpush2.bf16.msra.mxu0 0
      %530 = vmatprep.subr.bf16.mxu0 0
      %531 = vmatpush2.bf16.msra.mxu0 0
      %532 = vmatprep.subr.bf16.mxu0 0
      %533 = vmatpush2.bf16.msra.mxu0 0
      %534 = vmatprep.mubr.bf16.mxu0 0
      %535 = vmatmul.mubr.bf16.gmra.mxu0 %v475
      %v536 = vpop.f32.mrf.mxu0
      %v537 = vadd.f32 0.0, %v536
      %v538 = vpop.f32.mrf.mxu0
      %v539 = vpop.f32.mrf.mxu0
      %v540 = vadd.f32 0.0, %v539
      %v541 = vpop.f32.mrf.mxu0
      %542 = vmatprep.mubr.bf16.mxu0 0
      %543 = vmatmul.mubr.bf16.gmra.mxu0 %v478
      %v544 = vpop.f32.mrf.mxu0
      %v545 = vadd.f32 0.0, %v544
      %v546 = vpop.f32.mrf.mxu0
      %v547 = vpop.f32.mrf.mxu0
      %v548 = vadd.f32 0.0, %v547
      %v549 = vpop.f32.mrf.mxu0
      %550 = vmatprep.mubr.bf16.mxu0 0
      %551 = vmatmul.mubr.bf16.gmra.mxu0 %v481
      %v552 = vpop.f32.mrf.mxu0
      %v553 = vadd.f32 0.0, %v552
      %v554 = vpop.f32.mrf.mxu0
      %v555 = vpop.f32.mrf.mxu0
      %v556 = vadd.f32 0.0, %v555
      %v557 = vpop.f32.mrf.mxu0
      %558 = vmatprep.mubr.bf16.mxu0 0
      %559 = vmatmul.mubr.bf16.gmra.mxu0 %v484
      %v560 = vpop.f32.mrf.mxu0
      %v561 = vadd.f32 0.0, %v560
      %v562 = vpop.f32.mrf.mxu0
      %v563 = vpop.f32.mrf.mxu0
      %v564 = vadd.f32 0.0, %v563
      %v565 = vpop.f32.mrf.mxu0
      %566 = vmatprep.mubr.bf16.mxu0 0
      %567 = vmatmul.mubr.bf16.gmra.mxu0 %v487
      %v568 = vpop.f32.mrf.mxu0
      %v569 = vadd.f32 0.0, %v568
      %v570 = vpop.f32.mrf.mxu0
      %v571 = vpop.f32.mrf.mxu0
      %v572 = vadd.f32 0.0, %v571
      %v573 = vpop.f32.mrf.mxu0
      %574 = vmatprep.mubr.bf16.mxu0 0
      %575 = vmatmul.mubr.bf16.gmra.mxu0 %v490
      %v576 = vpop.f32.mrf.mxu0
      %v577 = vadd.f32 0.0, %v576
      %v578 = vpop.f32.mrf.mxu0
      %v579 = vpop.f32.mrf.mxu0
      %v580 = vadd.f32 0.0, %v579
      %v581 = vpop.f32.mrf.mxu0
      %582 = vmatprep.mubr.bf16.mxu0 0
      %583 = vmatmul.mubr.bf16.gmra.mxu0 %v493
      %v584 = vpop.f32.mrf.mxu0
      %v585 = vadd.f32 0.0, %v584
      %v586 = vpop.f32.mrf.mxu0
      %v587 = vpop.f32.mrf.mxu0
      %v588 = vadd.f32 0.0, %v587
      %v589 = vpop.f32.mrf.mxu0
      %590 = vmatprep.mubr.bf16.mxu0 0
      %591 = vmatmul.mubr.bf16.gmra.mxu0 %v496
      %v592 = vpop.f32.mrf.mxu0
      %v593 = vadd.f32 0.0, %v592
      %v594 = vpop.f32.mrf.mxu0
      %v595 = vpop.f32.mrf.mxu0
      %v596 = vadd.f32 0.0, %v595
      %v597 = vpop.f32.mrf.mxu0
      %598 = vdwg.mxu0
      %v601 = vunpack.c.l.b16 %v418
      %v602 = vunpack.c.l.b16 %v419
      %v603 = vpack.c.b16 %v602, %v601
      %v605 = vsel %vm473, %v603, 0
      %v608 = vsel %vm498, %v426, 0
      %610 = vmatprep.subr.bf16.mxu0 0
      %611 = vmatpush1.bf16.msra.mxu0 0
      %612 = vmatprep.subr.bf16.mxu0 0
      %613 = vmatpush1.bf16.msra.mxu0 0
      %614 = vmatprep.subr.bf16.mxu0 0
      %615 = vmatpush1.bf16.msra.mxu0 0
      %616 = vmatprep.subr.bf16.mxu0 0
      %617 = vmatpush1.bf16.msra.mxu0 0
      %618 = vmatprep.subr.bf16.mxu0 0
      %619 = vmatpush1.bf16.msra.mxu0 0
      %620 = vmatprep.subr.bf16.mxu0 0
      %621 = vmatpush1.bf16.msra.mxu0 0
      %622 = vmatprep.subr.bf16.mxu0 0
      %623 = vmatpush1.bf16.msra.mxu0 0
      %624 = vmatprep.subr.bf16.mxu0 0
      %625 = vmatpush1.bf16.msra.mxu0 %v608
      %626 = vmatprep.subr.bf16.mxu0 0
      %627 = vmatpush2.bf16.msra.mxu0 0
      %628 = vmatprep.subr.bf16.mxu0 0
      %629 = vmatpush2.bf16.msra.mxu0 0
      %630 = vmatprep.subr.bf16.mxu0 0
      %631 = vmatpush2.bf16.msra.mxu0 0
      %632 = vmatprep.subr.bf16.mxu0 0
      %633 = vmatpush2.bf16.msra.mxu0 0
      %634 = vmatprep.subr.bf16.mxu0 0
      %635 = vmatpush2.bf16.msra.mxu0 0
      %636 = vmatprep.subr.bf16.mxu0 0
      %637 = vmatpush2.bf16.msra.mxu0 0
      %638 = vmatprep.subr.bf16.mxu0 0
      %639 = vmatpush2.bf16.msra.mxu0 0
      %640 = vmatprep.subr.bf16.mxu0 0
      %641 = vmatpush2.bf16.msra.mxu0 0
      %642 = vmatprep.mubr.bf16.mxu0 0
      %643 = vmatmul.mubr.bf16.gmra.mxu0 %v605
      %v644 = vpop.f32.mrf.mxu0
      %v645 = vadd.f32 %v537, %v644
      %v646 = vpop.f32.mrf.mxu0
      %v647 = vpop.f32.mrf.mxu0
      %v648 = vadd.f32 %v540, %v647
      %v649 = vpop.f32.mrf.mxu0
      %650 = vmatprep.mubr.bf16.mxu0 0
      %651 = vmatmul.mubr.bf16.gmra.mxu0 %v475
      %v652 = vpop.f32.mrf.mxu0
      %v653 = vadd.f32 %v545, %v652
      %v654 = vpop.f32.mrf.mxu0
      %v655 = vpop.f32.mrf.mxu0
      %v656 = vadd.f32 %v548, %v655
      %v657 = vpop.f32.mrf.mxu0
      %658 = vmatprep.mubr.bf16.mxu0 0
      %659 = vmatmul.mubr.bf16.gmra.mxu0 %v478
      %v660 = vpop.f32.mrf.mxu0
      %v661 = vadd.f32 %v553, %v660
      %v662 = vpop.f32.mrf.mxu0
      %v663 = vpop.f32.mrf.mxu0
      %v664 = vadd.f32 %v556, %v663
      %v665 = vpop.f32.mrf.mxu0
      %666 = vmatprep.mubr.bf16.mxu0 0
      %667 = vmatmul.mubr.bf16.gmra.mxu0 %v481
      %v668 = vpop.f32.mrf.mxu0
      %v669 = vadd.f32 %v561, %v668
      %v670 = vpop.f32.mrf.mxu0
      %v671 = vpop.f32.mrf.mxu0
      %v672 = vadd.f32 %v564, %v671
      %v673 = vpop.f32.mrf.mxu0
      %674 = vmatprep.mubr.bf16.mxu0 0
      %675 = vmatmul.mubr.bf16.gmra.mxu0 %v484
      %v676 = vpop.f32.mrf.mxu0
      %v677 = vadd.f32 %v569, %v676
      %v678 = vpop.f32.mrf.mxu0
      %v679 = vpop.f32.mrf.mxu0
      %v680 = vadd.f32 %v572, %v679
      %v681 = vpop.f32.mrf.mxu0
      %682 = vmatprep.mubr.bf16.mxu0 0
      %683 = vmatmul.mubr.bf16.gmra.mxu0 %v487
      %v684 = vpop.f32.mrf.mxu0
      %v685 = vadd.f32 %v577, %v684
      %v686 = vpop.f32.mrf.mxu0
      %v687 = vpop.f32.mrf.mxu0
      %v688 = vadd.f32 %v580, %v687
      %v689 = vpop.f32.mrf.mxu0
      %690 = vmatprep.mubr.bf16.mxu0 0
      %691 = vmatmul.mubr.bf16.gmra.mxu0 %v490
      %v692 = vpop.f32.mrf.mxu0
      %v693 = vadd.f32 %v585, %v692
      %v694 = vpop.f32.mrf.mxu0
      %v695 = vpop.f32.mrf.mxu0
      %v696 = vadd.f32 %v588, %v695
      %v697 = vpop.f32.mrf.mxu0
      %698 = vmatprep.mubr.bf16.mxu0 0
      %699 = vmatmul.mubr.bf16.gmra.mxu0 %v493
      %v700 = vpop.f32.mrf.mxu0
      %v701 = vadd.f32 %v593, %v700
      %v702 = vpop.f32.mrf.mxu0
      %v703 = vpop.f32.mrf.mxu0
      %v704 = vadd.f32 %v596, %v703
      %v705 = vpop.f32.mrf.mxu0
      %706 = vdwg.mxu0
      %s707 = scalar_lea.vmem %s3, 8
      %v708 = vld [vmem:[%s707] sm:$0x3]
      %v710 = vsel %vm498, %v708, 0
      %712 = vmatprep.subr.bf16.mxu0 0
      %713 = vmatpush1.bf16.msra.mxu0 0
      %714 = vmatprep.subr.bf16.mxu0 0
      %715 = vmatpush1.bf16.msra.mxu0 0
      %716 = vmatprep.subr.bf16.mxu0 0
      %717 = vmatpush1.bf16.msra.mxu0 0
      %718 = vmatprep.subr.bf16.mxu0 0
      %719 = vmatpush1.bf16.msra.mxu0 0
      %720 = vmatprep.subr.bf16.mxu0 0
      %721 = vmatpush1.bf16.msra.mxu0 0
      %722 = vmatprep.subr.bf16.mxu0 0
      %723 = vmatpush1.bf16.msra.mxu0 0
      %724 = vmatprep.subr.bf16.mxu0 0
      %725 = vmatpush1.bf16.msra.mxu0 0
      %726 = vmatprep.subr.bf16.mxu0 0
      %727 = vmatpush1.bf16.msra.mxu0 %v710
      %728 = vmatprep.subr.bf16.mxu0 0
      %729 = vmatpush2.bf16.msra.mxu0 0
      %730 = vmatprep.subr.bf16.mxu0 0
      %731 = vmatpush2.bf16.msra.mxu0 0
      %732 = vmatprep.subr.bf16.mxu0 0
      %733 = vmatpush2.bf16.msra.mxu0 0
      %734 = vmatprep.subr.bf16.mxu0 0
      %735 = vmatpush2.bf16.msra.mxu0 0
      %736 = vmatprep.subr.bf16.mxu0 0
      %737 = vmatpush2.bf16.msra.mxu0 0
      %738 = vmatprep.subr.bf16.mxu0 0
      %739 = vmatpush2.bf16.msra.mxu0 0
      %740 = vmatprep.subr.bf16.mxu0 0
      %741 = vmatpush2.bf16.msra.mxu0 0
      %742 = vmatprep.subr.bf16.mxu0 0
      %743 = vmatpush2.bf16.msra.mxu0 0
      %744 = vmatprep.mubr.bf16.mxu0 0
      %745 = vmatmul.mubr.bf16.gmra.mxu0 %v475
      %v746 = vpop.f32.mrf.mxu0
      %v747 = vadd.f32 0.0, %v746
      %v748 = vpop.f32.mrf.mxu0
      %v749 = vpop.f32.mrf.mxu0
      %v750 = vadd.f32 0.0, %v749
      %v751 = vpop.f32.mrf.mxu0
      %752 = vmatprep.mubr.bf16.mxu0 0
      %753 = vmatmul.mubr.bf16.gmra.mxu0 %v478
      %v754 = vpop.f32.mrf.mxu0
      %v755 = vadd.f32 0.0, %v754
      %v756 = vpop.f32.mrf.mxu0
      %v757 = vpop.f32.mrf.mxu0
      %v758 = vadd.f32 0.0, %v757
      %v759 = vpop.f32.mrf.mxu0
      %760 = vmatprep.mubr.bf16.mxu0 0
      %761 = vmatmul.mubr.bf16.gmra.mxu0 %v481
      %v762 = vpop.f32.mrf.mxu0
      %v763 = vadd.f32 0.0, %v762
      %v764 = vpop.f32.mrf.mxu0
      %v765 = vpop.f32.mrf.mxu0
      %v766 = vadd.f32 0.0, %v765
      %v767 = vpop.f32.mrf.mxu0
      %768 = vmatprep.mubr.bf16.mxu0 0
      %769 = vmatmul.mubr.bf16.gmra.mxu0 %v484
      %v770 = vpop.f32.mrf.mxu0
      %v771 = vadd.f32 0.0, %v770
      %v772 = vpop.f32.mrf.mxu0
      %v773 = vpop.f32.mrf.mxu0
      %v774 = vadd.f32 0.0, %v773
      %v775 = vpop.f32.mrf.mxu0
      %776 = vmatprep.mubr.bf16.mxu0 0
      %777 = vmatmul.mubr.bf16.gmra.mxu0 %v487
      %v778 = vpop.f32.mrf.mxu0
      %v779 = vadd.f32 0.0, %v778
      %v780 = vpop.f32.mrf.mxu0
      %v781 = vpop.f32.mrf.mxu0
      %v782 = vadd.f32 0.0, %v781
      %v783 = vpop.f32.mrf.mxu0
      %784 = vmatprep.mubr.bf16.mxu0 0
      %785 = vmatmul.mubr.bf16.gmra.mxu0 %v490
      %v786 = vpop.f32.mrf.mxu0
      %v787 = vadd.f32 0.0, %v786
      %v788 = vpop.f32.mrf.mxu0
      %v789 = vpop.f32.mrf.mxu0
      %v790 = vadd.f32 0.0, %v789
      %v791 = vpop.f32.mrf.mxu0
      %792 = vmatprep.mubr.bf16.mxu0 0
      %793 = vmatmul.mubr.bf16.gmra.mxu0 %v493
      %v794 = vpop.f32.mrf.mxu0
      %v795 = vadd.f32 0.0, %v794
      %v796 = vpop.f32.mrf.mxu0
      %v797 = vpop.f32.mrf.mxu0
      %v798 = vadd.f32 0.0, %v797
      %v799 = vpop.f32.mrf.mxu0
      %800 = vmatprep.mubr.bf16.mxu0 0
      %801 = vmatmul.mubr.bf16.gmra.mxu0 %v496
      %v802 = vpop.f32.mrf.mxu0
      %v803 = vadd.f32 0.0, %v802
      %v804 = vpop.f32.mrf.mxu0
      %v805 = vpop.f32.mrf.mxu0
      %v806 = vadd.f32 0.0, %v805
      %v807 = vpop.f32.mrf.mxu0
      %808 = vdwg.mxu0
      %v810 = vsel %vm498, %v428, 0
      %812 = vmatprep.subr.bf16.mxu0 0
      %813 = vmatpush1.bf16.msra.mxu0 0
      %814 = vmatprep.subr.bf16.mxu0 0
      %815 = vmatpush1.bf16.msra.mxu0 0
      %816 = vmatprep.subr.bf16.mxu0 0
      %817 = vmatpush1.bf16.msra.mxu0 0
      %818 = vmatprep.subr.bf16.mxu0 0
      %819 = vmatpush1.bf16.msra.mxu0 0
      %820 = vmatprep.subr.bf16.mxu0 0
      %821 = vmatpush1.bf16.msra.mxu0 0
      %822 = vmatprep.subr.bf16.mxu0 0
      %823 = vmatpush1.bf16.msra.mxu0 0
      %824 = vmatprep.subr.bf16.mxu0 0
      %825 = vmatpush1.bf16.msra.mxu0 0
      %826 = vmatprep.subr.bf16.mxu0 0
      %827 = vmatpush1.bf16.msra.mxu0 %v810
      %828 = vmatprep.subr.bf16.mxu0 0
      %829 = vmatpush2.bf16.msra.mxu0 0
      %830 = vmatprep.subr.bf16.mxu0 0
      %831 = vmatpush2.bf16.msra.mxu0 0
      %832 = vmatprep.subr.bf16.mxu0 0
      %833 = vmatpush2.bf16.msra.mxu0 0
      %834 = vmatprep.subr.bf16.mxu0 0
      %835 = vmatpush2.bf16.msra.mxu0 0
      %836 = vmatprep.subr.bf16.mxu0 0
      %837 = vmatpush2.bf16.msra.mxu0 0
      %838 = vmatprep.subr.bf16.mxu0 0
      %839 = vmatpush2.bf16.msra.mxu0 0
      %840 = vmatprep.subr.bf16.mxu0 0
      %841 = vmatpush2.bf16.msra.mxu0 0
      %842 = vmatprep.subr.bf16.mxu0 0
      %843 = vmatpush2.bf16.msra.mxu0 0
      %844 = vmatprep.mubr.bf16.mxu0 0
      %845 = vmatmul.mubr.bf16.gmra.mxu0 %v605
      %v846 = vpop.f32.mrf.mxu0
      %v847 = vadd.f32 %v747, %v846
      %v848 = vpop.f32.mrf.mxu0
      %v849 = vpop.f32.mrf.mxu0
      %v850 = vadd.f32 %v750, %v849
      %v851 = vpop.f32.mrf.mxu0
      %852 = vmatprep.mubr.bf16.mxu0 0
      %853 = vmatmul.mubr.bf16.gmra.mxu0 %v475
      %v854 = vpop.f32.mrf.mxu0
      %v855 = vadd.f32 %v755, %v854
      %v856 = vpop.f32.mrf.mxu0
      %v857 = vpop.f32.mrf.mxu0
      %v858 = vadd.f32 %v758, %v857
      %v859 = vpop.f32.mrf.mxu0
      %860 = vmatprep.mubr.bf16.mxu0 0
      %861 = vmatmul.mubr.bf16.gmra.mxu0 %v478
      %v862 = vpop.f32.mrf.mxu0
      %v863 = vadd.f32 %v763, %v862
      %v864 = vpop.f32.mrf.mxu0
      %v865 = vpop.f32.mrf.mxu0
      %v866 = vadd.f32 %v766, %v865
      %v867 = vpop.f32.mrf.mxu0
      %868 = vmatprep.mubr.bf16.mxu0 0
      %869 = vmatmul.mubr.bf16.gmra.mxu0 %v481
      %v870 = vpop.f32.mrf.mxu0
      %v871 = vadd.f32 %v771, %v870
      %v872 = vpop.f32.mrf.mxu0
      %v873 = vpop.f32.mrf.mxu0
      %v874 = vadd.f32 %v774, %v873
      %v875 = vpop.f32.mrf.mxu0
      %876 = vmatprep.mubr.bf16.mxu0 0
      %877 = vmatmul.mubr.bf16.gmra.mxu0 %v484
      %v878 = vpop.f32.mrf.mxu0
      %v879 = vadd.f32 %v779, %v878
      %v880 = vpop.f32.mrf.mxu0
      %v881 = vpop.f32.mrf.mxu0
      %v882 = vadd.f32 %v782, %v881
      %v883 = vpop.f32.mrf.mxu0
      %884 = vmatprep.mubr.bf16.mxu0 0
      %885 = vmatmul.mubr.bf16.gmra.mxu0 %v487
      %v886 = vpop.f32.mrf.mxu0
      %v887 = vadd.f32 %v787, %v886
      %v888 = vpop.f32.mrf.mxu0
      %v889 = vpop.f32.mrf.mxu0
      %v890 = vadd.f32 %v790, %v889
      %v891 = vpop.f32.mrf.mxu0
      %892 = vmatprep.mubr.bf16.mxu0 0
      %893 = vmatmul.mubr.bf16.gmra.mxu0 %v490
      %v894 = vpop.f32.mrf.mxu0
      %v895 = vadd.f32 %v795, %v894
      %v896 = vpop.f32.mrf.mxu0
      %v897 = vpop.f32.mrf.mxu0
      %v898 = vadd.f32 %v798, %v897
      %v899 = vpop.f32.mrf.mxu0
      %900 = vmatprep.mubr.bf16.mxu0 0
      %901 = vmatmul.mubr.bf16.gmra.mxu0 %v493
      %v902 = vpop.f32.mrf.mxu0
      %v903 = vadd.f32 %v803, %v902
      %v904 = vpop.f32.mrf.mxu0
      %v905 = vpop.f32.mrf.mxu0
      %v906 = vadd.f32 %v806, %v905
      %v907 = vpop.f32.mrf.mxu0
      %908 = vdwg.mxu0
      %s909 = scalar_lea.vmem %s3, 10
      %v910 = vld [vmem:[%s909] sm:$0x3]
      %v912 = vsel %vm498, %v910, 0
      %914 = vmatprep.subr.bf16.mxu0 0
      %915 = vmatpush1.bf16.msra.mxu0 0
      %916 = vmatprep.subr.bf16.mxu0 0
      %917 = vmatpush1.bf16.msra.mxu0 0
      %918 = vmatprep.subr.bf16.mxu0 0
      %919 = vmatpush1.bf16.msra.mxu0 0
      %920 = vmatprep.subr.bf16.mxu0 0
      %921 = vmatpush1.bf16.msra.mxu0 0
      %922 = vmatprep.subr.bf16.mxu0 0
      %923 = vmatpush1.bf16.msra.mxu0 0
      %924 = vmatprep.subr.bf16.mxu0 0
      %925 = vmatpush1.bf16.msra.mxu0 0
      %926 = vmatprep.subr.bf16.mxu0 0
      %927 = vmatpush1.bf16.msra.mxu0 0
      %928 = vmatprep.subr.bf16.mxu0 0
      %929 = vmatpush1.bf16.msra.mxu0 %v912
      %930 = vmatprep.subr.bf16.mxu0 0
      %931 = vmatpush2.bf16.msra.mxu0 0
      %932 = vmatprep.subr.bf16.mxu0 0
      %933 = vmatpush2.bf16.msra.mxu0 0
      %934 = vmatprep.subr.bf16.mxu0 0
      %935 = vmatpush2.bf16.msra.mxu0 0
      %936 = vmatprep.subr.bf16.mxu0 0
      %937 = vmatpush2.bf16.msra.mxu0 0
      %938 = vmatprep.subr.bf16.mxu0 0
      %939 = vmatpush2.bf16.msra.mxu0 0
      %940 = vmatprep.subr.bf16.mxu0 0
      %941 = vmatpush2.bf16.msra.mxu0 0
      %942 = vmatprep.subr.bf16.mxu0 0
      %943 = vmatpush2.bf16.msra.mxu0 0
      %944 = vmatprep.subr.bf16.mxu0 0
      %945 = vmatpush2.bf16.msra.mxu0 0
      %946 = vmatprep.mubr.bf16.mxu0 0
      %947 = vmatmul.mubr.bf16.gmra.mxu0 %v475
      %v948 = vpop.f32.mrf.mxu0
      %v949 = vadd.f32 0.0, %v948
      %v950 = vpop.f32.mrf.mxu0
      %v951 = vpop.f32.mrf.mxu0
      %v952 = vadd.f32 0.0, %v951
      %v953 = vpop.f32.mrf.mxu0
      %954 = vmatprep.mubr.bf16.mxu0 0
      %955 = vmatmul.mubr.bf16.gmra.mxu0 %v478
      %v956 = vpop.f32.mrf.mxu0
      %v957 = vadd.f32 0.0, %v956
      %v958 = vpop.f32.mrf.mxu0
      %v959 = vpop.f32.mrf.mxu0
      %v960 = vadd.f32 0.0, %v959
      %v961 = vpop.f32.mrf.mxu0
      %962 = vmatprep.mubr.bf16.mxu0 0
      %963 = vmatmul.mubr.bf16.gmra.mxu0 %v481
      %v964 = vpop.f32.mrf.mxu0
      %v965 = vadd.f32 0.0, %v964
      %v966 = vpop.f32.mrf.mxu0
      %v967 = vpop.f32.mrf.mxu0
      %v968 = vadd.f32 0.0, %v967
      %v969 = vpop.f32.mrf.mxu0
      %970 = vmatprep.mubr.bf16.mxu0 0
      %971 = vmatmul.mubr.bf16.gmra.mxu0 %v484
      %v972 = vpop.f32.mrf.mxu0
      %v973 = vadd.f32 0.0, %v972
      %v974 = vpop.f32.mrf.mxu0
      %v975 = vpop.f32.mrf.mxu0
      %v976 = vadd.f32 0.0, %v975
      %v977 = vpop.f32.mrf.mxu0
      %978 = vmatprep.mubr.bf16.mxu0 0
      %979 = vmatmul.mubr.bf16.gmra.mxu0 %v487
      %v980 = vpop.f32.mrf.mxu0
      %v981 = vadd.f32 0.0, %v980
      %v982 = vpop.f32.mrf.mxu0
      %v983 = vpop.f32.mrf.mxu0
      %v984 = vadd.f32 0.0, %v983
      %v985 = vpop.f32.mrf.mxu0
      %986 = vmatprep.mubr.bf16.mxu0 0
      %987 = vmatmul.mubr.bf16.gmra.mxu0 %v490
      %v988 = vpop.f32.mrf.mxu0
      %v989 = vadd.f32 0.0, %v988
      %v990 = vpop.f32.mrf.mxu0
      %v991 = vpop.f32.mrf.mxu0
      %v992 = vadd.f32 0.0, %v991
      %v993 = vpop.f32.mrf.mxu0
      %994 = vmatprep.mubr.bf16.mxu0 0
      %995 = vmatmul.mubr.bf16.gmra.mxu0 %v493
      %v996 = vpop.f32.mrf.mxu0
      %v997 = vadd.f32 0.0, %v996
      %v998 = vpop.f32.mrf.mxu0
      %v999 = vpop.f32.mrf.mxu0
      %v1000 = vadd.f32 0.0, %v999
      %v1001 = vpop.f32.mrf.mxu0
      %1002 = vmatprep.mubr.bf16.mxu0 0
      %1003 = vmatmul.mubr.bf16.gmra.mxu0 %v496
      %v1004 = vpop.f32.mrf.mxu0
      %v1005 = vadd.f32 0.0, %v1004
      %v1006 = vpop.f32.mrf.mxu0
      %v1007 = vpop.f32.mrf.mxu0
      %v1008 = vadd.f32 0.0, %v1007
      %v1009 = vpop.f32.mrf.mxu0
      %1010 = vdwg.mxu0
      %v1012 = vsel %vm498, %v430, 0
      %1014 = vmatprep.subr.bf16.mxu0 0
      %1015 = vmatpush1.bf16.msra.mxu0 0
      %1016 = vmatprep.subr.bf16.mxu0 0
      %1017 = vmatpush1.bf16.msra.mxu0 0
      %1018 = vmatprep.subr.bf16.mxu0 0
      %1019 = vmatpush1.bf16.msra.mxu0 0
      %1020 = vmatprep.subr.bf16.mxu0 0
      %1021 = vmatpush1.bf16.msra.mxu0 0
      %1022 = vmatprep.subr.bf16.mxu0 0
      %1023 = vmatpush1.bf16.msra.mxu0 0
      %1024 = vmatprep.subr.bf16.mxu0 0
      %1025 = vmatpush1.bf16.msra.mxu0 0
      %1026 = vmatprep.subr.bf16.mxu0 0
      %1027 = vmatpush1.bf16.msra.mxu0 0
      %1028 = vmatprep.subr.bf16.mxu0 0
      %1029 = vmatpush1.bf16.msra.mxu0 %v1012
      %1030 = vmatprep.subr.bf16.mxu0 0
      %1031 = vmatpush2.bf16.msra.mxu0 0
      %1032 = vmatprep.subr.bf16.mxu0 0
      %1033 = vmatpush2.bf16.msra.mxu0 0
      %1034 = vmatprep.subr.bf16.mxu0 0
      %1035 = vmatpush2.bf16.msra.mxu0 0
      %1036 = vmatprep.subr.bf16.mxu0 0
      %1037 = vmatpush2.bf16.msra.mxu0 0
      %1038 = vmatprep.subr.bf16.mxu0 0
      %1039 = vmatpush2.bf16.msra.mxu0 0
      %1040 = vmatprep.subr.bf16.mxu0 0
      %1041 = vmatpush2.bf16.msra.mxu0 0
      %1042 = vmatprep.subr.bf16.mxu0 0
      %1043 = vmatpush2.bf16.msra.mxu0 0
      %1044 = vmatprep.subr.bf16.mxu0 0
      %1045 = vmatpush2.bf16.msra.mxu0 0
      %1046 = vmatprep.mubr.bf16.mxu0 0
      %1047 = vmatmul.mubr.bf16.gmra.mxu0 %v605
      %v1048 = vpop.f32.mrf.mxu0
      %v1049 = vadd.f32 %v949, %v1048
      %v1050 = vpop.f32.mrf.mxu0
      %v1051 = vpop.f32.mrf.mxu0
      %v1052 = vadd.f32 %v952, %v1051
      %v1053 = vpop.f32.mrf.mxu0
      %1054 = vmatprep.mubr.bf16.mxu0 0
      %1055 = vmatmul.mubr.bf16.gmra.mxu0 %v475
      %v1056 = vpop.f32.mrf.mxu0
      %v1057 = vadd.f32 %v957, %v1056
      %v1058 = vpop.f32.mrf.mxu0
      %v1059 = vpop.f32.mrf.mxu0
      %v1060 = vadd.f32 %v960, %v1059
      %v1061 = vpop.f32.mrf.mxu0
      %1062 = vmatprep.mubr.bf16.mxu0 0
      %1063 = vmatmul.mubr.bf16.gmra.mxu0 %v478
      %v1064 = vpop.f32.mrf.mxu0
      %v1065 = vadd.f32 %v965, %v1064
      %v1066 = vpop.f32.mrf.mxu0
      %v1067 = vpop.f32.mrf.mxu0
      %v1068 = vadd.f32 %v968, %v1067
      %v1069 = vpop.f32.mrf.mxu0
      %1070 = vmatprep.mubr.bf16.mxu0 0
      %1071 = vmatmul.mubr.bf16.gmra.mxu0 %v481
      %v1072 = vpop.f32.mrf.mxu0
      %v1073 = vadd.f32 %v973, %v1072
      %v1074 = vpop.f32.mrf.mxu0
      %v1075 = vpop.f32.mrf.mxu0
      %v1076 = vadd.f32 %v976, %v1075
      %v1077 = vpop.f32.mrf.mxu0
      %1078 = vmatprep.mubr.bf16.mxu0 0
      %1079 = vmatmul.mubr.bf16.gmra.mxu0 %v484
      %v1080 = vpop.f32.mrf.mxu0
      %v1081 = vadd.f32 %v981, %v1080
      %v1082 = vpop.f32.mrf.mxu0
      %v1083 = vpop.f32.mrf.mxu0
      %v1084 = vadd.f32 %v984, %v1083
      %v1085 = vpop.f32.mrf.mxu0
      %1086 = vmatprep.mubr.bf16.mxu0 0
      %1087 = vmatmul.mubr.bf16.gmra.mxu0 %v487
      %v1088 = vpop.f32.mrf.mxu0
      %v1089 = vadd.f32 %v989, %v1088
      %v1090 = vpop.f32.mrf.mxu0
      %v1091 = vpop.f32.mrf.mxu0
      %v1092 = vadd.f32 %v992, %v1091
      %v1093 = vpop.f32.mrf.mxu0
      %1094 = vmatprep.mubr.bf16.mxu0 0
      %1095 = vmatmul.mubr.bf16.gmra.mxu0 %v490
      %v1096 = vpop.f32.mrf.mxu0
      %v1097 = vadd.f32 %v997, %v1096
      %v1098 = vpop.f32.mrf.mxu0
      %v1099 = vpop.f32.mrf.mxu0
      %v1100 = vadd.f32 %v1000, %v1099
      %v1101 = vpop.f32.mrf.mxu0
      %1102 = vmatprep.mubr.bf16.mxu0 0
      %1103 = vmatmul.mubr.bf16.gmra.mxu0 %v493
      %v1104 = vpop.f32.mrf.mxu0
      %v1105 = vadd.f32 %v1005, %v1104
      %v1106 = vpop.f32.mrf.mxu0
      %v1107 = vpop.f32.mrf.mxu0
      %v1108 = vadd.f32 %v1008, %v1107
      %v1109 = vpop.f32.mrf.mxu0
      %1110 = vdwg.mxu0
      %s1111 = scalar_lea.vmem %s3, 12
      %v1112 = vld [vmem:[%s1111] sm:$0x3]
      %v1115 = vunpack.c.l.b16 %v424
      %v1116 = vunpack.c.l.b16 %v425
      %v1117 = vpack.c.b16 %v1116, %v1115
      %v1119 = vsel %vm473, %v1117, 0
      %v1122 = vsel %vm498, %v1112, 0
      %1124 = vmatprep.subr.bf16.mxu0 0
      %1125 = vmatpush1.bf16.msra.mxu0 0
      %1126 = vmatprep.subr.bf16.mxu0 0
      %1127 = vmatpush1.bf16.msra.mxu0 0
      %1128 = vmatprep.subr.bf16.mxu0 0
      %1129 = vmatpush1.bf16.msra.mxu0 0
      %1130 = vmatprep.subr.bf16.mxu0 0
      %1131 = vmatpush1.bf16.msra.mxu0 0
      %1132 = vmatprep.subr.bf16.mxu0 0
      %1133 = vmatpush1.bf16.msra.mxu0 0
      %1134 = vmatprep.subr.bf16.mxu0 0
      %1135 = vmatpush1.bf16.msra.mxu0 0
      %1136 = vmatprep.subr.bf16.mxu0 0
      %1137 = vmatpush1.bf16.msra.mxu0 0
      %1138 = vmatprep.subr.bf16.mxu0 0
      %1139 = vmatpush1.bf16.msra.mxu0 %v1122
      %1140 = vmatprep.subr.bf16.mxu0 0
      %1141 = vmatpush2.bf16.msra.mxu0 0
      %1142 = vmatprep.subr.bf16.mxu0 0
      %1143 = vmatpush2.bf16.msra.mxu0 0
      %1144 = vmatprep.subr.bf16.mxu0 0
      %1145 = vmatpush2.bf16.msra.mxu0 0
      %1146 = vmatprep.subr.bf16.mxu0 0
      %1147 = vmatpush2.bf16.msra.mxu0 0
      %1148 = vmatprep.subr.bf16.mxu0 0
      %1149 = vmatpush2.bf16.msra.mxu0 0
      %1150 = vmatprep.subr.bf16.mxu0 0
      %1151 = vmatpush2.bf16.msra.mxu0 0
      %1152 = vmatprep.subr.bf16.mxu0 0
      %1153 = vmatpush2.bf16.msra.mxu0 0
      %1154 = vmatprep.subr.bf16.mxu0 0
      %1155 = vmatpush2.bf16.msra.mxu0 0
      %1156 = vmatprep.mubr.bf16.mxu0 0
      %1157 = vmatmul.mubr.bf16.gmra.mxu0 %v478
      %v1158 = vpop.f32.mrf.mxu0
      %v1159 = vadd.f32 0.0, %v1158
      %v1160 = vpop.f32.mrf.mxu0
      %v1161 = vpop.f32.mrf.mxu0
      %v1162 = vadd.f32 0.0, %v1161
      %v1163 = vpop.f32.mrf.mxu0
      %1164 = vmatprep.mubr.bf16.mxu0 0
      %1165 = vmatmul.mubr.bf16.gmra.mxu0 %v481
      %v1166 = vpop.f32.mrf.mxu0
      %v1167 = vadd.f32 0.0, %v1166
      %v1168 = vpop.f32.mrf.mxu0
      %v1169 = vpop.f32.mrf.mxu0
      %v1170 = vadd.f32 0.0, %v1169
      %v1171 = vpop.f32.mrf.mxu0
      %1172 = vmatprep.mubr.bf16.mxu0 0
      %1173 = vmatmul.mubr.bf16.gmra.mxu0 %v484
      %v1174 = vpop.f32.mrf.mxu0
      %v1175 = vadd.f32 0.0, %v1174
      %v1176 = vpop.f32.mrf.mxu0
      %v1177 = vpop.f32.mrf.mxu0
      %v1178 = vadd.f32 0.0, %v1177
      %v1179 = vpop.f32.mrf.mxu0
      %1180 = vmatprep.mubr.bf16.mxu0 0
      %1181 = vmatmul.mubr.bf16.gmra.mxu0 %v487
      %v1182 = vpop.f32.mrf.mxu0
      %v1183 = vadd.f32 0.0, %v1182
      %v1184 = vpop.f32.mrf.mxu0
      %v1185 = vpop.f32.mrf.mxu0
      %v1186 = vadd.f32 0.0, %v1185
      %v1187 = vpop.f32.mrf.mxu0
      %1188 = vmatprep.mubr.bf16.mxu0 0
      %1189 = vmatmul.mubr.bf16.gmra.mxu0 %v490
      %v1190 = vpop.f32.mrf.mxu0
      %v1191 = vadd.f32 0.0, %v1190
      %v1192 = vpop.f32.mrf.mxu0
      %v1193 = vpop.f32.mrf.mxu0
      %v1194 = vadd.f32 0.0, %v1193
      %v1195 = vpop.f32.mrf.mxu0
      %1196 = vmatprep.mubr.bf16.mxu0 0
      %1197 = vmatmul.mubr.bf16.gmra.mxu0 %v493
      %v1198 = vpop.f32.mrf.mxu0
      %v1199 = vadd.f32 0.0, %v1198
      %v1200 = vpop.f32.mrf.mxu0
      %v1201 = vpop.f32.mrf.mxu0
      %v1202 = vadd.f32 0.0, %v1201
      %v1203 = vpop.f32.mrf.mxu0
      %1204 = vmatprep.mubr.bf16.mxu0 0
      %1205 = vmatmul.mubr.bf16.gmra.mxu0 %v496
      %v1206 = vpop.f32.mrf.mxu0
      %v1207 = vadd.f32 0.0, %v1206
      %v1208 = vpop.f32.mrf.mxu0
      %v1209 = vpop.f32.mrf.mxu0
      %v1210 = vadd.f32 0.0, %v1209
      %v1211 = vpop.f32.mrf.mxu0
      %1212 = vmatprep.mubr.bf16.mxu0 0
      %1213 = vmatmul.mubr.bf16.gmra.mxu0 %v1119
      %v1214 = vpop.f32.mrf.mxu0
      %v1215 = vadd.f32 0.0, %v1214
      %v1216 = vpop.f32.mrf.mxu0
      %v1217 = vpop.f32.mrf.mxu0
      %v1218 = vadd.f32 0.0, %v1217
      %v1219 = vpop.f32.mrf.mxu0
      %1220 = vdwg.mxu0
      %v1221 = vadd.f32 %v645, %v1159
      %v1222 = vadd.f32 %v648, %v1162
      %v1223 = vadd.f32 %v653, %v1167
      %v1224 = vadd.f32 %v656, %v1170
      %v1225 = vadd.f32 %v661, %v1175
      %v1226 = vadd.f32 %v664, %v1178
      %v1227 = vadd.f32 %v669, %v1183
      %v1228 = vadd.f32 %v672, %v1186
      %v1229 = vadd.f32 %v677, %v1191
      %v1230 = vadd.f32 %v680, %v1194
      %v1231 = vadd.f32 %v685, %v1199
      %v1232 = vadd.f32 %v688, %v1202
      %v1233 = vadd.f32 %v693, %v1207
      %v1234 = vadd.f32 %v696, %v1210
      %v1235 = vadd.f32 %v701, %v1215
      %v1236 = vadd.f32 %v704, %v1218
      %s1237 = scalar_lea.vmem %s3, 14
      %v1238 = vld [vmem:[%s1237] sm:$0x3]
      %v1240 = vsel %vm498, %v1238, 0
      %1242 = vmatprep.subr.bf16.mxu0 0
      %1243 = vmatpush1.bf16.msra.mxu0 0
      %1244 = vmatprep.subr.bf16.mxu0 0
      %1245 = vmatpush1.bf16.msra.mxu0 0
      %1246 = vmatprep.subr.bf16.mxu0 0
      %1247 = vmatpush1.bf16.msra.mxu0 0
      %1248 = vmatprep.subr.bf16.mxu0 0
      %1249 = vmatpush1.bf16.msra.mxu0 0
      %1250 = vmatprep.subr.bf16.mxu0 0
      %1251 = vmatpush1.bf16.msra.mxu0 0
      %1252 = vmatprep.subr.bf16.mxu0 0
      %1253 = vmatpush1.bf16.msra.mxu0 0
      %1254 = vmatprep.subr.bf16.mxu0 0
      %1255 = vmatpush1.bf16.msra.mxu0 0
      %1256 = vmatprep.subr.bf16.mxu0 0
      %1257 = vmatpush1.bf16.msra.mxu0 %v1240
      %1258 = vmatprep.subr.bf16.mxu0 0
      %1259 = vmatpush2.bf16.msra.mxu0 0
      %1260 = vmatprep.subr.bf16.mxu0 0
      %1261 = vmatpush2.bf16.msra.mxu0 0
      %1262 = vmatprep.subr.bf16.mxu0 0
      %1263 = vmatpush2.bf16.msra.mxu0 0
      %1264 = vmatprep.subr.bf16.mxu0 0
      %1265 = vmatpush2.bf16.msra.mxu0 0
      %1266 = vmatprep.subr.bf16.mxu0 0
      %1267 = vmatpush2.bf16.msra.mxu0 0
      %1268 = vmatprep.subr.bf16.mxu0 0
      %1269 = vmatpush2.bf16.msra.mxu0 0
      %1270 = vmatprep.subr.bf16.mxu0 0
      %1271 = vmatpush2.bf16.msra.mxu0 0
      %1272 = vmatprep.subr.bf16.mxu0 0
      %1273 = vmatpush2.bf16.msra.mxu0 0
      %1274 = vmatprep.mubr.bf16.mxu0 0
      %1275 = vmatmul.mubr.bf16.gmra.mxu0 %v478
      %v1276 = vpop.f32.mrf.mxu0
      %v1277 = vadd.f32 0.0, %v1276
      %v1278 = vpop.f32.mrf.mxu0
      %v1279 = vpop.f32.mrf.mxu0
      %v1280 = vadd.f32 0.0, %v1279
      %v1281 = vpop.f32.mrf.mxu0
      %1282 = vmatprep.mubr.bf16.mxu0 0
      %1283 = vmatmul.mubr.bf16.gmra.mxu0 %v481
      %v1284 = vpop.f32.mrf.mxu0
      %v1285 = vadd.f32 0.0, %v1284
      %v1286 = vpop.f32.mrf.mxu0
      %v1287 = vpop.f32.mrf.mxu0
      %v1288 = vadd.f32 0.0, %v1287
      %v1289 = vpop.f32.mrf.mxu0
      %1290 = vmatprep.mubr.bf16.mxu0 0
      %1291 = vmatmul.mubr.bf16.gmra.mxu0 %v484
      %v1292 = vpop.f32.mrf.mxu0
      %v1293 = vadd.f32 0.0, %v1292
      %v1294 = vpop.f32.mrf.mxu0
      %v1295 = vpop.f32.mrf.mxu0
      %v1296 = vadd.f32 0.0, %v1295
      %v1297 = vpop.f32.mrf.mxu0
      %1298 = vmatprep.mubr.bf16.mxu0 0
      %1299 = vmatmul.mubr.bf16.gmra.mxu0 %v487
      %v1300 = vpop.f32.mrf.mxu0
      %v1301 = vadd.f32 0.0, %v1300
      %v1302 = vpop.f32.mrf.mxu0
      %v1303 = vpop.f32.mrf.mxu0
      %v1304 = vadd.f32 0.0, %v1303
      %v1305 = vpop.f32.mrf.mxu0
      %1306 = vmatprep.mubr.bf16.mxu0 0
      %1307 = vmatmul.mubr.bf16.gmra.mxu0 %v490
      %v1308 = vpop.f32.mrf.mxu0
      %v1309 = vadd.f32 0.0, %v1308
      %v1310 = vpop.f32.mrf.mxu0
      %v1311 = vpop.f32.mrf.mxu0
      %v1312 = vadd.f32 0.0, %v1311
      %v1313 = vpop.f32.mrf.mxu0
      %1314 = vmatprep.mubr.bf16.mxu0 0
      %1315 = vmatmul.mubr.bf16.gmra.mxu0 %v493
      %v1316 = vpop.f32.mrf.mxu0
      %v1317 = vadd.f32 0.0, %v1316
      %v1318 = vpop.f32.mrf.mxu0
      %v1319 = vpop.f32.mrf.mxu0
      %v1320 = vadd.f32 0.0, %v1319
      %v1321 = vpop.f32.mrf.mxu0
      %1322 = vmatprep.mubr.bf16.mxu0 0
      %1323 = vmatmul.mubr.bf16.gmra.mxu0 %v496
      %v1324 = vpop.f32.mrf.mxu0
      %v1325 = vadd.f32 0.0, %v1324
      %v1326 = vpop.f32.mrf.mxu0
      %v1327 = vpop.f32.mrf.mxu0
      %v1328 = vadd.f32 0.0, %v1327
      %v1329 = vpop.f32.mrf.mxu0
      %1330 = vmatprep.mubr.bf16.mxu0 0
      %1331 = vmatmul.mubr.bf16.gmra.mxu0 %v1119
      %v1332 = vpop.f32.mrf.mxu0
      %v1333 = vadd.f32 0.0, %v1332
      %v1334 = vpop.f32.mrf.mxu0
      %v1335 = vpop.f32.mrf.mxu0
      %v1336 = vadd.f32 0.0, %v1335
      %v1337 = vpop.f32.mrf.mxu0
      %1338 = vdwg.mxu0
      %v1339 = vadd.f32 %v847, %v1277
      %v1340 = vadd.f32 %v850, %v1280
      %v1341 = vadd.f32 %v855, %v1285
      %v1342 = vadd.f32 %v858, %v1288
      %v1343 = vadd.f32 %v863, %v1293
      %v1344 = vadd.f32 %v866, %v1296
      %v1345 = vadd.f32 %v871, %v1301
      %v1346 = vadd.f32 %v874, %v1304
      %v1347 = vadd.f32 %v879, %v1309
      %v1348 = vadd.f32 %v882, %v1312
      %v1349 = vadd.f32 %v887, %v1317
      %v1350 = vadd.f32 %v890, %v1320
      %v1351 = vadd.f32 %v895, %v1325
      %v1352 = vadd.f32 %v898, %v1328
      %v1353 = vadd.f32 %v903, %v1333
      %v1354 = vadd.f32 %v906, %v1336
      %s1355 = scalar_lea.vmem %s3, 16
      %v1356 = vld [vmem:[%s1355] sm:$0x3]
      %v1358 = vsel %vm498, %v1356, 0
      %1360 = vmatprep.subr.bf16.mxu0 0
      %1361 = vmatpush1.bf16.msra.mxu0 0
      %1362 = vmatprep.subr.bf16.mxu0 0
      %1363 = vmatpush1.bf16.msra.mxu0 0
      %1364 = vmatprep.subr.bf16.mxu0 0
      %1365 = vmatpush1.bf16.msra.mxu0 0
      %1366 = vmatprep.subr.bf16.mxu0 0
      %1367 = vmatpush1.bf16.msra.mxu0 0
      %1368 = vmatprep.subr.bf16.mxu0 0
      %1369 = vmatpush1.bf16.msra.mxu0 0
      %1370 = vmatprep.subr.bf16.mxu0 0
      %1371 = vmatpush1.bf16.msra.mxu0 0
      %1372 = vmatprep.subr.bf16.mxu0 0
      %1373 = vmatpush1.bf16.msra.mxu0 0
      %1374 = vmatprep.subr.bf16.mxu0 0
      %1375 = vmatpush1.bf16.msra.mxu0 %v1358
      %1376 = vmatprep.subr.bf16.mxu0 0
      %1377 = vmatpush2.bf16.msra.mxu0 0
      %1378 = vmatprep.subr.bf16.mxu0 0
      %1379 = vmatpush2.bf16.msra.mxu0 0
      %1380 = vmatprep.subr.bf16.mxu0 0
      %1381 = vmatpush2.bf16.msra.mxu0 0
      %1382 = vmatprep.subr.bf16.mxu0 0
      %1383 = vmatpush2.bf16.msra.mxu0 0
      %1384 = vmatprep.subr.bf16.mxu0 0
      %1385 = vmatpush2.bf16.msra.mxu0 0
      %1386 = vmatprep.subr.bf16.mxu0 0
      %1387 = vmatpush2.bf16.msra.mxu0 0
      %1388 = vmatprep.subr.bf16.mxu0 0
      %1389 = vmatpush2.bf16.msra.mxu0 0
      %1390 = vmatprep.subr.bf16.mxu0 0
      %1391 = vmatpush2.bf16.msra.mxu0 0
      %1392 = vmatprep.mubr.bf16.mxu0 0
      %1393 = vmatmul.mubr.bf16.gmra.mxu0 %v478
      %v1394 = vpop.f32.mrf.mxu0
      %v1395 = vadd.f32 0.0, %v1394
      %v1396 = vpop.f32.mrf.mxu0
      %v1397 = vpop.f32.mrf.mxu0
      %v1398 = vadd.f32 0.0, %v1397
      %v1399 = vpop.f32.mrf.mxu0
      %1400 = vmatprep.mubr.bf16.mxu0 0
      %1401 = vmatmul.mubr.bf16.gmra.mxu0 %v481
      %v1402 = vpop.f32.mrf.mxu0
      %v1403 = vadd.f32 0.0, %v1402
      %v1404 = vpop.f32.mrf.mxu0
      %v1405 = vpop.f32.mrf.mxu0
      %v1406 = vadd.f32 0.0, %v1405
      %v1407 = vpop.f32.mrf.mxu0
      %1408 = vmatprep.mubr.bf16.mxu0 0
      %1409 = vmatmul.mubr.bf16.gmra.mxu0 %v484
      %v1410 = vpop.f32.mrf.mxu0
      %v1411 = vadd.f32 0.0, %v1410
      %v1412 = vpop.f32.mrf.mxu0
      %v1413 = vpop.f32.mrf.mxu0
      %v1414 = vadd.f32 0.0, %v1413
      %v1415 = vpop.f32.mrf.mxu0
      %1416 = vmatprep.mubr.bf16.mxu0 0
      %1417 = vmatmul.mubr.bf16.gmra.mxu0 %v487
      %v1418 = vpop.f32.mrf.mxu0
      %v1419 = vadd.f32 0.0, %v1418
      %v1420 = vpop.f32.mrf.mxu0
      %v1421 = vpop.f32.mrf.mxu0
      %v1422 = vadd.f32 0.0, %v1421
      %v1423 = vpop.f32.mrf.mxu0
      %1424 = vmatprep.mubr.bf16.mxu0 0
      %1425 = vmatmul.mubr.bf16.gmra.mxu0 %v490
      %v1426 = vpop.f32.mrf.mxu0
      %v1427 = vadd.f32 0.0, %v1426
      %v1428 = vpop.f32.mrf.mxu0
      %v1429 = vpop.f32.mrf.mxu0
      %v1430 = vadd.f32 0.0, %v1429
      %v1431 = vpop.f32.mrf.mxu0
      %1432 = vmatprep.mubr.bf16.mxu0 0
      %1433 = vmatmul.mubr.bf16.gmra.mxu0 %v493
      %v1434 = vpop.f32.mrf.mxu0
      %v1435 = vadd.f32 0.0, %v1434
      %v1436 = vpop.f32.mrf.mxu0
      %v1437 = vpop.f32.mrf.mxu0
      %v1438 = vadd.f32 0.0, %v1437
      %v1439 = vpop.f32.mrf.mxu0
      %1440 = vmatprep.mubr.bf16.mxu0 0
      %1441 = vmatmul.mubr.bf16.gmra.mxu0 %v496
      %v1442 = vpop.f32.mrf.mxu0
      %v1443 = vadd.f32 0.0, %v1442
      %v1444 = vpop.f32.mrf.mxu0
      %v1445 = vpop.f32.mrf.mxu0
      %v1446 = vadd.f32 0.0, %v1445
      %v1447 = vpop.f32.mrf.mxu0
      %1448 = vmatprep.mubr.bf16.mxu0 0
      %1449 = vmatmul.mubr.bf16.gmra.mxu0 %v1119
      %v1450 = vpop.f32.mrf.mxu0
      %v1451 = vadd.f32 0.0, %v1450
      %v1452 = vpop.f32.mrf.mxu0
      %v1453 = vpop.f32.mrf.mxu0
      %v1454 = vadd.f32 0.0, %v1453
      %v1455 = vpop.f32.mrf.mxu0
      %1456 = vdwg.mxu0
      %v1457 = vadd.f32 %v1049, %v1395
      %v1458 = vadd.f32 %v1052, %v1398
      %v1459 = vadd.f32 %v1057, %v1403
      %v1460 = vadd.f32 %v1060, %v1406
      %v1461 = vadd.f32 %v1065, %v1411
      %v1462 = vadd.f32 %v1068, %v1414
      %v1463 = vadd.f32 %v1073, %v1419
      %v1464 = vadd.f32 %v1076, %v1422
      %v1465 = vadd.f32 %v1081, %v1427
      %v1466 = vadd.f32 %v1084, %v1430
      %v1467 = vadd.f32 %v1089, %v1435
      %v1468 = vadd.f32 %v1092, %v1438
      %v1469 = vadd.f32 %v1097, %v1443
      %v1470 = vadd.f32 %v1100, %v1446
      %v1471 = vadd.f32 %v1105, %v1451
      %v1472 = vadd.f32 %v1108, %v1454
      %vm1473 = vcmask 24576
      %1474 = vst.msk [vmem:[#allocation2] sm:$0x1] %vm1473, 0.0
      %1475 = vst.msk [vmem:[#allocation2 + $0x18] sm:$0x1] %vm1473, 0.0
      %1476 = vst.msk [vmem:[#allocation2 + $0x30] sm:$0x1] %vm1473, 0.0
      %1477 = vst.msk [vmem:[#allocation2 + $0x48] sm:$0x1] %vm1473, 0.0
      %1478 = vst.msk [vmem:[#allocation2 + $0x60] sm:$0x1] %vm1473, 0.0
      %1479 = vst.msk [vmem:[#allocation2 + $0x78] sm:$0x1] %vm1473, 0.0
      %1480 = vst.msk [vmem:[#allocation2 + $0x90] sm:$0x1] %vm1473, 0.0
      %1481 = vst.msk [vmem:[#allocation2 + $0xa8] sm:$0x1] %vm1473, 0.0
      %1482 = vst.msk [vmem:[#allocation2 + $0x1] sm:$0xff] %vm473, %v1221
      %1483 = vst.msk [vmem:[#allocation2 + $0x9] sm:$0xff] %vm473, %v1222
      %1484 = vst.msk [vmem:[#allocation2 + $0x19] sm:$0xff] %vm473, %v1223
      %1485 = vst.msk [vmem:[#allocation2 + $0x21] sm:$0xff] %vm473, %v1224
      %1486 = vst.msk [vmem:[#allocation2 + $0x31] sm:$0xff] %vm473, %v1225
      %1487 = vst.msk [vmem:[#allocation2 + $0x39] sm:$0xff] %vm473, %v1226
      %1488 = vst.msk [vmem:[#allocation2 + $0x49] sm:$0xff] %vm473, %v1227
      %1489 = vst.msk [vmem:[#allocation2 + $0x51] sm:$0xff] %vm473, %v1228
      %1490 = vst.msk [vmem:[#allocation2 + $0x61] sm:$0xff] %vm473, %v1229
      %1491 = vst.msk [vmem:[#allocation2 + $0x69] sm:$0xff] %vm473, %v1230
      %1492 = vst.msk [vmem:[#allocation2 + $0x79] sm:$0xff] %vm473, %v1231
      %1493 = vst.msk [vmem:[#allocation2 + $0x81] sm:$0xff] %vm473, %v1232
      %1494 = vst.msk [vmem:[#allocation2 + $0x91] sm:$0xff] %vm473, %v1233
      %1495 = vst.msk [vmem:[#allocation2 + $0x99] sm:$0xff] %vm473, %v1234
      %1496 = vst.msk [vmem:[#allocation2 + $0xa9] sm:$0xff] %vm473, %v1235
      %1497 = vst.msk [vmem:[#allocation2 + $0xb1] sm:$0xff] %vm473, %v1236
      %s1498 = scalar_lea.vmem [#allocation2], 192
      %1499 = vst.msk [vmem:[%s1498 + $0x1] sm:$0xff] %vm473, %v1457
      %1500 = vst.msk [vmem:[%s1498 + $0x9] sm:$0xff] %vm473, %v1458
      %1501 = vst.msk [vmem:[%s1498 + $0x19] sm:$0xff] %vm473, %v1459
      %1502 = vst.msk [vmem:[%s1498 + $0x21] sm:$0xff] %vm473, %v1460
      %1503 = vst.msk [vmem:[%s1498 + $0x31] sm:$0xff] %vm473, %v1461
      %1504 = vst.msk [vmem:[%s1498 + $0x39] sm:$0xff] %vm473, %v1462
      %1505 = vst.msk [vmem:[%s1498 + $0x49] sm:$0xff] %vm473, %v1463
      %1506 = vst.msk [vmem:[%s1498 + $0x51] sm:$0xff] %vm473, %v1464
      %1507 = vst.msk [vmem:[%s1498 + $0x61] sm:$0xff] %vm473, %v1465
      %1508 = vst.msk [vmem:[%s1498 + $0x69] sm:$0xff] %vm473, %v1466
      %1509 = vst.msk [vmem:[%s1498 + $0x79] sm:$0xff] %vm473, %v1467
      %1510 = vst.msk [vmem:[%s1498 + $0x81] sm:$0xff] %vm473, %v1468
      %1511 = vst.msk [vmem:[%s1498 + $0x91] sm:$0xff] %vm473, %v1469
      %1512 = vst.msk [vmem:[%s1498 + $0x99] sm:$0xff] %vm473, %v1470
      %1513 = vst.msk [vmem:[%s1498 + $0xa9] sm:$0xff] %vm473, %v1471
      %1514 = vst.msk [vmem:[%s1498 + $0xb1] sm:$0xff] %vm473, %v1472
      %1515 = vst.msk [vmem:[%s1498 + $0x11] sm:$0x1] %vm1473, 0.0
      %1516 = vst.msk [vmem:[%s1498 + $0x29] sm:$0x1] %vm1473, 0.0
      %1517 = vst.msk [vmem:[%s1498 + $0x41] sm:$0x1] %vm1473, 0.0
      %1518 = vst.msk [vmem:[%s1498 + $0x59] sm:$0x1] %vm1473, 0.0
      %1519 = vst.msk [vmem:[%s1498 + $0x71] sm:$0x1] %vm1473, 0.0
      %1520 = vst.msk [vmem:[%s1498 + $0x89] sm:$0x1] %vm1473, 0.0
      %1521 = vst.msk [vmem:[%s1498 + $0xa1] sm:$0x1] %vm1473, 0.0
      %1522 = vst.msk [vmem:[%s1498 + $0xb9] sm:$0x1] %vm1473, 0.0
      %v1523 = vld [vmem:[#allocation2] sm:$0xff]
      %v1524 = vld [vmem:[#allocation2 + $0x8] sm:$0xff]
      %v1525 = vld [vmem:[#allocation2 + $0x18] sm:$0xff]
      %v1526 = vld [vmem:[#allocation2 + $0x20] sm:$0xff]
      %v1527 = vld [vmem:[#allocation2 + $0x30] sm:$0xff]
      %v1528 = vld [vmem:[#allocation2 + $0x38] sm:$0xff]
      %v1529 = vld [vmem:[#allocation2 + $0x48] sm:$0xff]
      %v1530 = vld [vmem:[#allocation2 + $0x50] sm:$0xff]
      %v1531 = vld [vmem:[#allocation2 + $0x60] sm:$0xff]
      %v1532 = vld [vmem:[#allocation2 + $0x68] sm:$0xff]
      %v1533 = vld [vmem:[#allocation2 + $0x78] sm:$0xff]
      %v1534 = vld [vmem:[#allocation2 + $0x80] sm:$0xff]
      %v1535 = vld [vmem:[#allocation2 + $0x90] sm:$0xff]
      %v1536 = vld [vmem:[#allocation2 + $0x98] sm:$0xff]
      %v1537 = vld [vmem:[#allocation2 + $0xa8] sm:$0xff]
      %v1538 = vld [vmem:[#allocation2 + $0xb0] sm:$0xff]
      %v1539 = vld [vmem:[%s1498 + $0x2] sm:$0xff]
      %v1540 = vld [vmem:[%s1498 + $0xa] sm:$0xff]
      %v1541 = vld [vmem:[%s1498 + $0x1a] sm:$0xff]
      %v1542 = vld [vmem:[%s1498 + $0x22] sm:$0xff]
      %v1543 = vld [vmem:[%s1498 + $0x32] sm:$0xff]
      %v1544 = vld [vmem:[%s1498 + $0x3a] sm:$0xff]
      %v1545 = vld [vmem:[%s1498 + $0x4a] sm:$0xff]
      %v1546 = vld [vmem:[%s1498 + $0x52] sm:$0xff]
      %v1547 = vld [vmem:[%s1498 + $0x62] sm:$0xff]
      %v1548 = vld [vmem:[%s1498 + $0x6a] sm:$0xff]
      %v1549 = vld [vmem:[%s1498 + $0x7a] sm:$0xff]
      %v1550 = vld [vmem:[%s1498 + $0x82] sm:$0xff]
      %v1551 = vld [vmem:[%s1498 + $0x92] sm:$0xff]
      %v1552 = vld [vmem:[%s1498 + $0x9a] sm:$0xff]
      %v1553 = vld [vmem:[%s1498 + $0xaa] sm:$0xff]
      %v1554 = vld [vmem:[%s1498 + $0xb2] sm:$0xff]
      %v1555 = vadd.f32 %v1339, %v1523
      %v1556 = vadd.f32 %v1340, %v1524
      %v1557 = vadd.f32 %v1341, %v1525
      %v1558 = vadd.f32 %v1342, %v1526
      %v1559 = vadd.f32 %v1343, %v1527
      %v1560 = vadd.f32 %v1344, %v1528
      %v1561 = vadd.f32 %v1345, %v1529
      %v1562 = vadd.f32 %v1346, %v1530
      %v1563 = vadd.f32 %v1347, %v1531
      %v1564 = vadd.f32 %v1348, %v1532
      %v1565 = vadd.f32 %v1349, %v1533
      %v1566 = vadd.f32 %v1350, %v1534
      %v1567 = vadd.f32 %v1351, %v1535
      %v1568 = vadd.f32 %v1352, %v1536
      %v1569 = vadd.f32 %v1353, %v1537
      %v1570 = vadd.f32 %v1354, %v1538
      %v1571 = vadd.f32 %v1555, %v1539
      %v1572 = vadd.f32 %v1556, %v1540
      %v1573 = vadd.f32 %v1557, %v1541
      %v1574 = vadd.f32 %v1558, %v1542
      %v1575 = vadd.f32 %v1559, %v1543
      %v1576 = vadd.f32 %v1560, %v1544
      %v1577 = vadd.f32 %v1561, %v1545
      %v1578 = vadd.f32 %v1562, %v1546
      %v1579 = vadd.f32 %v1563, %v1547
      %v1580 = vadd.f32 %v1564, %v1548
      %v1581 = vadd.f32 %v1565, %v1549
      %v1582 = vadd.f32 %v1566, %v1550
      %v1583 = vadd.f32 %v1567, %v1551
      %v1584 = vadd.f32 %v1568, %v1552
      %v1585 = vadd.f32 %v1569, %v1553
      %v1586 = vadd.f32 %v1570, %v1554
      %v1587 = vld [vmem:[%s4] sm:$0x1]
      %v1589 = vlaneseq
      %v1590 = vshrl.u32 %v1589, 7
      %v1591 = vsub.s32 0, %v1590
      %v1592 = vrot.slane %v1587, %v1591
      %v1594 = vadd.f32 %v1571, %v1592
      %v1595 = vadd.f32 %v1572, %v1592
      %v1596 = vadd.f32 %v1573, %v1592
      %v1597 = vadd.f32 %v1574, %v1592
      %v1598 = vadd.f32 %v1575, %v1592
      %v1599 = vadd.f32 %v1576, %v1592
      %v1600 = vadd.f32 %v1577, %v1592
      %v1601 = vadd.f32 %v1578, %v1592
      %v1602 = vadd.f32 %v1579, %v1592
      %v1603 = vadd.f32 %v1580, %v1592
      %v1604 = vadd.f32 %v1581, %v1592
      %v1605 = vadd.f32 %v1582, %v1592
      %v1606 = vadd.f32 %v1583, %v1592
      %v1607 = vadd.f32 %v1584, %v1592
      %v1608 = vadd.f32 %v1585, %v1592
      %v1609 = vadd.f32 %v1586, %v1592
      %v1610 = vmax.f32 %v1594, 0.0
      %v1611 = vmax.f32 %v1595, 0.0
      %v1612 = vmax.f32 %v1596, 0.0
      %v1613 = vmax.f32 %v1597, 0.0
      %v1614 = vmax.f32 %v1598, 0.0
      %v1615 = vmax.f32 %v1599, 0.0
      %v1616 = vmax.f32 %v1600, 0.0
      %v1617 = vmax.f32 %v1601, 0.0
      %v1618 = vmax.f32 %v1602, 0.0
      %v1619 = vmax.f32 %v1603, 0.0
      %v1620 = vmax.f32 %v1604, 0.0
      %v1621 = vmax.f32 %v1605, 0.0
      %v1622 = vmax.f32 %v1606, 0.0
      %v1623 = vmax.f32 %v1607, 0.0
      %v1624 = vmax.f32 %v1608, 0.0
      %v1625 = vmax.f32 %v1609, 0.0
      %1626 = vst.msk [vmem:[%s391] sm:$0xff] %vm473, %v1610
      %1627 = vst.msk [vmem:[%s391 + $0x8] sm:$0xff] %vm473, %v1611
      %1628 = vst.msk [vmem:[%s391 + $0x10] sm:$0xff] %vm473, %v1612
      %1629 = vst.msk [vmem:[%s391 + $0x18] sm:$0xff] %vm473, %v1613
      %1630 = vst.msk [vmem:[%s391 + $0x20] sm:$0xff] %vm473, %v1614
      %1631 = vst.msk [vmem:[%s391 + $0x28] sm:$0xff] %vm473, %v1615
      %1632 = vst.msk [vmem:[%s391 + $0x30] sm:$0xff] %vm473, %v1616
      %1633 = vst.msk [vmem:[%s391 + $0x38] sm:$0xff] %vm473, %v1617
      %1634 = vst.msk [vmem:[%s391 + $0x40] sm:$0xff] %vm473, %v1618
      %1635 = vst.msk [vmem:[%s391 + $0x48] sm:$0xff] %vm473, %v1619
      %1636 = vst.msk [vmem:[%s391 + $0x50] sm:$0xff] %vm473, %v1620
      %1637 = vst.msk [vmem:[%s391 + $0x58] sm:$0xff] %vm473, %v1621
      %1638 = vst.msk [vmem:[%s391 + $0x60] sm:$0xff] %vm473, %v1622
      %1639 = vst.msk [vmem:[%s391 + $0x68] sm:$0xff] %vm473, %v1623
      %1640 = vst.msk [vmem:[%s391 + $0x70] sm:$0xff] %vm473, %v1624
      %1641 = vst.msk [vmem:[%s391 + $0x78] sm:$0xff] %vm473, %v1625
      %s1642 = smul.u32 8, %s21
      %p1643 = scmp.lt.s32.totalorder %s20, 1
      %s1644 = scalar_select %p1643, %s20, 1
      %p1645 = scmp.lt.s32.totalorder %s1642, 15
      %s1646 = scalar_select %p1645, %s1642, 15
      %s1647 = smul.addr %s1646, 2
      %s1648 = smul.addr %s1644, 32
      %s1649 = sadd.s32 %s1647, %s1648
      %s1650 = smul.addr %s1649, 8
      %s1651 = scalar_lea.vmem %s5, %s1650
      // Predicated region
      $region41: #{upconv_forward.5} parent=39 // pred_check
        %p1652 = pneg %p190
      $region42: #{upconv_forward.5} parent=39 // pred_check_branch
        %1654 = sbr.rel (%p1652) target = $region44
      $region43: #{upconv_forward.5} parent=39 // pred_region
        %s1655 = smul.u32 8, %s21
      $region44: #{upconv_forward.5} parent=39 // pred_fallthru
        _
    $region40: #{upconv_forward.5} parent=5 // pred_fallthru
      _
    %p1656 = scmp.le.s32.totalorder 2, %s11
    // Predicated region
    $region45: #{upconv_forward.5} parent=5 // pred_check
      %p1657 = pneg %p1656
    $region46: #{upconv_forward.5} parent=5 // pred_check_branch
      %1659 = sbr.rel (%p1657) target = $region48
    $region47: #{upconv_forward.5} parent=5 // pred_region
      %s1660 = ssub.s32 %s11, 2
      // Predicated region
      $region49: #{upconv_forward.5} parent=47 // pred_check
        %p1661 = pneg %p196
      $region50: #{upconv_forward.5} parent=47 // pred_check_branch
        %1663 = sbr.rel (%p1661) target = $region52
      $region51: #{upconv_forward.5} parent=47 // pred_region
        %s1664 = smul.u32 8, %s23
        %p1665 = scmp.lt.s32.totalorder %s22, 1
        %s1666 = scalar_select %p1665, %s22, 1
        %p1667 = scmp.lt.s32.totalorder %s1664, 15
        %s1668 = scalar_select %p1667, %s1664, 15
        %s1669 = smul.addr %s1668, 2
        %s1670 = smul.addr %s1666, 32
        %s1671 = sadd.s32 %s1669, %s1670
        %s1672 = smul.addr %s1671, 8
        %s1673 = scalar_lea.vmem %s5, %s1672
      $region52: #{upconv_forward.5} parent=47 // pred_fallthru
        _
    $region48: #{upconv_forward.5} parent=5 // pred_fallthru
      _
  $region6: #{upconv_forward.5} parent=0 // loop_footer
    %s15 = sadd.s32 1, %s11
  $region7: #{upconv_forward.5} parent=0 // loop_footer_branch
    %10 = sbr.rel target = $region3
  $region8: #{upconv_forward.5} parent=0 // loop_exit
    _

// kernel: upconv_forward.4
$region0: #{upconv_forward.4}
  #allocation0 [shape = 'u32[]', space=smem, size = 0x4, offset = 0x4, fixed_abs, tag = 'smem constant byte address 0x4 - core index']
  #allocation1 [shape = 'u32[144,128]{1,0:T(1,128)}', space=vmem, size = 0x12000, scoped, tag = 'internal scratch']
  #allocation2 [shape = 'f32[2,8,18,4]{3,2,1,0:T(8,128)}', space=vmem, size = 0x30000, scoped, tag = 'scratch operand']
  %s0 = inlined_call_operand.vmem [shape: bf16[2,16,16,4], index: 0, kind: input, shape index: {}, may-alias: {0,1,2}]
  %s1 = inlined_call_operand.vmem [shape: bf16[2,16,16,4], index: 1, kind: input, shape index: {}, may-alias: {0,1,2}]
  %s2 = inlined_call_operand.vmem [shape: bf16[2,16,16,4], index: 2, kind: input, shape index: {}, may-alias: {0,1,2}]
  %s3 = inlined_call_operand.vmem [shape: bf16[2,16,16,4], index: 3, kind: input, shape index: {}, may-alias: {3,4,5}]
  %s4 = inlined_call_operand.vmem [shape: bf16[2,16,16,4], index: 4, kind: input, shape index: {}, may-alias: {3,4,5}]
  %s5 = inlined_call_operand.vmem [shape: bf16[2,16,16,4], index: 5, kind: input, shape index: {}, may-alias: {3,4,5}]
  %s6 = inlined_call_operand.vmem [shape: bf16[3,3,4,4], index: 6, kind: input, shape index: {}]
  %s7 = inlined_call_operand.vmem [shape: bf16[3,3,4,4], index: 7, kind: input, shape index: {}]
  %s8 = inlined_call_operand.vmem [shape: f32[1,1,4], index: 8, kind: input, shape index: {}]
  %s9 = inlined_call_operand.vmem [shape: bf16[2,16,16,4], index: 9, kind: output, shape index: {}]
  %s10 = sld [smem:[#allocation0]]
  $region69: #{upconv_forward.4} parent=0
    _
  %s12 = ssub.s32 1, %s10
  %s13 = scalar_select 0, %s12, %s10
  loop: start=0, step=1, limit=6
  $region2: #{upconv_forward.4} parent=0 // loop_pre_header
    _
  $region3: #{upconv_forward.4} parent=0 // loop_header
    %s15 = sphi 0, %s19
    %p16 = scmp.ge.s32.totalorder %s15, 6
    %s22 = sphi 0, %s34
    %s23 = sphi 0, %s30
    %s24 = sphi 0, %s22
    %s25 = sphi 0, %s23
    %s26 = sphi 0, %s24
    %s27 = sphi 0, %s25
    %s39 = sphi 0, %s41
    %s42 = sphi 0, %s39
    %s43 = sphi 0, %s42
    %s59 = sphi 0, %s43
    %s75 = sphi 0, %s77
    %s78 = sphi 0, %s75
    %s79 = sphi 0, %s78
    %s95 = sphi 0, %s79
    %s111 = sphi 0, %s113
    %s114 = sphi 0, %s111
    %s115 = sphi 0, %s114
    %s131 = sphi 0, %s115
    %s139 = sphi 0, %s141
    %s142 = sphi 0, %s139
    %s143 = sphi 0, %s142
    %s159 = sphi 0, %s143
    %s175 = sphi 0, %s177
    %s178 = sphi 0, %s175
    %s179 = sphi 0, %s178
    %s195 = sphi 0, %s179
    %s211 = sphi 0, %s213
    %s214 = sphi 0, %s211
    %s215 = sphi 0, %s214
    %s231 = sphi 0, %s215
    %s235 = sphi 0, %s235
    %s237 = sphi 0, %s235
    %s238 = sphi 0, %s237
    %s252 = sphi 0, %s238
    %s256 = sphi 0, %s256
    %s258 = sphi 0, %s256
    %s259 = sphi 0, %s258
    %s273 = sphi 0, %s259
    %s277 = sphi 0, %s277
    %s279 = sphi 0, %s277
    %s280 = sphi 0, %s279
    %s294 = sphi 0, %s280
    %s302 = sphi 0, %s304
    %s305 = sphi 0, %s302
    %s306 = sphi 0, %s305
    %s322 = sphi 0, %s306
  $region4: #{upconv_forward.4} parent=0 // loop_header_branch
    %18 = sbr.rel (%p16) target = $region8
  $region5: #{upconv_forward.4} parent=0 // loop_body
    %s20 = ssub.s32 %s15, 1
    %s21 = ssub.s32 %s15, 2
    %s28 = sadd.s32 1, %s23
    %p29 = scmp.ge.s32.totalorder %s28, 2
    %s30 = scalar_select %p29, 0, %s28
    %s31 = sadd.s32 1, %s22
    %s32 = scalar_select %p29, %s31, %s22
    %p33 = scmp.ge.s32.totalorder %s32, 2
    %s34 = scalar_select %p33, 0, %s32
    %s35 = ssub.s32 %s22, %s34
    %s36 = ssub.s32 %s23, %s30
    %s37 = sor.u32 %s35, %s36
    %p38 = scmp.eq.s32.totalorder %s37, 0
    %s40 = sadd.s32 %s39, 1
    %s41 = scalar_select %p38, %s39, %s40
    %p44 = pneg %p38
    %p45 = scmp.eq.s32.totalorder %s15, 3
    %p46 = por %p44, %p45
    %p47 = scmp.ne.s32.totalorder %s39, %s42
    %p48 = scmp.eq.s32.totalorder %s15, 0
    %p49 = por %p47, %p48
    %p50 = scmp.ne.s32.totalorder %s39, %s42
    %p51 = scmp.eq.s32.totalorder %s20, 3
    %p52 = por %p50, %p51
    %p53 = scmp.ne.s32.totalorder %s42, %s43
    %p54 = scmp.eq.s32.totalorder %s20, 0
    %p55 = por %p53, %p54
    %p56 = scmp.ne.s32.totalorder %s42, %s43
    %p57 = scmp.eq.s32.totalorder %s21, 3
    %p58 = por %p56, %p57
    %p60 = scmp.ne.s32.totalorder %s43, %s59
    %p61 = scmp.eq.s32.totalorder %s21, 0
    %p62 = por %p60, %p61
    %s63 = smul.u32 %s23, 8
    %s64 = ssub.s32 %s63, 1
    %p65 = scmp.gt.s32.totalorder %s64, 0
    %s66 = scalar_select %p65, %s64, 0
    %s67 = smul.u32 %s30, 8
    %s68 = ssub.s32 %s67, 1
    %p69 = scmp.gt.s32.totalorder %s68, 0
    %s70 = scalar_select %p69, %s68, 0
    %s71 = ssub.s32 %s22, %s34
    %s72 = ssub.s32 %s66, %s70
    %s73 = sor.u32 %s71, %s72
    %p74 = scmp.eq.s32.totalorder %s73, 0
    %s76 = sadd.s32 %s75, 1
    %s77 = scalar_select %p74, %s75, %s76
    %p80 = pneg %p74
    %p81 = scmp.eq.s32.totalorder %s15, 3
    %p82 = por %p80, %p81
    %p83 = scmp.ne.s32.totalorder %s75, %s78
    %p84 = scmp.eq.s32.totalorder %s15, 0
    %p85 = por %p83, %p84
    %p86 = scmp.ne.s32.totalorder %s75, %s78
    %p87 = scmp.eq.s32.totalorder %s20, 3
    %p88 = por %p86, %p87
    %p89 = scmp.ne.s32.totalorder %s78, %s79
    %p90 = scmp.eq.s32.totalorder %s20, 0
    %p91 = por %p89, %p90
    %p92 = scmp.ne.s32.totalorder %s78, %s79
    %p93 = scmp.eq.s32.totalorder %s21, 3
    %p94 = por %p92, %p93
    %p96 = scmp.ne.s32.totalorder %s79, %s95
    %p97 = scmp.eq.s32.totalorder %s21, 0
    %p98 = por %p96, %p97
    %s99 = smul.u32 %s23, 8
    %s100 = sadd.s32 %s99, 8
    %p101 = scmp.lt.s32.totalorder %s100, 15
    %s102 = scalar_select %p101, %s100, 15
    %s103 = smul.u32 %s30, 8
    %s104 = sadd.s32 %s103, 8
    %p105 = scmp.lt.s32.totalorder %s104, 15
    %s106 = scalar_select %p105, %s104, 15
    %s107 = ssub.s32 %s22, %s34
    %s108 = ssub.s32 %s102, %s106
    %s109 = sor.u32 %s107, %s108
    %p110 = scmp.eq.s32.totalorder %s109, 0
    %s112 = sadd.s32 %s111, 1
    %s113 = scalar_select %p110, %s111, %s112
    %p116 = pneg %p110
    %p117 = scmp.eq.s32.totalorder %s15, 3
    %p118 = por %p116, %p117
    %p119 = scmp.ne.s32.totalorder %s111, %s114
    %p120 = scmp.eq.s32.totalorder %s15, 0
    %p121 = por %p119, %p120
    %p122 = scmp.ne.s32.totalorder %s111, %s114
    %p123 = scmp.eq.s32.totalorder %s20, 3
    %p124 = por %p122, %p123
    %p125 = scmp.ne.s32.totalorder %s114, %s115
    %p126 = scmp.eq.s32.totalorder %s20, 0
    %p127 = por %p125, %p126
    %p128 = scmp.ne.s32.totalorder %s114, %s115
    %p129 = scmp.eq.s32.totalorder %s21, 3
    %p130 = por %p128, %p129
    %p132 = scmp.ne.s32.totalorder %s115, %s131
    %p133 = scmp.eq.s32.totalorder %s21, 0
    %p134 = por %p132, %p133
    %s135 = ssub.s32 %s22, %s34
    %s136 = ssub.s32 %s23, %s30
    %s137 = sor.u32 %s135, %s136
    %p138 = scmp.eq.s32.totalorder %s137, 0
    %s140 = sadd.s32 %s139, 1
    %s141 = scalar_select %p138, %s139, %s140
    %p144 = pneg %p138
    %p145 = scmp.eq.s32.totalorder %s15, 3
    %p146 = por %p144, %p145
    %p147 = scmp.ne.s32.totalorder %s139, %s142
    %p148 = scmp.eq.s32.totalorder %s15, 0
    %p149 = por %p147, %p148
    %p150 = scmp.ne.s32.totalorder %s139, %s142
    %p151 = scmp.eq.s32.totalorder %s20, 3
    %p152 = por %p150, %p151
    %p153 = scmp.ne.s32.totalorder %s142, %s143
    %p154 = scmp.eq.s32.totalorder %s20, 0
    %p155 = por %p153, %p154
    %p156 = scmp.ne.s32.totalorder %s142, %s143
    %p157 = scmp.eq.s32.totalorder %s21, 3
    %p158 = por %p156, %p157
    %p160 = scmp.ne.s32.totalorder %s143, %s159
    %p161 = scmp.eq.s32.totalorder %s21, 0
    %p162 = por %p160, %p161
    %s163 = smul.u32 %s23, 8
    %s164 = ssub.s32 %s163, 1
    %p165 = scmp.gt.s32.totalorder %s164, 0
    %s166 = scalar_select %p165, %s164, 0
    %s167 = smul.u32 %s30, 8
    %s168 = ssub.s32 %s167, 1
    %p169 = scmp.gt.s32.totalorder %s168, 0
    %s170 = scalar_select %p169, %s168, 0
    %s171 = ssub.s32 %s22, %s34
    %s172 = ssub.s32 %s166, %s170
    %s173 = sor.u32 %s171, %s172
    %p174 = scmp.eq.s32.totalorder %s173, 0
    %s176 = sadd.s32 %s175, 1
    %s177 = scalar_select %p174, %s175, %s176
    %p180 = pneg %p174
    %p181 = scmp.eq.s32.totalorder %s15, 3
    %p182 = por %p180, %p181
    %p183 = scmp.ne.s32.totalorder %s175, %s178
    %p184 = scmp.eq.s32.totalorder %s15, 0
    %p185 = por %p183, %p184
    %p186 = scmp.ne.s32.totalorder %s175, %s178
    %p187 = scmp.eq.s32.totalorder %s20, 3
    %p188 = por %p186, %p187
    %p189 = scmp.ne.s32.totalorder %s178, %s179
    %p190 = scmp.eq.s32.totalorder %s20, 0
    %p191 = por %p189, %p190
    %p192 = scmp.ne.s32.totalorder %s178, %s179
    %p193 = scmp.eq.s32.totalorder %s21, 3
    %p194 = por %p192, %p193
    %p196 = scmp.ne.s32.totalorder %s179, %s195
    %p197 = scmp.eq.s32.totalorder %s21, 0
    %p198 = por %p196, %p197
    %s199 = smul.u32 %s23, 8
    %s200 = sadd.s32 %s199, 8
    %p201 = scmp.lt.s32.totalorder %s200, 15
    %s202 = scalar_select %p201, %s200, 15
    %s203 = smul.u32 %s30, 8
    %s204 = sadd.s32 %s203, 8
    %p205 = scmp.lt.s32.totalorder %s204, 15
    %s206 = scalar_select %p205, %s204, 15
    %s207 = ssub.s32 %s22, %s34
    %s208 = ssub.s32 %s202, %s206
    %s209 = sor.u32 %s207, %s208
    %p210 = scmp.eq.s32.totalorder %s209, 0
    %s212 = sadd.s32 %s211, 1
    %s213 = scalar_select %p210, %s211, %s212
    %p216 = pneg %p210
    %p217 = scmp.eq.s32.totalorder %s15, 3
    %p218 = por %p216, %p217
    %p219 = scmp.ne.s32.totalorder %s211, %s214
    %p220 = scmp.eq.s32.totalorder %s15, 0
    %p221 = por %p219, %p220
    %p222 = scmp.ne.s32.totalorder %s211, %s214
    %p223 = scmp.eq.s32.totalorder %s20, 3
    %p224 = por %p222, %p223
    %p225 = scmp.ne.s32.totalorder %s214, %s215
    %p226 = scmp.eq.s32.totalorder %s20, 0
    %p227 = por %p225, %p226
    %p228 = scmp.ne.s32.totalorder %s214, %s215
    %p229 = scmp.eq.s32.totalorder %s21, 3
    %p230 = por %p228, %p229
    %p232 = scmp.ne.s32.totalorder %s215, %s231
    %p233 = scmp.eq.s32.totalorder %s21, 0
    %p234 = por %p232, %p233
    %s236 = sadd.s32 %s235, 1
    %p239 = scmp.eq.s32.totalorder %s15, 3
    %p240 = scmp.ne.s32.totalorder %s235, %s237
    %p241 = scmp.eq.s32.totalorder %s15, 0
    %p242 = por %p240, %p241
    %p243 = scmp.ne.s32.totalorder %s235, %s237
    %p244 = scmp.eq.s32.totalorder %s20, 3
    %p245 = por %p243, %p244
    %p246 = scmp.ne.s32.totalorder %s237, %s238
    %p247 = scmp.eq.s32.totalorder %s20, 0
    %p248 = por %p246, %p247
    %p249 = scmp.ne.s32.totalorder %s237, %s238
    %p250 = scmp.eq.s32.totalorder %s21, 3
    %p251 = por %p249, %p250
    %p253 = scmp.ne.s32.totalorder %s238, %s252
    %p254 = scmp.eq.s32.totalorder %s21, 0
    %p255 = por %p253, %p254
    %s257 = sadd.s32 %s256, 1
    %p260 = scmp.eq.s32.totalorder %s15, 3
    %p261 = scmp.ne.s32.totalorder %s256, %s258
    %p262 = scmp.eq.s32.totalorder %s15, 0
    %p263 = por %p261, %p262
    %p264 = scmp.ne.s32.totalorder %s256, %s258
    %p265 = scmp.eq.s32.totalorder %s20, 3
    %p266 = por %p264, %p265
    %p267 = scmp.ne.s32.totalorder %s258, %s259
    %p268 = scmp.eq.s32.totalorder %s20, 0
    %p269 = por %p267, %p268
    %p270 = scmp.ne.s32.totalorder %s258, %s259
    %p271 = scmp.eq.s32.totalorder %s21, 3
    %p272 = por %p270, %p271
    %p274 = scmp.ne.s32.totalorder %s259, %s273
    %p275 = scmp.eq.s32.totalorder %s21, 0
    %p276 = por %p274, %p275
    %s278 = sadd.s32 %s277, 1
    %p281 = scmp.eq.s32.totalorder %s15, 3
    %p282 = scmp.ne.s32.totalorder %s277, %s279
    %p283 = scmp.eq.s32.totalorder %s15, 0
    %p284 = por %p282, %p283
    %p285 = scmp.ne.s32.totalorder %s277, %s279
    %p286 = scmp.eq.s32.totalorder %s20, 3
    %p287 = por %p285, %p286
    %p288 = scmp.ne.s32.totalorder %s279, %s280
    %p289 = scmp.eq.s32.totalorder %s20, 0
    %p290 = por %p288, %p289
    %p291 = scmp.ne.s32.totalorder %s279, %s280
    %p292 = scmp.eq.s32.totalorder %s21, 3
    %p293 = por %p291, %p292
    %p295 = scmp.ne.s32.totalorder %s280, %s294
    %p296 = scmp.eq.s32.totalorder %s21, 0
    %p297 = por %p295, %p296
    %s298 = ssub.s32 %s22, %s34
    %s299 = ssub.s32 %s23, %s30
    %s300 = sor.u32 %s298, %s299
    %p301 = scmp.eq.s32.totalorder %s300, 0
    %s303 = sadd.s32 %s302, 1
    %s304 = scalar_select %p301, %s302, %s303
    %p307 = pneg %p301
    %p308 = scmp.eq.s32.totalorder %s15, 3
    %p309 = por %p307, %p308
    %p310 = scmp.ne.s32.totalorder %s302, %s305
    %p311 = scmp.eq.s32.totalorder %s15, 0
    %p312 = por %p310, %p311
    %p313 = scmp.ne.s32.totalorder %s302, %s305
    %p314 = scmp.eq.s32.totalorder %s20, 3
    %p315 = por %p313, %p314
    %p316 = scmp.ne.s32.totalorder %s305, %s306
    %p317 = scmp.eq.s32.totalorder %s20, 0
    %p318 = por %p316, %p317
    %p319 = scmp.ne.s32.totalorder %s305, %s306
    %p320 = scmp.eq.s32.totalorder %s21, 3
    %p321 = por %p319, %p320
    %p323 = scmp.ne.s32.totalorder %s306, %s322
    %p324 = scmp.eq.s32.totalorder %s21, 0
    %p325 = por %p323, %p324
    %p326 = scmp.le.s32.totalorder 1, %s15
    %p327 = scmp.lt.s32.totalorder %s15, 5
    %p328 = pnand %p326, %p327
    %p329 = pneg %p328
    // Predicated region
    $region9: #{upconv_forward.4} parent=5 // pred_check
      _
    $region10: #{upconv_forward.4} parent=5 // pred_check_branch
      %331 = sbr.rel (%p328) target = $region12
    $region11: #{upconv_forward.4} parent=5 // pred_region
      %s332 = ssub.s32 %s15, 1
      // Predicated region
      $region13: #{upconv_forward.4} parent=11 // pred_check
        %p333 = pneg %p248
      $region14: #{upconv_forward.4} parent=11 // pred_check_branch
        %335 = sbr.rel (%p333) target = $region16
      $region15: #{upconv_forward.4} parent=11 // pred_region
        _
      $region16: #{upconv_forward.4} parent=11 // pred_fallthru
        _
      // Predicated region
      $region17: #{upconv_forward.4} parent=11 // pred_check
        %p336 = pneg %p269
      $region18: #{upconv_forward.4} parent=11 // pred_check_branch
        %338 = sbr.rel (%p336) target = $region20
      $region19: #{upconv_forward.4} parent=11 // pred_region
        _
      $region20: #{upconv_forward.4} parent=11 // pred_fallthru
        _
      // Predicated region
      $region21: #{upconv_forward.4} parent=11 // pred_check
        %p339 = pneg %p290
      $region22: #{upconv_forward.4} parent=11 // pred_check_branch
        %341 = sbr.rel (%p339) target = $region24
      $region23: #{upconv_forward.4} parent=11 // pred_region
        _
      $region24: #{upconv_forward.4} parent=11 // pred_fallthru
        _
    $region12: #{upconv_forward.4} parent=5 // pred_fallthru
      _
    %p342 = scmp.lt.s32.totalorder %s15, 4
    // Predicated region
    $region25: #{upconv_forward.4} parent=5 // pred_check
      %p343 = pneg %p342
    $region26: #{upconv_forward.4} parent=5 // pred_check_branch
      %345 = sbr.rel (%p343) target = $region28
    $region27: #{upconv_forward.4} parent=5 // pred_region
      // Predicated region
      $region29: #{upconv_forward.4} parent=27 // pred_check
        %p346 = pneg %p49
      $region30: #{upconv_forward.4} parent=27 // pred_check_branch
        %348 = sbr.rel (%p346) target = $region32
      $region31: #{upconv_forward.4} parent=27 // pred_region
        %s349 = smul.u32 8, %s23
        %p350 = scmp.lt.s32.totalorder %s22, 1
        %s351 = scalar_select %p350, %s22, 1
        %p352 = scmp.lt.s32.totalorder %s349, 15
        %s353 = scalar_select %p352, %s349, 15
        %s354 = smul.addr %s353, 2
        %s355 = smul.addr %s351, 32
        %s356 = sadd.s32 %s354, %s355
        %s357 = smul.addr %s356, 4
        %s358 = scalar_lea.vmem %s0, %s357
        %s359 = smul.u32 8, %s23
      $region32: #{upconv_forward.4} parent=27 // pred_fallthru
        _
      // Predicated region
      $region33: #{upconv_forward.4} parent=27 // pred_check
        %p360 = pneg %p85
      $region34: #{upconv_forward.4} parent=27 // pred_check_branch
        %362 = sbr.rel (%p360) target = $region36
      $region35: #{upconv_forward.4} parent=27 // pred_region
        %s363 = smul.u32 %s23, 8
        %s364 = ssub.s32 %s363, 1
        %p365 = scmp.gt.s32.totalorder %s364, 0
        %s366 = scalar_select %p365, %s364, 0
        %p367 = scmp.lt.s32.totalorder %s22, 1
        %s368 = scalar_select %p367, %s22, 1
        %p369 = scmp.lt.s32.totalorder %s366, 15
        %s370 = scalar_select %p369, %s366, 15
        %s371 = smul.addr %s370, 2
        %s372 = smul.addr %s368, 32
        %s373 = sadd.s32 %s371, %s372
        %s374 = smul.addr %s373, 4
        %s375 = scalar_lea.vmem %s1, %s374
        %s376 = smul.u32 %s23, 8
        %s377 = ssub.s32 %s376, 1
        %p378 = scmp.gt.s32.totalorder %s377, 0
        %s379 = scalar_select %p378, %s377, 0
      $region36: #{upconv_forward.4} parent=27 // pred_fallthru
        _
      // Predicated region
      $region37: #{upconv_forward.4} parent=27 // pred_check
        %p380 = pneg %p121
      $region38: #{upconv_forward.4} parent=27 // pred_check_branch
        %382 = sbr.rel (%p380) target = $region40
      $region39: #{upconv_forward.4} parent=27 // pred_region
        %s383 = smul.u32 %s23, 8
        %s384 = sadd.s32 %s383, 8
        %p385 = scmp.lt.s32.totalorder %s384, 15
        %s386 = scalar_select %p385, %s384, 15
        %p387 = scmp.lt.s32.totalorder %s22, 1
        %s388 = scalar_select %p387, %s22, 1
        %p389 = scmp.lt.s32.totalorder %s386, 15
        %s390 = scalar_select %p389, %s386, 15
        %s391 = smul.addr %s390, 2
        %s392 = smul.addr %s388, 32
        %s393 = sadd.s32 %s391, %s392
        %s394 = smul.addr %s393, 4
        %s395 = scalar_lea.vmem %s2, %s394
        %s396 = smul.u32 %s23, 8
        %s397 = sadd.s32 %s396, 8
        %p398 = scmp.lt.s32.totalorder %s397, 15
        %s399 = scalar_select %p398, %s397, 15
      $region40: #{upconv_forward.4} parent=27 // pred_fallthru
        _
      // Predicated region
      $region41: #{upconv_forward.4} parent=27 // pred_check
        %p400 = pneg %p149
      $region42: #{upconv_forward.4} parent=27 // pred_check_branch
        %402 = sbr.rel (%p400) target = $region44
      $region43: #{upconv_forward.4} parent=27 // pred_region
        %s403 = smul.u32 8, %s23
        %p404 = scmp.lt.s32.totalorder %s22, 1
        %s405 = scalar_select %p404, %s22, 1
        %p406 = scmp.lt.s32.totalorder %s403, 15
        %s407 = scalar_select %p406, %s403, 15
        %s408 = smul.addr %s407, 2
        %s409 = smul.addr %s405, 32
        %s410 = sadd.s32 %s408, %s409
        %s411 = smul.addr %s410, 4
        %s412 = scalar_lea.vmem %s3, %s411
        %s413 = smul.u32 8, %s23
      $region44: #{upconv_forward.4} parent=27 // pred_fallthru
        _
      // Predicated region
      $region45: #{upconv_forward.4} parent=27 // pred_check
        %p414 = pneg %p185
      $region46: #{upconv_forward.4} parent=27 // pred_check_branch
        %416 = sbr.rel (%p414) target = $region48
      $region47: #{upconv_forward.4} parent=27 // pred_region
        %s417 = smul.u32 %s23, 8
        %s418 = ssub.s32 %s417, 1
        %p419 = scmp.gt.s32.totalorder %s418, 0
        %s420 = scalar_select %p419, %s418, 0
        %p421 = scmp.lt.s32.totalorder %s22, 1
        %s422 = scalar_select %p421, %s22, 1
        %p423 = scmp.lt.s32.totalorder %s420, 15
        %s424 = scalar_select %p423, %s420, 15
        %s425 = smul.addr %s424, 2
        %s426 = smul.addr %s422, 32
        %s427 = sadd.s32 %s425, %s426
        %s428 = smul.addr %s427, 4
        %s429 = scalar_lea.vmem %s4, %s428
        %s430 = smul.u32 %s23, 8
        %s431 = ssub.s32 %s430, 1
        %p432 = scmp.gt.s32.totalorder %s431, 0
        %s433 = scalar_select %p432, %s431, 0
      $region48: #{upconv_forward.4} parent=27 // pred_fallthru
        _
      // Predicated region
      $region49: #{upconv_forward.4} parent=27 // pred_check
        %p434 = pneg %p221
      $region50: #{upconv_forward.4} parent=27 // pred_check_branch
        %436 = sbr.rel (%p434) target = $region52
      $region51: #{upconv_forward.4} parent=27 // pred_region
        %s437 = smul.u32 %s23, 8
        %s438 = sadd.s32 %s437, 8
        %p439 = scmp.lt.s32.totalorder %s438, 15
        %s440 = scalar_select %p439, %s438, 15
        %p441 = scmp.lt.s32.totalorder %s22, 1
        %s442 = scalar_select %p441, %s22, 1
        %p443 = scmp.lt.s32.totalorder %s440, 15
        %s444 = scalar_select %p443, %s440, 15
        %s445 = smul.addr %s444, 2
        %s446 = smul.addr %s442, 32
        %s447 = sadd.s32 %s445, %s446
        %s448 = smul.addr %s447, 4
        %s449 = scalar_lea.vmem %s5, %s448
        %s450 = smul.u32 %s23, 8
        %s451 = sadd.s32 %s450, 8
        %p452 = scmp.lt.s32.totalorder %s451, 15
        %s453 = scalar_select %p452, %s451, 15
      $region52: #{upconv_forward.4} parent=27 // pred_fallthru
        _
    $region28: #{upconv_forward.4} parent=5 // pred_fallthru
      _
    %p454 = scmp.le.s32.totalorder 1, %s15
    %p455 = scmp.lt.s32.totalorder %s15, 5
    %p456 = pnand %p454, %p455
    %p457 = pneg %p456
    // Predicated region
    $region53: #{upconv_forward.4} parent=5 // pred_check
      _
    $region54: #{upconv_forward.4} parent=5 // pred_check_branch
      %459 = sbr.rel (%p456) target = $region56
    $region55: #{upconv_forward.4} parent=5 // pred_region
      %s460 = ssub.s32 %s15, 1
      %s461 = smul.u32 8, %s25
      %p462 = scmp.lt.s32.totalorder %s24, 1
      %s463 = scalar_select %p462, %s24, 1
      %p464 = scmp.lt.s32.totalorder %s461, 15
      %s465 = scalar_select %p464, %s461, 15
      %s466 = smul.addr %s465, 2
      %s467 = smul.addr %s463, 32
      %s468 = sadd.s32 %s466, %s467
      %s469 = smul.addr %s468, 4
      %s470 = scalar_lea.vmem %s0, %s469
      %p471 = pneg %p55
      %p472 = pneg %p52
      %s473 = smul.u32 %s25, 8
      %s474 = ssub.s32 %s473, 1
      %p475 = scmp.gt.s32.totalorder %s474, 0
      %s476 = scalar_select %p475, %s474, 0
      %p477 = scmp.lt.s32.totalorder %s24, 1
      %s478 = scalar_select %p477, %s24, 1
      %p479 = scmp.lt.s32.totalorder %s476, 15
      %s480 = scalar_select %p479, %s476, 15
      %s481 = smul.addr %s480, 2
      %s482 = smul.addr %s478, 32
      %s483 = sadd.s32 %s481, %s482
      %s484 = smul.addr %s483, 4
      %s485 = scalar_lea.vmem %s1, %s484
      %p486 = pneg %p91
      %p487 = pneg %p88
      %s488 = smul.u32 %s25, 8
      %s489 = sadd.s32 %s488, 8
      %p490 = scmp.lt.s32.totalorder %s489, 15
      %s491 = scalar_select %p490, %s489, 15
      %p492 = scmp.lt.s32.totalorder %s24, 1
      %s493 = scalar_select %p492, %s24, 1
      %p494 = scmp.lt.s32.totalorder %s491, 15
      %s495 = scalar_select %p494, %s491, 15
      %s496 = smul.addr %s495, 2
      %s497 = smul.addr %s493, 32
      %s498 = sadd.s32 %s496, %s497
      %s499 = smul.addr %s498, 4
      %s500 = scalar_lea.vmem %s2, %s499
      %p501 = pneg %p127
      %p502 = pneg %p124
      %s503 = smul.u32 8, %s25
      %p504 = scmp.lt.s32.totalorder %s24, 1
      %s505 = scalar_select %p504, %s24, 1
      %p506 = scmp.lt.s32.totalorder %s503, 15
      %s507 = scalar_select %p506, %s503, 15
      %s508 = smul.addr %s507, 2
      %s509 = smul.addr %s505, 32
      %s510 = sadd.s32 %s508, %s509
      %s511 = smul.addr %s510, 4
      %s512 = scalar_lea.vmem %s3, %s511
      %p513 = pneg %p155
      %p514 = pneg %p152
      %s515 = smul.u32 %s25, 8
      %s516 = ssub.s32 %s515, 1
      %p517 = scmp.gt.s32.totalorder %s516, 0
      %s518 = scalar_select %p517, %s516, 0
      %p519 = scmp.lt.s32.totalorder %s24, 1
      %s520 = scalar_select %p519, %s24, 1
      %p521 = scmp.lt.s32.totalorder %s518, 15
      %s522 = scalar_select %p521, %s518, 15
      %s523 = smul.addr %s522, 2
      %s524 = smul.addr %s520, 32
      %s525 = sadd.s32 %s523, %s524
      %s526 = smul.addr %s525, 4
      %s527 = scalar_lea.vmem %s4, %s526
      %p528 = pneg %p191
      %p529 = pneg %p188
      %s530 = smul.u32 %s25, 8
      %s531 = sadd.s32 %s530, 8
      %p532 = scmp.lt.s32.totalorder %s531, 15
      %s533 = scalar_select %p532, %s531, 15
      %p534 = scmp.lt.s32.totalorder %s24, 1
      %s535 = scalar_select %p534, %s24, 1
      %p536 = scmp.lt.s32.totalorder %s533, 15
      %s537 = scalar_select %p536, %s533, 15
      %s538 = smul.addr %s537, 2
      %s539 = smul.addr %s535, 32
      %s540 = sadd.s32 %s538, %s539
      %s541 = smul.addr %s540, 4
      %s542 = scalar_lea.vmem %s5, %s541
      %p543 = pneg %p227
      %p544 = pneg %p224
      %p545 = pneg %p248
      %p546 = pneg %p245
      %p547 = pneg %p269
      %p548 = pneg %p266
      %p549 = pneg %p290
      %p550 = pneg %p287
      %p551 = pneg %p318
      %p552 = pneg %p315
      %s553 = smul.u32 8, %s25
      %p554 = scmp.lt.s32.totalorder %s24, 1
      %s555 = scalar_select %p554, %s24, 1
      %p556 = scmp.lt.s32.totalorder %s553, 15
      %s557 = scalar_select %p556, %s553, 15
      %s558 = smul.addr %s557, 2
      %s559 = smul.addr %s555, 32
      %s560 = sadd.s32 %s558, %s559
      %s561 = smul.addr %s560, 4
      %s562 = scalar_lea.vmem %s9, %s561
      %s563 = smul.u32 8, %s25
      %p564 = scmp.lt.s32.totalorder %s24, 1
      %s565 = scalar_select %p564, %s24, 1
      %p566 = scmp.lt.s32.totalorder %s563, 15
      %s567 = scalar_select %p566, %s563, 15
      %s568 = smul.addr %s567, 2
      %s569 = smul.addr %s565, 32
      %s570 = sadd.s32 %s568, %s569
      %s571 = smul.addr %s570, 4
      %s572 = scalar_lea.vmem %s0, %s571
      %s573 = smul.u32 8, %s25
      %s574 = smul.u32 %s25, 8
      %s575 = ssub.s32 %s574, 1
      %p576 = scmp.gt.s32.totalorder %s575, 0
      %s577 = scalar_select %p576, %s575, 0
      %p578 = scmp.lt.s32.totalorder %s24, 1
      %s579 = scalar_select %p578, %s24, 1
      %p580 = scmp.lt.s32.totalorder %s577, 15
      %s581 = scalar_select %p580, %s577, 15
      %s582 = smul.addr %s581, 2
      %s583 = smul.addr %s579, 32
      %s584 = sadd.s32 %s582, %s583
      %s585 = smul.addr %s584, 4
      %s586 = scalar_lea.vmem %s1, %s585
      %s587 = smul.u32 %s25, 8
      %s588 = ssub.s32 %s587, 1
      %p589 = scmp.gt.s32.totalorder %s588, 0
      %s590 = scalar_select %p589, %s588, 0
      %s591 = smul.u32 %s25, 8
      %s592 = sadd.s32 %s591, 8
      %p593 = scmp.lt.s32.totalorder %s592, 15
      %s594 = scalar_select %p593, %s592, 15
      %p595 = scmp.lt.s32.totalorder %s24, 1
      %s596 = scalar_select %p595, %s24, 1
      %p597 = scmp.lt.s32.totalorder %s594, 15
      %s598 = scalar_select %p597, %s594, 15
      %s599 = smul.addr %s598, 2
      %s600 = smul.addr %s596, 32
      %s601 = sadd.s32 %s599, %s600
      %s602 = smul.addr %s601, 4
      %s603 = scalar_lea.vmem %s2, %s602
      %s604 = smul.u32 %s25, 8
      %s605 = sadd.s32 %s604, 8
      %p606 = scmp.lt.s32.totalorder %s605, 15
      %s607 = scalar_select %p606, %s605, 15
      %s608 = smul.u32 8, %s25
      %p609 = scmp.lt.s32.totalorder %s24, 1
      %s610 = scalar_select %p609, %s24, 1
      %p611 = scmp.lt.s32.totalorder %s608, 15
      %s612 = scalar_select %p611, %s608, 15
      %s613 = smul.addr %s612, 2
      %s614 = smul.addr %s610, 32
      %s615 = sadd.s32 %s613, %s614
      %s616 = smul.addr %s615, 4
      %s617 = scalar_lea.vmem %s3, %s616
      %s618 = smul.u32 8, %s25
      %s619 = smul.u32 %s25, 8
      %s620 = ssub.s32 %s619, 1
      %p621 = scmp.gt.s32.totalorder %s620, 0
      %s622 = scalar_select %p621, %s620, 0
      %p623 = scmp.lt.s32.totalorder %s24, 1
      %s624 = scalar_select %p623, %s24, 1
      %p625 = scmp.lt.s32.totalorder %s622, 15
      %s626 = scalar_select %p625, %s622, 15
      %s627 = smul.addr %s626, 2
      %s628 = smul.addr %s624, 32
      %s629 = sadd.s32 %s627, %s628
      %s630 = smul.addr %s629, 4
      %s631 = scalar_lea.vmem %s4, %s630
      %s632 = smul.u32 %s25, 8
      %s633 = ssub.s32 %s632, 1
      %p634 = scmp.gt.s32.totalorder %s633, 0
      %s635 = scalar_select %p634, %s633, 0
      %s636 = smul.u32 %s25, 8
      %s637 = sadd.s32 %s636, 8
      %p638 = scmp.lt.s32.totalorder %s637, 15
      %s639 = scalar_select %p638, %s637, 15
      %p640 = scmp.lt.s32.totalorder %s24, 1
      %s641 = scalar_select %p640, %s24, 1
      %p642 = scmp.lt.s32.totalorder %s639, 15
      %s643 = scalar_select %p642, %s639, 15
      %s644 = smul.addr %s643, 2
      %s645 = smul.addr %s641, 32
      %s646 = sadd.s32 %s644, %s645
      %s647 = smul.addr %s646, 4
      %s648 = scalar_lea.vmem %s5, %s647
      %s649 = smul.u32 %s25, 8
      %s650 = sadd.s32 %s649, 8
      %p651 = scmp.lt.s32.totalorder %s650, 15
      %s652 = scalar_select %p651, %s650, 15
      %s653 = smul.u32 8, %s25
      %p654 = scmp.lt.s32.totalorder %s24, 1
      %s655 = scalar_select %p654, %s24, 1
      %p656 = scmp.lt.s32.totalorder %s653, 15
      %s657 = scalar_select %p656, %s653, 15
      %s658 = smul.addr %s657, 2
      %s659 = smul.addr %s655, 32
      %s660 = sadd.s32 %s658, %s659
      %s661 = smul.addr %s660, 4
      %s662 = scalar_lea.vmem %s9, %s661
      %s663 = smul.u32 8, %s25
      %v665 = vld [vmem:[%s572] sm:$0xf]
      %v666 = vld [vmem:[%s572 + $0x4] sm:$0xf]
      %v667 = vld [vmem:[%s572 + $0x8] sm:$0xf]
      %v668 = vld [vmem:[%s572 + $0xc] sm:$0xf]
      %v669 = vld [vmem:[%s572 + $0x10] sm:$0xf]
      %v670 = vld [vmem:[%s572 + $0x14] sm:$0xf]
      %v671 = vld [vmem:[%s572 + $0x18] sm:$0xf]
      %v672 = vld [vmem:[%s572 + $0x1c] sm:$0xf]
      %v673 = vld [vmem:[%s572 + $0x20] sm:$0xf]
      %v674 = vld [vmem:[%s572 + $0x24] sm:$0xf]
      %v675 = vld [vmem:[%s572 + $0x28] sm:$0xf]
      %v676 = vld [vmem:[%s572 + $0x2c] sm:$0xf]
      %v677 = vld [vmem:[%s572 + $0x30] sm:$0xf]
      %v678 = vld [vmem:[%s572 + $0x34] sm:$0xf]
      %v679 = vld [vmem:[%s572 + $0x38] sm:$0xf]
      %v680 = vld [vmem:[%s572 + $0x3c] sm:$0xf]
      %v681 = vld [vmem:[%s586] sm:$0xf]
      %v682 = vld [vmem:[%s586 + $0x4] sm:$0xf]
      %v683 = vld [vmem:[%s603] sm:$0xf]
      %v684 = vld [vmem:[%s603 + $0x4] sm:$0xf]
      %p685 = scmp.eq.s32.totalorder %s25, 0
      %s686 = scalar_select %p685, 1, 0
      %v687 = vstv %s686
      %vm688 = vcmp.eq.s32.totalorder %v687, 1
      %v689 = vsel %vm688, 0, %v681
      %v690 = vsel %vm688, 0, %v682
      %p691 = scmp.eq.s32.totalorder %s25, 1
      %s692 = scalar_select %p691, 1, 0
      %v693 = vstv %s692
      %vm694 = vcmp.eq.s32.totalorder %v693, 1
      %v695 = vsel %vm694, 0, %v683
      %v696 = vsel %vm694, 0, %v684
      %v697 = vld [vmem:[%s6] sm:$0x3]
      %s698 = scalar_lea.vmem %s6, 2
      %v699 = vld [vmem:[%s698] sm:$0x3]
      %s700 = scalar_lea.vmem %s6, 4
      %v701 = vld [vmem:[%s700] sm:$0x3]
      %s702 = scalar_lea.vmem %s6, 6
      %v703 = vld [vmem:[%s702] sm:$0x3]
      %v720 = vunpack.c.l.b16 %v665
      %v721 = vunpack.c.l.b16 %v666
      %v722 = vunpack.c.l.b16 %v667
      %v723 = vunpack.c.l.b16 %v668
      %v724 = vunpack.c.l.b16 %v669
      %v725 = vunpack.c.l.b16 %v670
      %v726 = vunpack.c.l.b16 %v671
      %v727 = vunpack.c.l.b16 %v672
      %v728 = vunpack.c.l.b16 %v673
      %v729 = vunpack.c.l.b16 %v674
      %v730 = vunpack.c.l.b16 %v675
      %v731 = vunpack.c.l.b16 %v676
      %v732 = vunpack.c.l.b16 %v677
      %v733 = vunpack.c.l.b16 %v678
      %v734 = vunpack.c.l.b16 %v679
      %v735 = vunpack.c.l.b16 %v680
      %v736 = vpack.c.b16 %v721, %v720
      %v737 = vpack.c.b16 %v723, %v722
      %v738 = vpack.c.b16 %v725, %v724
      %v739 = vpack.c.b16 %v727, %v726
      %v740 = vpack.c.b16 %v729, %v728
      %v741 = vpack.c.b16 %v731, %v730
      %v742 = vpack.c.b16 %v733, %v732
      %v743 = vpack.c.b16 %v735, %v734
      %vm744 = vcmask 31744
      %v746 = vsel %vm744, %v736, 0
      %v749 = vsel %vm744, %v737, 0
      %v752 = vsel %vm744, %v738, 0
      %v755 = vsel %vm744, %v739, 0
      %v758 = vsel %vm744, %v740, 0
      %v761 = vsel %vm744, %v741, 0
      %v764 = vsel %vm744, %v742, 0
      %v767 = vsel %vm744, %v743, 0
      %vm769 = vcmask 1041408
      %v771 = vsel %vm769, %v703, 0
      %773 = vmatprep.subr.bf16.mxu0 0
      %774 = vmatpush1.bf16.msra.mxu0 0
      %775 = vmatprep.subr.bf16.mxu0 0
      %776 = vmatpush1.bf16.msra.mxu0 0
      %777 = vmatprep.subr.bf16.mxu0 0
      %778 = vmatpush1.bf16.msra.mxu0 0
      %779 = vmatprep.subr.bf16.mxu0 0
      %780 = vmatpush1.bf16.msra.mxu0 0
      %781 = vmatprep.subr.bf16.mxu0 0
      %782 = vmatpush1.bf16.msra.mxu0 0
      %783 = vmatprep.subr.bf16.mxu0 0
      %784 = vmatpush1.bf16.msra.mxu0 0
      %785 = vmatprep.subr.bf16.mxu0 0
      %786 = vmatpush1.bf16.msra.mxu0 0
      %787 = vmatprep.subr.bf16.mxu0 0
      %788 = vmatpush1.bf16.msra.mxu0 %v771
      %789 = vmatprep.subr.bf16.mxu0 0
      %790 = vmatpush2.bf16.msra.mxu0 0
      %791 = vmatprep.subr.bf16.mxu0 0
      %792 = vmatpush2.bf16.msra.mxu0 0
      %793 = vmatprep.subr.bf16.mxu0 0
      %794 = vmatpush2.bf16.msra.mxu0 0
      %795 = vmatprep.subr.bf16.mxu0 0
      %796 = vmatpush2.bf16.msra.mxu0 0
      %797 = vmatprep.subr.bf16.mxu0 0
      %798 = vmatpush2.bf16.msra.mxu0 0
      %799 = vmatprep.subr.bf16.mxu0 0
      %800 = vmatpush2.bf16.msra.mxu0 0
      %801 = vmatprep.subr.bf16.mxu0 0
      %802 = vmatpush2.bf16.msra.mxu0 0
      %803 = vmatprep.subr.bf16.mxu0 0
      %804 = vmatpush2.bf16.msra.mxu0 0
      %805 = vmatprep.mubr.bf16.mxu0 0
      %806 = vmatmul.mubr.bf16.gmra.mxu0 %v746
      %v807 = vpop.f32.mrf.mxu0
      %v808 = vadd.f32 0.0, %v807
      %v809 = vpop.f32.mrf.mxu0
      %v810 = vpop.f32.mrf.mxu0
      %v811 = vadd.f32 0.0, %v810
      %v812 = vpop.f32.mrf.mxu0
      %813 = vmatprep.mubr.bf16.mxu0 0
      %814 = vmatmul.mubr.bf16.gmra.mxu0 %v749
      %v815 = vpop.f32.mrf.mxu0
      %v816 = vadd.f32 0.0, %v815
      %v817 = vpop.f32.mrf.mxu0
      %v818 = vpop.f32.mrf.mxu0
      %v819 = vadd.f32 0.0, %v818
      %v820 = vpop.f32.mrf.mxu0
      %821 = vmatprep.mubr.bf16.mxu0 0
      %822 = vmatmul.mubr.bf16.gmra.mxu0 %v752
      %v823 = vpop.f32.mrf.mxu0
      %v824 = vadd.f32 0.0, %v823
      %v825 = vpop.f32.mrf.mxu0
      %v826 = vpop.f32.mrf.mxu0
      %v827 = vadd.f32 0.0, %v826
      %v828 = vpop.f32.mrf.mxu0
      %829 = vmatprep.mubr.bf16.mxu0 0
      %830 = vmatmul.mubr.bf16.gmra.mxu0 %v755
      %v831 = vpop.f32.mrf.mxu0
      %v832 = vadd.f32 0.0, %v831
      %v833 = vpop.f32.mrf.mxu0
      %v834 = vpop.f32.mrf.mxu0
      %v835 = vadd.f32 0.0, %v834
      %v836 = vpop.f32.mrf.mxu0
      %837 = vmatprep.mubr.bf16.mxu0 0
      %838 = vmatmul.mubr.bf16.gmra.mxu0 %v758
      %v839 = vpop.f32.mrf.mxu0
      %v840 = vadd.f32 0.0, %v839
      %v841 = vpop.f32.mrf.mxu0
      %v842 = vpop.f32.mrf.mxu0
      %v843 = vadd.f32 0.0, %v842
      %v844 = vpop.f32.mrf.mxu0
      %845 = vmatprep.mubr.bf16.mxu0 0
      %846 = vmatmul.mubr.bf16.gmra.mxu0 %v761
      %v847 = vpop.f32.mrf.mxu0
      %v848 = vadd.f32 0.0, %v847
      %v849 = vpop.f32.mrf.mxu0
      %v850 = vpop.f32.mrf.mxu0
      %v851 = vadd.f32 0.0, %v850
      %v852 = vpop.f32.mrf.mxu0
      %853 = vmatprep.mubr.bf16.mxu0 0
      %854 = vmatmul.mubr.bf16.gmra.mxu0 %v764
      %v855 = vpop.f32.mrf.mxu0
      %v856 = vadd.f32 0.0, %v855
      %v857 = vpop.f32.mrf.mxu0
      %v858 = vpop.f32.mrf.mxu0
      %v859 = vadd.f32 0.0, %v858
      %v860 = vpop.f32.mrf.mxu0
      %861 = vmatprep.mubr.bf16.mxu0 0
      %862 = vmatmul.mubr.bf16.gmra.mxu0 %v767
      %v863 = vpop.f32.mrf.mxu0
      %v864 = vadd.f32 0.0, %v863
      %v865 = vpop.f32.mrf.mxu0
      %v866 = vpop.f32.mrf.mxu0
      %v867 = vadd.f32 0.0, %v866
      %v868 = vpop.f32.mrf.mxu0
      %869 = vdwg.mxu0
      %v872 = vunpack.c.l.b16 %v689
      %v873 = vunpack.c.l.b16 %v690
      %v874 = vpack.c.b16 %v873, %v872
      %v876 = vsel %vm744, %v874, 0
      %v879 = vsel %vm769, %v697, 0
      %881 = vmatprep.subr.bf16.mxu0 0
      %882 = vmatpush1.bf16.msra.mxu0 0
      %883 = vmatprep.subr.bf16.mxu0 0
      %884 = vmatpush1.bf16.msra.mxu0 0
      %885 = vmatprep.subr.bf16.mxu0 0
      %886 = vmatpush1.bf16.msra.mxu0 0
      %887 = vmatprep.subr.bf16.mxu0 0
      %888 = vmatpush1.bf16.msra.mxu0 0
      %889 = vmatprep.subr.bf16.mxu0 0
      %890 = vmatpush1.bf16.msra.mxu0 0
      %891 = vmatprep.subr.bf16.mxu0 0
      %892 = vmatpush1.bf16.msra.mxu0 0
      %893 = vmatprep.subr.bf16.mxu0 0
      %894 = vmatpush1.bf16.msra.mxu0 0
      %895 = vmatprep.subr.bf16.mxu0 0
      %896 = vmatpush1.bf16.msra.mxu0 %v879
      %897 = vmatprep.subr.bf16.mxu0 0
      %898 = vmatpush2.bf16.msra.mxu0 0
      %899 = vmatprep.subr.bf16.mxu0 0
      %900 = vmatpush2.bf16.msra.mxu0 0
      %901 = vmatprep.subr.bf16.mxu0 0
      %902 = vmatpush2.bf16.msra.mxu0 0
      %903 = vmatprep.subr.bf16.mxu0 0
      %904 = vmatpush2.bf16.msra.mxu0 0
      %905 = vmatprep.subr.bf16.mxu0 0
      %906 = vmatpush2.bf16.msra.mxu0 0
      %907 = vmatprep.subr.bf16.mxu0 0
      %908 = vmatpush2.bf16.msra.mxu0 0
      %909 = vmatprep.subr.bf16.mxu0 0
      %910 = vmatpush2.bf16.msra.mxu0 0
      %911 = vmatprep.subr.bf16.mxu0 0
      %912 = vmatpush2.bf16.msra.mxu0 0
      %913 = vmatprep.mubr.bf16.mxu0 0
      %914 = vmatmul.mubr.bf16.gmra.mxu0 %v876
      %v915 = vpop.f32.mrf.mxu0
      %v916 = vadd.f32 %v808, %v915
      %v917 = vpop.f32.mrf.mxu0
      %v918 = vpop.f32.mrf.mxu0
      %v919 = vadd.f32 %v811, %v918
      %v920 = vpop.f32.mrf.mxu0
      %921 = vmatprep.mubr.bf16.mxu0 0
      %922 = vmatmul.mubr.bf16.gmra.mxu0 %v746
      %v923 = vpop.f32.mrf.mxu0
      %v924 = vadd.f32 %v816, %v923
      %v925 = vpop.f32.mrf.mxu0
      %v926 = vpop.f32.mrf.mxu0
      %v927 = vadd.f32 %v819, %v926
      %v928 = vpop.f32.mrf.mxu0
      %929 = vmatprep.mubr.bf16.mxu0 0
      %930 = vmatmul.mubr.bf16.gmra.mxu0 %v749
      %v931 = vpop.f32.mrf.mxu0
      %v932 = vadd.f32 %v824, %v931
      %v933 = vpop.f32.mrf.mxu0
      %v934 = vpop.f32.mrf.mxu0
      %v935 = vadd.f32 %v827, %v934
      %v936 = vpop.f32.mrf.mxu0
      %937 = vmatprep.mubr.bf16.mxu0 0
      %938 = vmatmul.mubr.bf16.gmra.mxu0 %v752
      %v939 = vpop.f32.mrf.mxu0
      %v940 = vadd.f32 %v832, %v939
      %v941 = vpop.f32.mrf.mxu0
      %v942 = vpop.f32.mrf.mxu0
      %v943 = vadd.f32 %v835, %v942
      %v944 = vpop.f32.mrf.mxu0
      %945 = vmatprep.mubr.bf16.mxu0 0
      %946 = vmatmul.mubr.bf16.gmra.mxu0 %v755
      %v947 = vpop.f32.mrf.mxu0
      %v948 = vadd.f32 %v840, %v947
      %v949 = vpop.f32.mrf.mxu0
      %v950 = vpop.f32.mrf.mxu0
      %v951 = vadd.f32 %v843, %v950
      %v952 = vpop.f32.mrf.mxu0
      %953 = vmatprep.mubr.bf16.mxu0 0
      %954 = vmatmul.mubr.bf16.gmra.mxu0 %v758
      %v955 = vpop.f32.mrf.mxu0
      %v956 = vadd.f32 %v848, %v955
      %v957 = vpop.f32.mrf.mxu0
      %v958 = vpop.f32.mrf.mxu0
      %v959 = vadd.f32 %v851, %v958
      %v960 = vpop.f32.mrf.mxu0
      %961 = vmatprep.mubr.bf16.mxu0 0
      %962 = vmatmul.mubr.bf16.gmra.mxu0 %v761
      %v963 = vpop.f32.mrf.mxu0
      %v964 = vadd.f32 %v856, %v963
      %v965 = vpop.f32.mrf.mxu0
      %v966 = vpop.f32.mrf.mxu0
      %v967 = vadd.f32 %v859, %v966
      %v968 = vpop.f32.mrf.mxu0
      %969 = vmatprep.mubr.bf16.mxu0 0
      %970 = vmatmul.mubr.bf16.gmra.mxu0 %v764
      %v971 = vpop.f32.mrf.mxu0
      %v972 = vadd.f32 %v864, %v971
      %v973 = vpop.f32.mrf.mxu0
      %v974 = vpop.f32.mrf.mxu0
      %v975 = vadd.f32 %v867, %v974
      %v976 = vpop.f32.mrf.mxu0
      %977 = vdwg.mxu0
      %s978 = scalar_lea.vmem %s6, 8
      %v979 = vld [vmem:[%s978] sm:$0x3]
      %v981 = vsel %vm769, %v979, 0
      %983 = vmatprep.subr.bf16.mxu0 0
      %984 = vmatpush1.bf16.msra.mxu0 0
      %985 = vmatprep.subr.bf16.mxu0 0
      %986 = vmatpush1.bf16.msra.mxu0 0
      %987 = vmatprep.subr.bf16.mxu0 0
      %988 = vmatpush1.bf16.msra.mxu0 0
      %989 = vmatprep.subr.bf16.mxu0 0
      %990 = vmatpush1.bf16.msra.mxu0 0
      %991 = vmatprep.subr.bf16.mxu0 0
      %992 = vmatpush1.bf16.msra.mxu0 0
      %993 = vmatprep.subr.bf16.mxu0 0
      %994 = vmatpush1.bf16.msra.mxu0 0
      %995 = vmatprep.subr.bf16.mxu0 0
      %996 = vmatpush1.bf16.msra.mxu0 0
      %997 = vmatprep.subr.bf16.mxu0 0
      %998 = vmatpush1.bf16.msra.mxu0 %v981
      %999 = vmatprep.subr.bf16.mxu0 0
      %1000 = vmatpush2.bf16.msra.mxu0 0
      %1001 = vmatprep.subr.bf16.mxu0 0
      %1002 = vmatpush2.bf16.msra.mxu0 0
      %1003 = vmatprep.subr.bf16.mxu0 0
      %1004 = vmatpush2.bf16.msra.mxu0 0
      %1005 = vmatprep.subr.bf16.mxu0 0
      %1006 = vmatpush2.bf16.msra.mxu0 0
      %1007 = vmatprep.subr.bf16.mxu0 0
      %1008 = vmatpush2.bf16.msra.mxu0 0
      %1009 = vmatprep.subr.bf16.mxu0 0
      %1010 = vmatpush2.bf16.msra.mxu0 0
      %1011 = vmatprep.subr.bf16.mxu0 0
      %1012 = vmatpush2.bf16.msra.mxu0 0
      %1013 = vmatprep.subr.bf16.mxu0 0
      %1014 = vmatpush2.bf16.msra.mxu0 0
      %1015 = vmatprep.mubr.bf16.mxu0 0
      %1016 = vmatmul.mubr.bf16.gmra.mxu0 %v746
      %v1017 = vpop.f32.mrf.mxu0
      %v1018 = vadd.f32 0.0, %v1017
      %v1019 = vpop.f32.mrf.mxu0
      %v1020 = vpop.f32.mrf.mxu0
      %v1021 = vadd.f32 0.0, %v1020
      %v1022 = vpop.f32.mrf.mxu0
      %1023 = vmatprep.mubr.bf16.mxu0 0
      %1024 = vmatmul.mubr.bf16.gmra.mxu0 %v749
      %v1025 = vpop.f32.mrf.mxu0
      %v1026 = vadd.f32 0.0, %v1025
      %v1027 = vpop.f32.mrf.mxu0
      %v1028 = vpop.f32.mrf.mxu0
      %v1029 = vadd.f32 0.0, %v1028
      %v1030 = vpop.f32.mrf.mxu0
      %1031 = vmatprep.mubr.bf16.mxu0 0
      %1032 = vmatmul.mubr.bf16.gmra.mxu0 %v752
      %v1033 = vpop.f32.mrf.mxu0
      %v1034 = vadd.f32 0.0, %v1033
      %v1035 = vpop.f32.mrf.mxu0
      %v1036 = vpop.f32.mrf.mxu0
      %v1037 = vadd.f32 0.0, %v1036
      %v1038 = vpop.f32.mrf.mxu0
      %1039 = vmatprep.mubr.bf16.mxu0 0
      %1040 = vmatmul.mubr.bf16.gmra.mxu0 %v755
      %v1041 = vpop.f32.mrf.mxu0
      %v1042 = vadd.f32 0.0, %v1041
      %v1043 = vpop.f32.mrf.mxu0
      %v1044 = vpop.f32.mrf.mxu0
      %v1045 = vadd.f32 0.0, %v1044
      %v1046 = vpop.f32.mrf.mxu0
      %1047 = vmatprep.mubr.bf16.mxu0 0
      %1048 = vmatmul.mubr.bf16.gmra.mxu0 %v758
      %v1049 = vpop.f32.mrf.mxu0
      %v1050 = vadd.f32 0.0, %v1049
      %v1051 = vpop.f32.mrf.mxu0
      %v1052 = vpop.f32.mrf.mxu0
      %v1053 = vadd.f32 0.0, %v1052
      %v1054 = vpop.f32.mrf.mxu0
      %1055 = vmatprep.mubr.bf16.mxu0 0
      %1056 = vmatmul.mubr.bf16.gmra.mxu0 %v761
      %v1057 = vpop.f32.mrf.mxu0
      %v1058 = vadd.f32 0.0, %v1057
      %v1059 = vpop.f32.mrf.mxu0
      %v1060 = vpop.f32.mrf.mxu0
      %v1061 = vadd.f32 0.0, %v1060
      %v1062 = vpop.f32.mrf.mxu0
      %1063 = vmatprep.mubr.bf16.mxu0 0
      %1064 = vmatmul.mubr.bf16.gmra.mxu0 %v764
      %v1065 = vpop.f32.mrf.mxu0
      %v1066 = vadd.f32 0.0, %v1065
      %v1067 = vpop.f32.mrf.mxu0
      %v1068 = vpop.f32.mrf.mxu0
      %v1069 = vadd.f32 0.0, %v1068
      %v1070 = vpop.f32.mrf.mxu0
      %1071 = vmatprep.mubr.bf16.mxu0 0
      %1072 = vmatmul.mubr.bf16.gmra.mxu0 %v767
      %v1073 = vpop.f32.mrf.mxu0
      %v1074 = vadd.f32 0.0, %v1073
      %v1075 = vpop.f32.mrf.mxu0
      %v1076 = vpop.f32.mrf.mxu0
      %v1077 = vadd.f32 0.0, %v1076
      %v1078 = vpop.f32.mrf.mxu0
      %1079 = vdwg.mxu0
      %v1081 = vsel %vm769, %v699, 0
      %1083 = vmatprep.subr.bf16.mxu0 0
      %1084 = vmatpush1.bf16.msra.mxu0 0
      %1085 = vmatprep.subr.bf16.mxu0 0
      %1086 = vmatpush1.bf16.msra.mxu0 0
      %1087 = vmatprep.subr.bf16.mxu0 0
      %1088 = vmatpush1.bf16.msra.mxu0 0
      %1089 = vmatprep.subr.bf16.mxu0 0
      %1090 = vmatpush1.bf16.msra.mxu0 0
      %1091 = vmatprep.subr.bf16.mxu0 0
      %1092 = vmatpush1.bf16.msra.mxu0 0
      %1093 = vmatprep.subr.bf16.mxu0 0
      %1094 = vmatpush1.bf16.msra.mxu0 0
      %1095 = vmatprep.subr.bf16.mxu0 0
      %1096 = vmatpush1.bf16.msra.mxu0 0
      %1097 = vmatprep.subr.bf16.mxu0 0
      %1098 = vmatpush1.bf16.msra.mxu0 %v1081
      %1099 = vmatprep.subr.bf16.mxu0 0
      %1100 = vmatpush2.bf16.msra.mxu0 0
      %1101 = vmatprep.subr.bf16.mxu0 0
      %1102 = vmatpush2.bf16.msra.mxu0 0
      %1103 = vmatprep.subr.bf16.mxu0 0
      %1104 = vmatpush2.bf16.msra.mxu0 0
      %1105 = vmatprep.subr.bf16.mxu0 0
      %1106 = vmatpush2.bf16.msra.mxu0 0
      %1107 = vmatprep.subr.bf16.mxu0 0
      %1108 = vmatpush2.bf16.msra.mxu0 0
      %1109 = vmatprep.subr.bf16.mxu0 0
      %1110 = vmatpush2.bf16.msra.mxu0 0
      %1111 = vmatprep.subr.bf16.mxu0 0
      %1112 = vmatpush2.bf16.msra.mxu0 0
      %1113 = vmatprep.subr.bf16.mxu0 0
      %1114 = vmatpush2.bf16.msra.mxu0 0
      %1115 = vmatprep.mubr.bf16.mxu0 0
      %1116 = vmatmul.mubr.bf16.gmra.mxu0 %v876
      %v1117 = vpop.f32.mrf.mxu0
      %v1118 = vadd.f32 %v1018, %v1117
      %v1119 = vpop.f32.mrf.mxu0
      %v1120 = vpop.f32.mrf.mxu0
      %v1121 = vadd.f32 %v1021, %v1120
      %v1122 = vpop.f32.mrf.mxu0
      %1123 = vmatprep.mubr.bf16.mxu0 0
      %1124 = vmatmul.mubr.bf16.gmra.mxu0 %v746
      %v1125 = vpop.f32.mrf.mxu0
      %v1126 = vadd.f32 %v1026, %v1125
      %v1127 = vpop.f32.mrf.mxu0
      %v1128 = vpop.f32.mrf.mxu0
      %v1129 = vadd.f32 %v1029, %v1128
      %v1130 = vpop.f32.mrf.mxu0
      %1131 = vmatprep.mubr.bf16.mxu0 0
      %1132 = vmatmul.mubr.bf16.gmra.mxu0 %v749
      %v1133 = vpop.f32.mrf.mxu0
      %v1134 = vadd.f32 %v1034, %v1133
      %v1135 = vpop.f32.mrf.mxu0
      %v1136 = vpop.f32.mrf.mxu0
      %v1137 = vadd.f32 %v1037, %v1136
      %v1138 = vpop.f32.mrf.mxu0
      %1139 = vmatprep.mubr.bf16.mxu0 0
      %1140 = vmatmul.mubr.bf16.gmra.mxu0 %v752
      %v1141 = vpop.f32.mrf.mxu0
      %v1142 = vadd.f32 %v1042, %v1141
      %v1143 = vpop.f32.mrf.mxu0
      %v1144 = vpop.f32.mrf.mxu0
      %v1145 = vadd.f32 %v1045, %v1144
      %v1146 = vpop.f32.mrf.mxu0
      %1147 = vmatprep.mubr.bf16.mxu0 0
      %1148 = vmatmul.mubr.bf16.gmra.mxu0 %v755
      %v1149 = vpop.f32.mrf.mxu0
      %v1150 = vadd.f32 %v1050, %v1149
      %v1151 = vpop.f32.mrf.mxu0
      %v1152 = vpop.f32.mrf.mxu0
      %v1153 = vadd.f32 %v1053, %v1152
      %v1154 = vpop.f32.mrf.mxu0
      %1155 = vmatprep.mubr.bf16.mxu0 0
      %1156 = vmatmul.mubr.bf16.gmra.mxu0 %v758
      %v1157 = vpop.f32.mrf.mxu0
      %v1158 = vadd.f32 %v1058, %v1157
      %v1159 = vpop.f32.mrf.mxu0
      %v1160 = vpop.f32.mrf.mxu0
      %v1161 = vadd.f32 %v1061, %v1160
      %v1162 = vpop.f32.mrf.mxu0
      %1163 = vmatprep.mubr.bf16.mxu0 0
      %1164 = vmatmul.mubr.bf16.gmra.mxu0 %v761
      %v1165 = vpop.f32.mrf.mxu0
      %v1166 = vadd.f32 %v1066, %v1165
      %v1167 = vpop.f32.mrf.mxu0
      %v1168 = vpop.f32.mrf.mxu0
      %v1169 = vadd.f32 %v1069, %v1168
      %v1170 = vpop.f32.mrf.mxu0
      %1171 = vmatprep.mubr.bf16.mxu0 0
      %1172 = vmatmul.mubr.bf16.gmra.mxu0 %v764
      %v1173 = vpop.f32.mrf.mxu0
      %v1174 = vadd.f32 %v1074, %v1173
      %v1175 = vpop.f32.mrf.mxu0
      %v1176 = vpop.f32.mrf.mxu0
      %v1177 = vadd.f32 %v1077, %v1176
      %v1178 = vpop.f32.mrf.mxu0
      %1179 = vdwg.mxu0
      %s1180 = scalar_lea.vmem %s6, 10
      %v1181 = vld [vmem:[%s1180] sm:$0x3]
      %v1183 = vsel %vm769, %v1181, 0
      %1185 = vmatprep.subr.bf16.mxu0 0
      %1186 = vmatpush1.bf16.msra.mxu0 0
      %1187 = vmatprep.subr.bf16.mxu0 0
      %1188 = vmatpush1.bf16.msra.mxu0 0
      %1189 = vmatprep.subr.bf16.mxu0 0
      %1190 = vmatpush1.bf16.msra.mxu0 0
      %1191 = vmatprep.subr.bf16.mxu0 0
      %1192 = vmatpush1.bf16.msra.mxu0 0
      %1193 = vmatprep.subr.bf16.mxu0 0
      %1194 = vmatpush1.bf16.msra.mxu0 0
      %1195 = vmatprep.subr.bf16.mxu0 0
      %1196 = vmatpush1.bf16.msra.mxu0 0
      %1197 = vmatprep.subr.bf16.mxu0 0
      %1198 = vmatpush1.bf16.msra.mxu0 0
      %1199 = vmatprep.subr.bf16.mxu0 0
      %1200 = vmatpush1.bf16.msra.mxu0 %v1183
      %1201 = vmatprep.subr.bf16.mxu0 0
      %1202 = vmatpush2.bf16.msra.mxu0 0
      %1203 = vmatprep.subr.bf16.mxu0 0
      %1204 = vmatpush2.bf16.msra.mxu0 0
      %1205 = vmatprep.subr.bf16.mxu0 0
      %1206 = vmatpush2.bf16.msra.mxu0 0
      %1207 = vmatprep.subr.bf16.mxu0 0
      %1208 = vmatpush2.bf16.msra.mxu0 0
      %1209 = vmatprep.subr.bf16.mxu0 0
      %1210 = vmatpush2.bf16.msra.mxu0 0
      %1211 = vmatprep.subr.bf16.mxu0 0
      %1212 = vmatpush2.bf16.msra.mxu0 0
      %1213 = vmatprep.subr.bf16.mxu0 0
      %1214 = vmatpush2.bf16.msra.mxu0 0
      %1215 = vmatprep.subr.bf16.mxu0 0
      %1216 = vmatpush2.bf16.msra.mxu0 0
      %1217 = vmatprep.mubr.bf16.mxu0 0
      %1218 = vmatmul.mubr.bf16.gmra.mxu0 %v746
      %v1219 = vpop.f32.mrf.mxu0
      %v1220 = vadd.f32 0.0, %v1219
      %v1221 = vpop.f32.mrf.mxu0
      %v1222 = vpop.f32.mrf.mxu0
      %v1223 = vadd.f32 0.0, %v1222
      %v1224 = vpop.f32.mrf.mxu0
      %1225 = vmatprep.mubr.bf16.mxu0 0
      %1226 = vmatmul.mubr.bf16.gmra.mxu0 %v749
      %v1227 = vpop.f32.mrf.mxu0
      %v1228 = vadd.f32 0.0, %v1227
      %v1229 = vpop.f32.mrf.mxu0
      %v1230 = vpop.f32.mrf.mxu0
      %v1231 = vadd.f32 0.0, %v1230
      %v1232 = vpop.f32.mrf.mxu0
      %1233 = vmatprep.mubr.bf16.mxu0 0
      %1234 = vmatmul.mubr.bf16.gmra.mxu0 %v752
      %v1235 = vpop.f32.mrf.mxu0
      %v1236 = vadd.f32 0.0, %v1235
      %v1237 = vpop.f32.mrf.mxu0
      %v1238 = vpop.f32.mrf.mxu0
      %v1239 = vadd.f32 0.0, %v1238
      %v1240 = vpop.f32.mrf.mxu0
      %1241 = vmatprep.mubr.bf16.mxu0 0
      %1242 = vmatmul.mubr.bf16.gmra.mxu0 %v755
      %v1243 = vpop.f32.mrf.mxu0
      %v1244 = vadd.f32 0.0, %v1243
      %v1245 = vpop.f32.mrf.mxu0
      %v1246 = vpop.f32.mrf.mxu0
      %v1247 = vadd.f32 0.0, %v1246
      %v1248 = vpop.f32.mrf.mxu0
      %1249 = vmatprep.mubr.bf16.mxu0 0
      %1250 = vmatmul.mubr.bf16.gmra.mxu0 %v758
      %v1251 = vpop.f32.mrf.mxu0
      %v1252 = vadd.f32 0.0, %v1251
      %v1253 = vpop.f32.mrf.mxu0
      %v1254 = vpop.f32.mrf.mxu0
      %v1255 = vadd.f32 0.0, %v1254
      %v1256 = vpop.f32.mrf.mxu0
      %1257 = vmatprep.mubr.bf16.mxu0 0
      %1258 = vmatmul.mubr.bf16.gmra.mxu0 %v761
      %v1259 = vpop.f32.mrf.mxu0
      %v1260 = vadd.f32 0.0, %v1259
      %v1261 = vpop.f32.mrf.mxu0
      %v1262 = vpop.f32.mrf.mxu0
      %v1263 = vadd.f32 0.0, %v1262
      %v1264 = vpop.f32.mrf.mxu0
      %1265 = vmatprep.mubr.bf16.mxu0 0
      %1266 = vmatmul.mubr.bf16.gmra.mxu0 %v764
      %v1267 = vpop.f32.mrf.mxu0
      %v1268 = vadd.f32 0.0, %v1267
      %v1269 = vpop.f32.mrf.mxu0
      %v1270 = vpop.f32.mrf.mxu0
      %v1271 = vadd.f32 0.0, %v1270
      %v1272 = vpop.f32.mrf.mxu0
      %1273 = vmatprep.mubr.bf16.mxu0 0
      %1274 = vmatmul.mubr.bf16.gmra.mxu0 %v767
      %v1275 = vpop.f32.mrf.mxu0
      %v1276 = vadd.f32 0.0, %v1275
      %v1277 = vpop.f32.mrf.mxu0
      %v1278 = vpop.f32.mrf.mxu0
      %v1279 = vadd.f32 0.0, %v1278
      %v1280 = vpop.f32.mrf.mxu0
      %1281 = vdwg.mxu0
      %v1283 = vsel %vm769, %v701, 0
      %1285 = vmatprep.subr.bf16.mxu0 0
      %1286 = vmatpush1.bf16.msra.mxu0 0
      %1287 = vmatprep.subr.bf16.mxu0 0
      %1288 = vmatpush1.bf16.msra.mxu0 0
      %1289 = vmatprep.subr.bf16.mxu0 0
      %1290 = vmatpush1.bf16.msra.mxu0 0
      %1291 = vmatprep.subr.bf16.mxu0 0
      %1292 = vmatpush1.bf16.msra.mxu0 0
      %1293 = vmatprep.subr.bf16.mxu0 0
      %1294 = vmatpush1.bf16.msra.mxu0 0
      %1295 = vmatprep.subr.bf16.mxu0 0
      %1296 = vmatpush1.bf16.msra.mxu0 0
      %1297 = vmatprep.subr.bf16.mxu0 0
      %1298 = vmatpush1.bf16.msra.mxu0 0
      %1299 = vmatprep.subr.bf16.mxu0 0
      %1300 = vmatpush1.bf16.msra.mxu0 %v1283
      %1301 = vmatprep.subr.bf16.mxu0 0
      %1302 = vmatpush2.bf16.msra.mxu0 0
      %1303 = vmatprep.subr.bf16.mxu0 0
      %1304 = vmatpush2.bf16.msra.mxu0 0
      %1305 = vmatprep.subr.bf16.mxu0 0
      %1306 = vmatpush2.bf16.msra.mxu0 0
      %1307 = vmatprep.subr.bf16.mxu0 0
      %1308 = vmatpush2.bf16.msra.mxu0 0
      %1309 = vmatprep.subr.bf16.mxu0 0
      %1310 = vmatpush2.bf16.msra.mxu0 0
      %1311 = vmatprep.subr.bf16.mxu0 0
      %1312 = vmatpush2.bf16.msra.mxu0 0
      %1313 = vmatprep.subr.bf16.mxu0 0
      %1314 = vmatpush2.bf16.msra.mxu0 0
      %1315 = vmatprep.subr.bf16.mxu0 0
      %1316 = vmatpush2.bf16.msra.mxu0 0
      %1317 = vmatprep.mubr.bf16.mxu0 0
      %1318 = vmatmul.mubr.bf16.gmra.mxu0 %v876
      %v1319 = vpop.f32.mrf.mxu0
      %v1320 = vadd.f32 %v1220, %v1319
      %v1321 = vpop.f32.mrf.mxu0
      %v1322 = vpop.f32.mrf.mxu0
      %v1323 = vadd.f32 %v1223, %v1322
      %v1324 = vpop.f32.mrf.mxu0
      %1325 = vmatprep.mubr.bf16.mxu0 0
      %1326 = vmatmul.mubr.bf16.gmra.mxu0 %v746
      %v1327 = vpop.f32.mrf.mxu0
      %v1328 = vadd.f32 %v1228, %v1327
      %v1329 = vpop.f32.mrf.mxu0
      %v1330 = vpop.f32.mrf.mxu0
      %v1331 = vadd.f32 %v1231, %v1330
      %v1332 = vpop.f32.mrf.mxu0
      %1333 = vmatprep.mubr.bf16.mxu0 0
      %1334 = vmatmul.mubr.bf16.gmra.mxu0 %v749
      %v1335 = vpop.f32.mrf.mxu0
      %v1336 = vadd.f32 %v1236, %v1335
      %v1337 = vpop.f32.mrf.mxu0
      %v1338 = vpop.f32.mrf.mxu0
      %v1339 = vadd.f32 %v1239, %v1338
      %v1340 = vpop.f32.mrf.mxu0
      %1341 = vmatprep.mubr.bf16.mxu0 0
      %1342 = vmatmul.mubr.bf16.gmra.mxu0 %v752
      %v1343 = vpop.f32.mrf.mxu0
      %v1344 = vadd.f32 %v1244, %v1343
      %v1345 = vpop.f32.mrf.mxu0
      %v1346 = vpop.f32.mrf.mxu0
      %v1347 = vadd.f32 %v1247, %v1346
      %v1348 = vpop.f32.mrf.mxu0
      %1349 = vmatprep.mubr.bf16.mxu0 0
      %1350 = vmatmul.mubr.bf16.gmra.mxu0 %v755
      %v1351 = vpop.f32.mrf.mxu0
      %v1352 = vadd.f32 %v1252, %v1351
      %v1353 = vpop.f32.mrf.mxu0
      %v1354 = vpop.f32.mrf.mxu0
      %v1355 = vadd.f32 %v1255, %v1354
      %v1356 = vpop.f32.mrf.mxu0
      %1357 = vmatprep.mubr.bf16.mxu0 0
      %1358 = vmatmul.mubr.bf16.gmra.mxu0 %v758
      %v1359 = vpop.f32.mrf.mxu0
      %v1360 = vadd.f32 %v1260, %v1359
      %v1361 = vpop.f32.mrf.mxu0
      %v1362 = vpop.f32.mrf.mxu0
      %v1363 = vadd.f32 %v1263, %v1362
      %v1364 = vpop.f32.mrf.mxu0
      %1365 = vmatprep.mubr.bf16.mxu0 0
      %1366 = vmatmul.mubr.bf16.gmra.mxu0 %v761
      %v1367 = vpop.f32.mrf.mxu0
      %v1368 = vadd.f32 %v1268, %v1367
      %v1369 = vpop.f32.mrf.mxu0
      %v1370 = vpop.f32.mrf.mxu0
      %v1371 = vadd.f32 %v1271, %v1370
      %v1372 = vpop.f32.mrf.mxu0
      %1373 = vmatprep.mubr.bf16.mxu0 0
      %1374 = vmatmul.mubr.bf16.gmra.mxu0 %v764
      %v1375 = vpop.f32.mrf.mxu0
      %v1376 = vadd.f32 %v1276, %v1375
      %v1377 = vpop.f32.mrf.mxu0
      %v1378 = vpop.f32.mrf.mxu0
      %v1379 = vadd.f32 %v1279, %v1378
      %v1380 = vpop.f32.mrf.mxu0
      %1381 = vdwg.mxu0
      %s1382 = scalar_lea.vmem %s6, 12
      %v1383 = vld [vmem:[%s1382] sm:$0x3]
      %v1386 = vunpack.c.l.b16 %v695
      %v1387 = vunpack.c.l.b16 %v696
      %v1388 = vpack.c.b16 %v1387, %v1386
      %v1390 = vsel %vm744, %v1388, 0
      %v1393 = vsel %vm769, %v1383, 0
      %1395 = vmatprep.subr.bf16.mxu0 0
      %1396 = vmatpush1.bf16.msra.mxu0 0
      %1397 = vmatprep.subr.bf16.mxu0 0
      %1398 = vmatpush1.bf16.msra.mxu0 0
      %1399 = vmatprep.subr.bf16.mxu0 0
      %1400 = vmatpush1.bf16.msra.mxu0 0
      %1401 = vmatprep.subr.bf16.mxu0 0
      %1402 = vmatpush1.bf16.msra.mxu0 0
      %1403 = vmatprep.subr.bf16.mxu0 0
      %1404 = vmatpush1.bf16.msra.mxu0 0
      %1405 = vmatprep.subr.bf16.mxu0 0
      %1406 = vmatpush1.bf16.msra.mxu0 0
      %1407 = vmatprep.subr.bf16.mxu0 0
      %1408 = vmatpush1.bf16.msra.mxu0 0
      %1409 = vmatprep.subr.bf16.mxu0 0
      %1410 = vmatpush1.bf16.msra.mxu0 %v1393
      %1411 = vmatprep.subr.bf16.mxu0 0
      %1412 = vmatpush2.bf16.msra.mxu0 0
      %1413 = vmatprep.subr.bf16.mxu0 0
      %1414 = vmatpush2.bf16.msra.mxu0 0
      %1415 = vmatprep.subr.bf16.mxu0 0
      %1416 = vmatpush2.bf16.msra.mxu0 0
      %1417 = vmatprep.subr.bf16.mxu0 0
      %1418 = vmatpush2.bf16.msra.mxu0 0
      %1419 = vmatprep.subr.bf16.mxu0 0
      %1420 = vmatpush2.bf16.msra.mxu0 0
      %1421 = vmatprep.subr.bf16.mxu0 0
      %1422 = vmatpush2.bf16.msra.mxu0 0
      %1423 = vmatprep.subr.bf16.mxu0 0
      %1424 = vmatpush2.bf16.msra.mxu0 0
      %1425 = vmatprep.subr.bf16.mxu0 0
      %1426 = vmatpush2.bf16.msra.mxu0 0
      %1427 = vmatprep.mubr.bf16.mxu0 0
      %1428 = vmatmul.mubr.bf16.gmra.mxu0 %v749
      %v1429 = vpop.f32.mrf.mxu0
      %v1430 = vadd.f32 0.0, %v1429
      %v1431 = vpop.f32.mrf.mxu0
      %v1432 = vpop.f32.mrf.mxu0
      %v1433 = vadd.f32 0.0, %v1432
      %v1434 = vpop.f32.mrf.mxu0
      %1435 = vmatprep.mubr.bf16.mxu0 0
      %1436 = vmatmul.mubr.bf16.gmra.mxu0 %v752
      %v1437 = vpop.f32.mrf.mxu0
      %v1438 = vadd.f32 0.0, %v1437
      %v1439 = vpop.f32.mrf.mxu0
      %v1440 = vpop.f32.mrf.mxu0
      %v1441 = vadd.f32 0.0, %v1440
      %v1442 = vpop.f32.mrf.mxu0
      %1443 = vmatprep.mubr.bf16.mxu0 0
      %1444 = vmatmul.mubr.bf16.gmra.mxu0 %v755
      %v1445 = vpop.f32.mrf.mxu0
      %v1446 = vadd.f32 0.0, %v1445
      %v1447 = vpop.f32.mrf.mxu0
      %v1448 = vpop.f32.mrf.mxu0
      %v1449 = vadd.f32 0.0, %v1448
      %v1450 = vpop.f32.mrf.mxu0
      %1451 = vmatprep.mubr.bf16.mxu0 0
      %1452 = vmatmul.mubr.bf16.gmra.mxu0 %v758
      %v1453 = vpop.f32.mrf.mxu0
      %v1454 = vadd.f32 0.0, %v1453
      %v1455 = vpop.f32.mrf.mxu0
      %v1456 = vpop.f32.mrf.mxu0
      %v1457 = vadd.f32 0.0, %v1456
      %v1458 = vpop.f32.mrf.mxu0
      %1459 = vmatprep.mubr.bf16.mxu0 0
      %1460 = vmatmul.mubr.bf16.gmra.mxu0 %v761
      %v1461 = vpop.f32.mrf.mxu0
      %v1462 = vadd.f32 0.0, %v1461
      %v1463 = vpop.f32.mrf.mxu0
      %v1464 = vpop.f32.mrf.mxu0
      %v1465 = vadd.f32 0.0, %v1464
      %v1466 = vpop.f32.mrf.mxu0
      %1467 = vmatprep.mubr.bf16.mxu0 0
      %1468 = vmatmul.mubr.bf16.gmra.mxu0 %v764
      %v1469 = vpop.f32.mrf.mxu0
      %v1470 = vadd.f32 0.0, %v1469
      %v1471 = vpop.f32.mrf.mxu0
      %v1472 = vpop.f32.mrf.mxu0
      %v1473 = vadd.f32 0.0, %v1472
      %v1474 = vpop.f32.mrf.mxu0
      %1475 = vmatprep.mubr.bf16.mxu0 0
      %1476 = vmatmul.mubr.bf16.gmra.mxu0 %v767
      %v1477 = vpop.f32.mrf.mxu0
      %v1478 = vadd.f32 0.0, %v1477
      %v1479 = vpop.f32.mrf.mxu0
      %v1480 = vpop.f32.mrf.mxu0
      %v1481 = vadd.f32 0.0, %v1480
      %v1482 = vpop.f32.mrf.mxu0
      %1483 = vmatprep.mubr.bf16.mxu0 0
      %1484 = vmatmul.mubr.bf16.gmra.mxu0 %v1390
      %v1485 = vpop.f32.mrf.mxu0
      %v1486 = vadd.f32 0.0, %v1485
      %v1487 = vpop.f32.mrf.mxu0
      %v1488 = vpop.f32.mrf.mxu0
      %v1489 = vadd.f32 0.0, %v1488
      %v1490 = vpop.f32.mrf.mxu0
      %1491 = vdwg.mxu0
      %v1492 = vadd.f32 %v916, %v1430
      %v1493 = vadd.f32 %v919, %v1433
      %v1494 = vadd.f32 %v924, %v1438
      %v1495 = vadd.f32 %v927, %v1441
      %v1496 = vadd.f32 %v932, %v1446
      %v1497 = vadd.f32 %v935, %v1449
      %v1498 = vadd.f32 %v940, %v1454
      %v1499 = vadd.f32 %v943, %v1457
      %v1500 = vadd.f32 %v948, %v1462
      %v1501 = vadd.f32 %v951, %v1465
      %v1502 = vadd.f32 %v956, %v1470
      %v1503 = vadd.f32 %v959, %v1473
      %v1504 = vadd.f32 %v964, %v1478
      %v1505 = vadd.f32 %v967, %v1481
      %v1506 = vadd.f32 %v972, %v1486
      %v1507 = vadd.f32 %v975, %v1489
      %s1508 = scalar_lea.vmem %s6, 14
      %v1509 = vld [vmem:[%s1508] sm:$0x3]
      %v1511 = vsel %vm769, %v1509, 0
      %1513 = vmatprep.subr.bf16.mxu0 0
      %1514 = vmatpush1.bf16.msra.mxu0 0
      %1515 = vmatprep.subr.bf16.mxu0 0
      %1516 = vmatpush1.bf16.msra.mxu0 0
      %1517 = vmatprep.subr.bf16.mxu0 0
      %1518 = vmatpush1.bf16.msra.mxu0 0
      %1519 = vmatprep.subr.bf16.mxu0 0
      %1520 = vmatpush1.bf16.msra.mxu0 0
      %1521 = vmatprep.subr.bf16.mxu0 0
      %1522 = vmatpush1.bf16.msra.mxu0 0
      %1523 = vmatprep.subr.bf16.mxu0 0
      %1524 = vmatpush1.bf16.msra.mxu0 0
      %1525 = vmatprep.subr.bf16.mxu0 0
      %1526 = vmatpush1.bf16.msra.mxu0 0
      %1527 = vmatprep.subr.bf16.mxu0 0
      %1528 = vmatpush1.bf16.msra.mxu0 %v1511
      %1529 = vmatprep.subr.bf16.mxu0 0
      %1530 = vmatpush2.bf16.msra.mxu0 0
      %1531 = vmatprep.subr.bf16.mxu0 0
      %1532 = vmatpush2.bf16.msra.mxu0 0
      %1533 = vmatprep.subr.bf16.mxu0 0
      %1534 = vmatpush2.bf16.msra.mxu0 0
      %1535 = vmatprep.subr.bf16.mxu0 0
      %1536 = vmatpush2.bf16.msra.mxu0 0
      %1537 = vmatprep.subr.bf16.mxu0 0
      %1538 = vmatpush2.bf16.msra.mxu0 0
      %1539 = vmatprep.subr.bf16.mxu0 0
      %1540 = vmatpush2.bf16.msra.mxu0 0
      %1541 = vmatprep.subr.bf16.mxu0 0
      %1542 = vmatpush2.bf16.msra.mxu0 0
      %1543 = vmatprep.subr.bf16.mxu0 0
      %1544 = vmatpush2.bf16.msra.mxu0 0
      %1545 = vmatprep.mubr.bf16.mxu0 0
      %1546 = vmatmul.mubr.bf16.gmra.mxu0 %v749
      %v1547 = vpop.f32.mrf.mxu0
      %v1548 = vadd.f32 0.0, %v1547
      %v1549 = vpop.f32.mrf.mxu0
      %v1550 = vpop.f32.mrf.mxu0
      %v1551 = vadd.f32 0.0, %v1550
      %v1552 = vpop.f32.mrf.mxu0
      %1553 = vmatprep.mubr.bf16.mxu0 0
      %1554 = vmatmul.mubr.bf16.gmra.mxu0 %v752
      %v1555 = vpop.f32.mrf.mxu0
      %v1556 = vadd.f32 0.0, %v1555
      %v1557 = vpop.f32.mrf.mxu0
      %v1558 = vpop.f32.mrf.mxu0
      %v1559 = vadd.f32 0.0, %v1558
      %v1560 = vpop.f32.mrf.mxu0
      %1561 = vmatprep.mubr.bf16.mxu0 0
      %1562 = vmatmul.mubr.bf16.gmra.mxu0 %v755
      %v1563 = vpop.f32.mrf.mxu0
      %v1564 = vadd.f32 0.0, %v1563
      %v1565 = vpop.f32.mrf.mxu0
      %v1566 = vpop.f32.mrf.mxu0
      %v1567 = vadd.f32 0.0, %v1566
      %v1568 = vpop.f32.mrf.mxu0
      %1569 = vmatprep.mubr.bf16.mxu0 0
      %1570 = vmatmul.mubr.bf16.gmra.mxu0 %v758
      %v1571 = vpop.f32.mrf.mxu0
      %v1572 = vadd.f32 0.0, %v1571
      %v1573 = vpop.f32.mrf.mxu0
      %v1574 = vpop.f32.mrf.mxu0
      %v1575 = vadd.f32 0.0, %v1574
      %v1576 = vpop.f32.mrf.mxu0
      %1577 = vmatprep.mubr.bf16.mxu0 0
      %1578 = vmatmul.mubr.bf16.gmra.mxu0 %v761
      %v1579 = vpop.f32.mrf.mxu0
      %v1580 = vadd.f32 0.0, %v1579
      %v1581 = vpop.f32.mrf.mxu0
      %v1582 = vpop.f32.mrf.mxu0
      %v1583 = vadd.f32 0.0, %v1582
      %v1584 = vpop.f32.mrf.mxu0
      %1585 = vmatprep.mubr.bf16.mxu0 0
      %1586 = vmatmul.mubr.bf16.gmra.mxu0 %v764
      %v1587 = vpop.f32.mrf.mxu0
      %v1588 = vadd.f32 0.0, %v1587
      %v1589 = vpop.f32.mrf.mxu0
      %v1590 = vpop.f32.mrf.mxu0
      %v1591 = vadd.f32 0.0, %v1590
      %v1592 = vpop.f32.mrf.mxu0
      %1593 = vmatprep.mubr.bf16.mxu0 0
      %1594 = vmatmul.mubr.bf16.gmra.mxu0 %v767
      %v1595 = vpop.f32.mrf.mxu0
      %v1596 = vadd.f32 0.0, %v1595
      %v1597 = vpop.f32.mrf.mxu0
      %v1598 = vpop.f32.mrf.mxu0
      %v1599 = vadd.f32 0.0, %v1598
      %v1600 = vpop.f32.mrf.mxu0
      %1601 = vmatprep.mubr.bf16.mxu0 0
      %1602 = vmatmul.mubr.bf16.gmra.mxu0 %v1390
      %v1603 = vpop.f32.mrf.mxu0
      %v1604 = vadd.f32 0.0, %v1603
      %v1605 = vpop.f32.mrf.mxu0
      %v1606 = vpop.f32.mrf.mxu0
      %v1607 = vadd.f32 0.0, %v1606
      %v1608 = vpop.f32.mrf.mxu0
      %1609 = vdwg.mxu0
      %v1610 = vadd.f32 %v1118, %v1548
      %v1611 = vadd.f32 %v1121, %v1551
      %v1612 = vadd.f32 %v1126, %v1556
      %v1613 = vadd.f32 %v1129, %v1559
      %v1614 = vadd.f32 %v1134, %v1564
      %v1615 = vadd.f32 %v1137, %v1567
      %v1616 = vadd.f32 %v1142, %v1572
      %v1617 = vadd.f32 %v1145, %v1575
      %v1618 = vadd.f32 %v1150, %v1580
      %v1619 = vadd.f32 %v1153, %v1583
      %v1620 = vadd.f32 %v1158, %v1588
      %v1621 = vadd.f32 %v1161, %v1591
      %v1622 = vadd.f32 %v1166, %v1596
      %v1623 = vadd.f32 %v1169, %v1599
      %v1624 = vadd.f32 %v1174, %v1604
      %v1625 = vadd.f32 %v1177, %v1607
      %s1626 = scalar_lea.vmem %s6, 16
      %v1627 = vld [vmem:[%s1626] sm:$0x3]
      %v1629 = vsel %vm769, %v1627, 0
      %1631 = vmatprep.subr.bf16.mxu0 0
      %1632 = vmatpush1.bf16.msra.mxu0 0
      %1633 = vmatprep.subr.bf16.mxu0 0
      %1634 = vmatpush1.bf16.msra.mxu0 0
      %1635 = vmatprep.subr.bf16.mxu0 0
      %1636 = vmatpush1.bf16.msra.mxu0 0
      %1637 = vmatprep.subr.bf16.mxu0 0
      %1638 = vmatpush1.bf16.msra.mxu0 0
      %1639 = vmatprep.subr.bf16.mxu0 0
      %1640 = vmatpush1.bf16.msra.mxu0 0
      %1641 = vmatprep.subr.bf16.mxu0 0
      %1642 = vmatpush1.bf16.msra.mxu0 0
      %1643 = vmatprep.subr.bf16.mxu0 0
      %1644 = vmatpush1.bf16.msra.mxu0 0
      %1645 = vmatprep.subr.bf16.mxu0 0
      %1646 = vmatpush1.bf16.msra.mxu0 %v1629
      %1647 = vmatprep.subr.bf16.mxu0 0
      %1648 = vmatpush2.bf16.msra.mxu0 0
      %1649 = vmatprep.subr.bf16.mxu0 0
      %1650 = vmatpush2.bf16.msra.mxu0 0
      %1651 = vmatprep.subr.bf16.mxu0 0
      %1652 = vmatpush2.bf16.msra.mxu0 0
      %1653 = vmatprep.subr.bf16.mxu0 0
      %1654 = vmatpush2.bf16.msra.mxu0 0
      %1655 = vmatprep.subr.bf16.mxu0 0
      %1656 = vmatpush2.bf16.msra.mxu0 0
      %1657 = vmatprep.subr.bf16.mxu0 0
      %1658 = vmatpush2.bf16.msra.mxu0 0
      %1659 = vmatprep.subr.bf16.mxu0 0
      %1660 = vmatpush2.bf16.msra.mxu0 0
      %1661 = vmatprep.subr.bf16.mxu0 0
      %1662 = vmatpush2.bf16.msra.mxu0 0
      %1663 = vmatprep.mubr.bf16.mxu0 0
      %1664 = vmatmul.mubr.bf16.gmra.mxu0 %v749
      %v1665 = vpop.f32.mrf.mxu0
      %v1666 = vadd.f32 0.0, %v1665
      %v1667 = vpop.f32.mrf.mxu0
      %v1668 = vpop.f32.mrf.mxu0
      %v1669 = vadd.f32 0.0, %v1668
      %v1670 = vpop.f32.mrf.mxu0
      %1671 = vmatprep.mubr.bf16.mxu0 0
      %1672 = vmatmul.mubr.bf16.gmra.mxu0 %v752
      %v1673 = vpop.f32.mrf.mxu0
      %v1674 = vadd.f32 0.0, %v1673
      %v1675 = vpop.f32.mrf.mxu0
      %v1676 = vpop.f32.mrf.mxu0
      %v1677 = vadd.f32 0.0, %v1676
      %v1678 = vpop.f32.mrf.mxu0
      %1679 = vmatprep.mubr.bf16.mxu0 0
      %1680 = vmatmul.mubr.bf16.gmra.mxu0 %v755
      %v1681 = vpop.f32.mrf.mxu0
      %v1682 = vadd.f32 0.0, %v1681
      %v1683 = vpop.f32.mrf.mxu0
      %v1684 = vpop.f32.mrf.mxu0
      %v1685 = vadd.f32 0.0, %v1684
      %v1686 = vpop.f32.mrf.mxu0
      %1687 = vmatprep.mubr.bf16.mxu0 0
      %1688 = vmatmul.mubr.bf16.gmra.mxu0 %v758
      %v1689 = vpop.f32.mrf.mxu0
      %v1690 = vadd.f32 0.0, %v1689
      %v1691 = vpop.f32.mrf.mxu0
      %v1692 = vpop.f32.mrf.mxu0
      %v1693 = vadd.f32 0.0, %v1692
      %v1694 = vpop.f32.mrf.mxu0
      %1695 = vmatprep.mubr.bf16.mxu0 0
      %1696 = vmatmul.mubr.bf16.gmra.mxu0 %v761
      %v1697 = vpop.f32.mrf.mxu0
      %v1698 = vadd.f32 0.0, %v1697
      %v1699 = vpop.f32.mrf.mxu0
      %v1700 = vpop.f32.mrf.mxu0
      %v1701 = vadd.f32 0.0, %v1700
      %v1702 = vpop.f32.mrf.mxu0
      %1703 = vmatprep.mubr.bf16.mxu0 0
      %1704 = vmatmul.mubr.bf16.gmra.mxu0 %v764
      %v1705 = vpop.f32.mrf.mxu0
      %v1706 = vadd.f32 0.0, %v1705
      %v1707 = vpop.f32.mrf.mxu0
      %v1708 = vpop.f32.mrf.mxu0
      %v1709 = vadd.f32 0.0, %v1708
      %v1710 = vpop.f32.mrf.mxu0
      %1711 = vmatprep.mubr.bf16.mxu0 0
      %1712 = vmatmul.mubr.bf16.gmra.mxu0 %v767
      %v1713 = vpop.f32.mrf.mxu0
      %v1714 = vadd.f32 0.0, %v1713
      %v1715 = vpop.f32.mrf.mxu0
      %v1716 = vpop.f32.mrf.mxu0
      %v1717 = vadd.f32 0.0, %v1716
      %v1718 = vpop.f32.mrf.mxu0
      %1719 = vmatprep.mubr.bf16.mxu0 0
      %1720 = vmatmul.mubr.bf16.gmra.mxu0 %v1390
      %v1721 = vpop.f32.mrf.mxu0
      %v1722 = vadd.f32 0.0, %v1721
      %v1723 = vpop.f32.mrf.mxu0
      %v1724 = vpop.f32.mrf.mxu0
      %v1725 = vadd.f32 0.0, %v1724
      %v1726 = vpop.f32.mrf.mxu0
      %1727 = vdwg.mxu0
      %v1728 = vadd.f32 %v1320, %v1666
      %v1729 = vadd.f32 %v1323, %v1669
      %v1730 = vadd.f32 %v1328, %v1674
      %v1731 = vadd.f32 %v1331, %v1677
      %v1732 = vadd.f32 %v1336, %v1682
      %v1733 = vadd.f32 %v1339, %v1685
      %v1734 = vadd.f32 %v1344, %v1690
      %v1735 = vadd.f32 %v1347, %v1693
      %v1736 = vadd.f32 %v1352, %v1698
      %v1737 = vadd.f32 %v1355, %v1701
      %v1738 = vadd.f32 %v1360, %v1706
      %v1739 = vadd.f32 %v1363, %v1709
      %v1740 = vadd.f32 %v1368, %v1714
      %v1741 = vadd.f32 %v1371, %v1717
      %v1742 = vadd.f32 %v1376, %v1722
      %v1743 = vadd.f32 %v1379, %v1725
      %v1744 = vld [vmem:[%s617] sm:$0xf]
      %v1745 = vld [vmem:[%s617 + $0x4] sm:$0xf]
      %v1746 = vld [vmem:[%s617 + $0x8] sm:$0xf]
      %v1747 = vld [vmem:[%s617 + $0xc] sm:$0xf]
      %v1748 = vld [vmem:[%s617 + $0x10] sm:$0xf]
      %v1749 = vld [vmem:[%s617 + $0x14] sm:$0xf]
      %v1750 = vld [vmem:[%s617 + $0x18] sm:$0xf]
      %v1751 = vld [vmem:[%s617 + $0x1c] sm:$0xf]
      %v1752 = vld [vmem:[%s617 + $0x20] sm:$0xf]
      %v1753 = vld [vmem:[%s617 + $0x24] sm:$0xf]
      %v1754 = vld [vmem:[%s617 + $0x28] sm:$0xf]
      %v1755 = vld [vmem:[%s617 + $0x2c] sm:$0xf]
      %v1756 = vld [vmem:[%s617 + $0x30] sm:$0xf]
      %v1757 = vld [vmem:[%s617 + $0x34] sm:$0xf]
      %v1758 = vld [vmem:[%s617 + $0x38] sm:$0xf]
      %v1759 = vld [vmem:[%s617 + $0x3c] sm:$0xf]
      %v1760 = vld [vmem:[%s631] sm:$0xf]
      %v1761 = vld [vmem:[%s631 + $0x4] sm:$0xf]
      %v1762 = vld [vmem:[%s648] sm:$0xf]
      %v1763 = vld [vmem:[%s648 + $0x4] sm:$0xf]
      %v1764 = vsel %vm688, 0, %v1760
      %v1765 = vsel %vm688, 0, %v1761
      %v1766 = vsel %vm694, 0, %v1762
      %v1767 = vsel %vm694, 0, %v1763
      %v1768 = vld [vmem:[%s7] sm:$0x3]
      %v1785 = vunpack.c.l.b16 %v1764
      %v1786 = vunpack.c.l.b16 %v1765
      %v1787 = vunpack.c.l.b16 %v1744
      %v1788 = vunpack.c.l.b16 %v1745
      %v1789 = vunpack.c.l.b16 %v1746
      %v1790 = vunpack.c.l.b16 %v1747
      %v1791 = vunpack.c.l.b16 %v1748
      %v1792 = vunpack.c.l.b16 %v1749
      %v1793 = vunpack.c.l.b16 %v1750
      %v1794 = vunpack.c.l.b16 %v1751
      %v1795 = vunpack.c.l.b16 %v1752
      %v1796 = vunpack.c.l.b16 %v1753
      %v1797 = vunpack.c.l.b16 %v1754
      %v1798 = vunpack.c.l.b16 %v1755
      %v1799 = vunpack.c.l.b16 %v1756
      %v1800 = vunpack.c.l.b16 %v1757
      %v1801 = vpack.c.b16 %v1786, %v1785
      %v1802 = vpack.c.b16 %v1788, %v1787
      %v1803 = vpack.c.b16 %v1790, %v1789
      %v1804 = vpack.c.b16 %v1792, %v1791
      %v1805 = vpack.c.b16 %v1794, %v1793
      %v1806 = vpack.c.b16 %v1796, %v1795
      %v1807 = vpack.c.b16 %v1798, %v1797
      %v1808 = vpack.c.b16 %v1800, %v1799
      %v1810 = vsel %vm744, %v1801, 0
      %v1813 = vsel %vm744, %v1802, 0
      %v1816 = vsel %vm744, %v1803, 0
      %v1819 = vsel %vm744, %v1804, 0
      %v1822 = vsel %vm744, %v1805, 0
      %v1825 = vsel %vm744, %v1806, 0
      %v1828 = vsel %vm744, %v1807, 0
      %v1831 = vsel %vm744, %v1808, 0
      %v1834 = vsel %vm769, %v1768, 0
      %1836 = vmatprep.subr.bf16.mxu0 0
      %1837 = vmatpush1.bf16.msra.mxu0 0
      %1838 = vmatprep.subr.bf16.mxu0 0
      %1839 = vmatpush1.bf16.msra.mxu0 0
      %1840 = vmatprep.subr.bf16.mxu0 0
      %1841 = vmatpush1.bf16.msra.mxu0 0
      %1842 = vmatprep.subr.bf16.mxu0 0
      %1843 = vmatpush1.bf16.msra.mxu0 0
      %1844 = vmatprep.subr.bf16.mxu0 0
      %1845 = vmatpush1.bf16.msra.mxu0 0
      %1846 = vmatprep.subr.bf16.mxu0 0
      %1847 = vmatpush1.bf16.msra.mxu0 0
      %1848 = vmatprep.subr.bf16.mxu0 0
      %1849 = vmatpush1.bf16.msra.mxu0 0
      %1850 = vmatprep.subr.bf16.mxu0 0
      %1851 = vmatpush1.bf16.msra.mxu0 %v1834
      %1852 = vmatprep.subr.bf16.mxu0 0
      %1853 = vmatpush2.bf16.msra.mxu0 0
      %1854 = vmatprep.subr.bf16.mxu0 0
      %1855 = vmatpush2.bf16.msra.mxu0 0
      %1856 = vmatprep.subr.bf16.mxu0 0
      %1857 = vmatpush2.bf16.msra.mxu0 0
      %1858 = vmatprep.subr.bf16.mxu0 0
      %1859 = vmatpush2.bf16.msra.mxu0 0
      %1860 = vmatprep.subr.bf16.mxu0 0
      %1861 = vmatpush2.bf16.msra.mxu0 0
      %1862 = vmatprep.subr.bf16.mxu0 0
      %1863 = vmatpush2.bf16.msra.mxu0 0
      %1864 = vmatprep.subr.bf16.mxu0 0
      %1865 = vmatpush2.bf16.msra.mxu0 0
      %1866 = vmatprep.subr.bf16.mxu0 0
      %1867 = vmatpush2.bf16.msra.mxu0 0
      %1868 = vmatprep.mubr.bf16.mxu0 0
      %1869 = vmatmul.mubr.bf16.gmra.mxu0 %v1810
      %v1870 = vpop.f32.mrf.mxu0
      %v1871 = vadd.f32 0.0, %v1870
      %v1872 = vpop.f32.mrf.mxu0
      %v1873 = vpop.f32.mrf.mxu0
      %v1874 = vadd.f32 0.0, %v1873
      %v1875 = vpop.f32.mrf.mxu0
      %1876 = vmatprep.mubr.bf16.mxu0 0
      %1877 = vmatmul.mubr.bf16.gmra.mxu0 %v1813
      %v1878 = vpop.f32.mrf.mxu0
      %v1879 = vadd.f32 0.0, %v1878
      %v1880 = vpop.f32.mrf.mxu0
      %v1881 = vpop.f32.mrf.mxu0
      %v1882 = vadd.f32 0.0, %v1881
      %v1883 = vpop.f32.mrf.mxu0
      %1884 = vmatprep.mubr.bf16.mxu0 0
      %1885 = vmatmul.mubr.bf16.gmra.mxu0 %v1816
      %v1886 = vpop.f32.mrf.mxu0
      %v1887 = vadd.f32 0.0, %v1886
      %v1888 = vpop.f32.mrf.mxu0
      %v1889 = vpop.f32.mrf.mxu0
      %v1890 = vadd.f32 0.0, %v1889
      %v1891 = vpop.f32.mrf.mxu0
      %1892 = vmatprep.mubr.bf16.mxu0 0
      %1893 = vmatmul.mubr.bf16.gmra.mxu0 %v1819
      %v1894 = vpop.f32.mrf.mxu0
      %v1895 = vadd.f32 0.0, %v1894
      %v1896 = vpop.f32.mrf.mxu0
      %v1897 = vpop.f32.mrf.mxu0
      %v1898 = vadd.f32 0.0, %v1897
      %v1899 = vpop.f32.mrf.mxu0
      %1900 = vmatprep.mubr.bf16.mxu0 0
      %1901 = vmatmul.mubr.bf16.gmra.mxu0 %v1822
      %v1902 = vpop.f32.mrf.mxu0
      %v1903 = vadd.f32 0.0, %v1902
      %v1904 = vpop.f32.mrf.mxu0
      %v1905 = vpop.f32.mrf.mxu0
      %v1906 = vadd.f32 0.0, %v1905
      %v1907 = vpop.f32.mrf.mxu0
      %1908 = vmatprep.mubr.bf16.mxu0 0
      %1909 = vmatmul.mubr.bf16.gmra.mxu0 %v1825
      %v1910 = vpop.f32.mrf.mxu0
      %v1911 = vadd.f32 0.0, %v1910
      %v1912 = vpop.f32.mrf.mxu0
      %v1913 = vpop.f32.mrf.mxu0
      %v1914 = vadd.f32 0.0, %v1913
      %v1915 = vpop.f32.mrf.mxu0
      %1916 = vmatprep.mubr.bf16.mxu0 0
      %1917 = vmatmul.mubr.bf16.gmra.mxu0 %v1828
      %v1918 = vpop.f32.mrf.mxu0
      %v1919 = vadd.f32 0.0, %v1918
      %v1920 = vpop.f32.mrf.mxu0
      %v1921 = vpop.f32.mrf.mxu0
      %v1922 = vadd.f32 0.0, %v1921
      %v1923 = vpop.f32.mrf.mxu0
      %1924 = vmatprep.mubr.bf16.mxu0 0
      %1925 = vmatmul.mubr.bf16.gmra.mxu0 %v1831
      %v1926 = vpop.f32.mrf.mxu0
      %v1927 = vadd.f32 0.0, %v1926
      %v1928 = vpop.f32.mrf.mxu0
      %v1929 = vpop.f32.mrf.mxu0
      %v1930 = vadd.f32 0.0, %v1929
      %v1931 = vpop.f32.mrf.mxu0
      %1932 = vdwg.mxu0
      %v1933 = vadd.f32 %v1492, %v1871
      %v1934 = vadd.f32 %v1493, %v1874
      %v1935 = vadd.f32 %v1494, %v1879
      %v1936 = vadd.f32 %v1495, %v1882
      %v1937 = vadd.f32 %v1496, %v1887
      %v1938 = vadd.f32 %v1497, %v1890
      %v1939 = vadd.f32 %v1498, %v1895
      %v1940 = vadd.f32 %v1499, %v1898
      %v1941 = vadd.f32 %v1500, %v1903
      %v1942 = vadd.f32 %v1501, %v1906
      %v1943 = vadd.f32 %v1502, %v1911
      %v1944 = vadd.f32 %v1503, %v1914
      %v1945 = vadd.f32 %v1504, %v1919
      %v1946 = vadd.f32 %v1505, %v1922
      %v1947 = vadd.f32 %v1506, %v1927
      %v1948 = vadd.f32 %v1507, %v1930
      %s1949 = scalar_lea.vmem %s7, 2
      %v1950 = vld [vmem:[%s1949] sm:$0x3]
      %v1952 = vsel %vm769, %v1950, 0
      %1954 = vmatprep.subr.bf16.mxu0 0
      %1955 = vmatpush1.bf16.msra.mxu0 0
      %1956 = vmatprep.subr.bf16.mxu0 0
      %1957 = vmatpush1.bf16.msra.mxu0 0
      %1958 = vmatprep.subr.bf16.mxu0 0
      %1959 = vmatpush1.bf16.msra.mxu0 0
      %1960 = vmatprep.subr.bf16.mxu0 0
      %1961 = vmatpush1.bf16.msra.mxu0 0
      %1962 = vmatprep.subr.bf16.mxu0 0
      %1963 = vmatpush1.bf16.msra.mxu0 0
      %1964 = vmatprep.subr.bf16.mxu0 0
      %1965 = vmatpush1.bf16.msra.mxu0 0
      %1966 = vmatprep.subr.bf16.mxu0 0
      %1967 = vmatpush1.bf16.msra.mxu0 0
      %1968 = vmatprep.subr.bf16.mxu0 0
      %1969 = vmatpush1.bf16.msra.mxu0 %v1952
      %1970 = vmatprep.subr.bf16.mxu0 0
      %1971 = vmatpush2.bf16.msra.mxu0 0
      %1972 = vmatprep.subr.bf16.mxu0 0
      %1973 = vmatpush2.bf16.msra.mxu0 0
      %1974 = vmatprep.subr.bf16.mxu0 0
      %1975 = vmatpush2.bf16.msra.mxu0 0
      %1976 = vmatprep.subr.bf16.mxu0 0
      %1977 = vmatpush2.bf16.msra.mxu0 0
      %1978 = vmatprep.subr.bf16.mxu0 0
      %1979 = vmatpush2.bf16.msra.mxu0 0
      %1980 = vmatprep.subr.bf16.mxu0 0
      %1981 = vmatpush2.bf16.msra.mxu0 0
      %1982 = vmatprep.subr.bf16.mxu0 0
      %1983 = vmatpush2.bf16.msra.mxu0 0
      %1984 = vmatprep.subr.bf16.mxu0 0
      %1985 = vmatpush2.bf16.msra.mxu0 0
      %1986 = vmatprep.mubr.bf16.mxu0 0
      %1987 = vmatmul.mubr.bf16.gmra.mxu0 %v1810
      %v1988 = vpop.f32.mrf.mxu0
      %v1989 = vadd.f32 0.0, %v1988
      %v1990 = vpop.f32.mrf.mxu0
      %v1991 = vpop.f32.mrf.mxu0
      %v1992 = vadd.f32 0.0, %v1991
      %v1993 = vpop.f32.mrf.mxu0
      %1994 = vmatprep.mubr.bf16.mxu0 0
      %1995 = vmatmul.mubr.bf16.gmra.mxu0 %v1813
      %v1996 = vpop.f32.mrf.mxu0
      %v1997 = vadd.f32 0.0, %v1996
      %v1998 = vpop.f32.mrf.mxu0
      %v1999 = vpop.f32.mrf.mxu0
      %v2000 = vadd.f32 0.0, %v1999
      %v2001 = vpop.f32.mrf.mxu0
      %2002 = vmatprep.mubr.bf16.mxu0 0
      %2003 = vmatmul.mubr.bf16.gmra.mxu0 %v1816
      %v2004 = vpop.f32.mrf.mxu0
      %v2005 = vadd.f32 0.0, %v2004
      %v2006 = vpop.f32.mrf.mxu0
      %v2007 = vpop.f32.mrf.mxu0
      %v2008 = vadd.f32 0.0, %v2007
      %v2009 = vpop.f32.mrf.mxu0
      %2010 = vmatprep.mubr.bf16.mxu0 0
      %2011 = vmatmul.mubr.bf16.gmra.mxu0 %v1819
      %v2012 = vpop.f32.mrf.mxu0
      %v2013 = vadd.f32 0.0, %v2012
      %v2014 = vpop.f32.mrf.mxu0
      %v2015 = vpop.f32.mrf.mxu0
      %v2016 = vadd.f32 0.0, %v2015
      %v2017 = vpop.f32.mrf.mxu0
      %2018 = vmatprep.mubr.bf16.mxu0 0
      %2019 = vmatmul.mubr.bf16.gmra.mxu0 %v1822
      %v2020 = vpop.f32.mrf.mxu0
      %v2021 = vadd.f32 0.0, %v2020
      %v2022 = vpop.f32.mrf.mxu0
      %v2023 = vpop.f32.mrf.mxu0
      %v2024 = vadd.f32 0.0, %v2023
      %v2025 = vpop.f32.mrf.mxu0
      %2026 = vmatprep.mubr.bf16.mxu0 0
      %2027 = vmatmul.mubr.bf16.gmra.mxu0 %v1825
      %v2028 = vpop.f32.mrf.mxu0
      %v2029 = vadd.f32 0.0, %v2028
      %v2030 = vpop.f32.mrf.mxu0
      %v2031 = vpop.f32.mrf.mxu0
      %v2032 = vadd.f32 0.0, %v2031
      %v2033 = vpop.f32.mrf.mxu0
      %2034 = vmatprep.mubr.bf16.mxu0 0
      %2035 = vmatmul.mubr.bf16.gmra.mxu0 %v1828
      %v2036 = vpop.f32.mrf.mxu0
      %v2037 = vadd.f32 0.0, %v2036
      %v2038 = vpop.f32.mrf.mxu0
      %v2039 = vpop.f32.mrf.mxu0
      %v2040 = vadd.f32 0.0, %v2039
      %v2041 = vpop.f32.mrf.mxu0
      %2042 = vmatprep.mubr.bf16.mxu0 0
      %2043 = vmatmul.mubr.bf16.gmra.mxu0 %v1831
      %v2044 = vpop.f32.mrf.mxu0
      %v2045 = vadd.f32 0.0, %v2044
      %v2046 = vpop.f32.mrf.mxu0
      %v2047 = vpop.f32.mrf.mxu0
      %v2048 = vadd.f32 0.0, %v2047
      %v2049 = vpop.f32.mrf.mxu0
      %2050 = vdwg.mxu0
      %v2051 = vadd.f32 %v1610, %v1989
      %v2052 = vadd.f32 %v1611, %v1992
      %v2053 = vadd.f32 %v1612, %v1997
      %v2054 = vadd.f32 %v1613, %v2000
      %v2055 = vadd.f32 %v1614, %v2005
      %v2056 = vadd.f32 %v1615, %v2008
      %v2057 = vadd.f32 %v1616, %v2013
      %v2058 = vadd.f32 %v1617, %v2016
      %v2059 = vadd.f32 %v1618, %v2021
      %v2060 = vadd.f32 %v1619, %v2024
      %v2061 = vadd.f32 %v1620, %v2029
      %v2062 = vadd.f32 %v1621, %v2032
      %v2063 = vadd.f32 %v1622, %v2037
      %v2064 = vadd.f32 %v1623, %v2040
      %v2065 = vadd.f32 %v1624, %v2045
      %v2066 = vadd.f32 %v1625, %v2048
      %s2067 = scalar_lea.vmem %s7, 4
      %v2068 = vld [vmem:[%s2067] sm:$0x3]
      %v2070 = vsel %vm769, %v2068, 0
      %2072 = vmatprep.subr.bf16.mxu0 0
      %2073 = vmatpush1.bf16.msra.mxu0 0
      %2074 = vmatprep.subr.bf16.mxu0 0
      %2075 = vmatpush1.bf16.msra.mxu0 0
      %2076 = vmatprep.subr.bf16.mxu0 0
      %2077 = vmatpush1.bf16.msra.mxu0 0
      %2078 = vmatprep.subr.bf16.mxu0 0
      %2079 = vmatpush1.bf16.msra.mxu0 0
      %2080 = vmatprep.subr.bf16.mxu0 0
      %2081 = vmatpush1.bf16.msra.mxu0 0
      %2082 = vmatprep.subr.bf16.mxu0 0
      %2083 = vmatpush1.bf16.msra.mxu0 0
      %2084 = vmatprep.subr.bf16.mxu0 0
      %2085 = vmatpush1.bf16.msra.mxu0 0
      %2086 = vmatprep.subr.bf16.mxu0 0
      %2087 = vmatpush1.bf16.msra.mxu0 %v2070
      %2088 = vmatprep.subr.bf16.mxu0 0
      %2089 = vmatpush2.bf16.msra.mxu0 0
      %2090 = vmatprep.subr.bf16.mxu0 0
      %2091 = vmatpush2.bf16.msra.mxu0 0
      %2092 = vmatprep.subr.bf16.mxu0 0
      %2093 = vmatpush2.bf16.msra.mxu0 0
      %2094 = vmatprep.subr.bf16.mxu0 0
      %2095 = vmatpush2.bf16.msra.mxu0 0
      %2096 = vmatprep.subr.bf16.mxu0 0
      %2097 = vmatpush2.bf16.msra.mxu0 0
      %2098 = vmatprep.subr.bf16.mxu0 0
      %2099 = vmatpush2.bf16.msra.mxu0 0
      %2100 = vmatprep.subr.bf16.mxu0 0
      %2101 = vmatpush2.bf16.msra.mxu0 0
      %2102 = vmatprep.subr.bf16.mxu0 0
      %2103 = vmatpush2.bf16.msra.mxu0 0
      %2104 = vmatprep.mubr.bf16.mxu0 0
      %2105 = vmatmul.mubr.bf16.gmra.mxu0 %v1810
      %v2106 = vpop.f32.mrf.mxu0
      %v2107 = vadd.f32 0.0, %v2106
      %v2108 = vpop.f32.mrf.mxu0
      %v2109 = vpop.f32.mrf.mxu0
      %v2110 = vadd.f32 0.0, %v2109
      %v2111 = vpop.f32.mrf.mxu0
      %2112 = vmatprep.mubr.bf16.mxu0 0
      %2113 = vmatmul.mubr.bf16.gmra.mxu0 %v1813
      %v2114 = vpop.f32.mrf.mxu0
      %v2115 = vadd.f32 0.0, %v2114
      %v2116 = vpop.f32.mrf.mxu0
      %v2117 = vpop.f32.mrf.mxu0
      %v2118 = vadd.f32 0.0, %v2117
      %v2119 = vpop.f32.mrf.mxu0
      %2120 = vmatprep.mubr.bf16.mxu0 0
      %2121 = vmatmul.mubr.bf16.gmra.mxu0 %v1816
      %v2122 = vpop.f32.mrf.mxu0
      %v2123 = vadd.f32 0.0, %v2122
      %v2124 = vpop.f32.mrf.mxu0
      %v2125 = vpop.f32.mrf.mxu0
      %v2126 = vadd.f32 0.0, %v2125
      %v2127 = vpop.f32.mrf.mxu0
      %2128 = vmatprep.mubr.bf16.mxu0 0
      %2129 = vmatmul.mubr.bf16.gmra.mxu0 %v1819
      %v2130 = vpop.f32.mrf.mxu0
      %v2131 = vadd.f32 0.0, %v2130
      %v2132 = vpop.f32.mrf.mxu0
      %v2133 = vpop.f32.mrf.mxu0
      %v2134 = vadd.f32 0.0, %v2133
      %v2135 = vpop.f32.mrf.mxu0
      %2136 = vmatprep.mubr.bf16.mxu0 0
      %2137 = vmatmul.mubr.bf16.gmra.mxu0 %v1822
      %v2138 = vpop.f32.mrf.mxu0
      %v2139 = vadd.f32 0.0, %v2138
      %v2140 = vpop.f32.mrf.mxu0
      %v2141 = vpop.f32.mrf.mxu0
      %v2142 = vadd.f32 0.0, %v2141
      %v2143 = vpop.f32.mrf.mxu0
      %2144 = vmatprep.mubr.bf16.mxu0 0
      %2145 = vmatmul.mubr.bf16.gmra.mxu0 %v1825
      %v2146 = vpop.f32.mrf.mxu0
      %v2147 = vadd.f32 0.0, %v2146
      %v2148 = vpop.f32.mrf.mxu0
      %v2149 = vpop.f32.mrf.mxu0
      %v2150 = vadd.f32 0.0, %v2149
      %v2151 = vpop.f32.mrf.mxu0
      %2152 = vmatprep.mubr.bf16.mxu0 0
      %2153 = vmatmul.mubr.bf16.gmra.mxu0 %v1828
      %v2154 = vpop.f32.mrf.mxu0
      %v2155 = vadd.f32 0.0, %v2154
      %v2156 = vpop.f32.mrf.mxu0
      %v2157 = vpop.f32.mrf.mxu0
      %v2158 = vadd.f32 0.0, %v2157
      %v2159 = vpop.f32.mrf.mxu0
      %2160 = vmatprep.mubr.bf16.mxu0 0
      %2161 = vmatmul.mubr.bf16.gmra.mxu0 %v1831
      %v2162 = vpop.f32.mrf.mxu0
      %v2163 = vadd.f32 0.0, %v2162
      %v2164 = vpop.f32.mrf.mxu0
      %v2165 = vpop.f32.mrf.mxu0
      %v2166 = vadd.f32 0.0, %v2165
      %v2167 = vpop.f32.mrf.mxu0
      %2168 = vdwg.mxu0
      %v2169 = vadd.f32 %v1728, %v2107
      %v2170 = vadd.f32 %v1729, %v2110
      %v2171 = vadd.f32 %v1730, %v2115
      %v2172 = vadd.f32 %v1731, %v2118
      %v2173 = vadd.f32 %v1732, %v2123
      %v2174 = vadd.f32 %v1733, %v2126
      %v2175 = vadd.f32 %v1734, %v2131
      %v2176 = vadd.f32 %v1735, %v2134
      %v2177 = vadd.f32 %v1736, %v2139
      %v2178 = vadd.f32 %v1737, %v2142
      %v2179 = vadd.f32 %v1738, %v2147
      %v2180 = vadd.f32 %v1739, %v2150
      %v2181 = vadd.f32 %v1740, %v2155
      %v2182 = vadd.f32 %v1741, %v2158
      %v2183 = vadd.f32 %v1742, %v2163
      %v2184 = vadd.f32 %v1743, %v2166
      %s2185 = scalar_lea.vmem %s7, 6
      %v2186 = vld [vmem:[%s2185] sm:$0x3]
      %v2189 = vunpack.c.l.b16 %v1758
      %v2190 = vunpack.c.l.b16 %v1759
      %v2191 = vpack.c.b16 %v2190, %v2189
      %v2193 = vsel %vm744, %v2191, 0
      %v2196 = vsel %vm769, %v2186, 0
      %2198 = vmatprep.subr.bf16.mxu0 0
      %2199 = vmatpush1.bf16.msra.mxu0 0
      %2200 = vmatprep.subr.bf16.mxu0 0
      %2201 = vmatpush1.bf16.msra.mxu0 0
      %2202 = vmatprep.subr.bf16.mxu0 0
      %2203 = vmatpush1.bf16.msra.mxu0 0
      %2204 = vmatprep.subr.bf16.mxu0 0
      %2205 = vmatpush1.bf16.msra.mxu0 0
      %2206 = vmatprep.subr.bf16.mxu0 0
      %2207 = vmatpush1.bf16.msra.mxu0 0
      %2208 = vmatprep.subr.bf16.mxu0 0
      %2209 = vmatpush1.bf16.msra.mxu0 0
      %2210 = vmatprep.subr.bf16.mxu0 0
      %2211 = vmatpush1.bf16.msra.mxu0 0
      %2212 = vmatprep.subr.bf16.mxu0 0
      %2213 = vmatpush1.bf16.msra.mxu0 %v2196
      %2214 = vmatprep.subr.bf16.mxu0 0
      %2215 = vmatpush2.bf16.msra.mxu0 0
      %2216 = vmatprep.subr.bf16.mxu0 0
      %2217 = vmatpush2.bf16.msra.mxu0 0
      %2218 = vmatprep.subr.bf16.mxu0 0
      %2219 = vmatpush2.bf16.msra.mxu0 0
      %2220 = vmatprep.subr.bf16.mxu0 0
      %2221 = vmatpush2.bf16.msra.mxu0 0
      %2222 = vmatprep.subr.bf16.mxu0 0
      %2223 = vmatpush2.bf16.msra.mxu0 0
      %2224 = vmatprep.subr.bf16.mxu0 0
      %2225 = vmatpush2.bf16.msra.mxu0 0
      %2226 = vmatprep.subr.bf16.mxu0 0
      %2227 = vmatpush2.bf16.msra.mxu0 0
      %2228 = vmatprep.subr.bf16.mxu0 0
      %2229 = vmatpush2.bf16.msra.mxu0 0
      %2230 = vmatprep.mubr.bf16.mxu0 0
      %2231 = vmatmul.mubr.bf16.gmra.mxu0 %v1813
      %v2232 = vpop.f32.mrf.mxu0
      %v2233 = vadd.f32 0.0, %v2232
      %v2234 = vpop.f32.mrf.mxu0
      %v2235 = vpop.f32.mrf.mxu0
      %v2236 = vadd.f32 0.0, %v2235
      %v2237 = vpop.f32.mrf.mxu0
      %2238 = vmatprep.mubr.bf16.mxu0 0
      %2239 = vmatmul.mubr.bf16.gmra.mxu0 %v1816
      %v2240 = vpop.f32.mrf.mxu0
      %v2241 = vadd.f32 0.0, %v2240
      %v2242 = vpop.f32.mrf.mxu0
      %v2243 = vpop.f32.mrf.mxu0
      %v2244 = vadd.f32 0.0, %v2243
      %v2245 = vpop.f32.mrf.mxu0
      %2246 = vmatprep.mubr.bf16.mxu0 0
      %2247 = vmatmul.mubr.bf16.gmra.mxu0 %v1819
      %v2248 = vpop.f32.mrf.mxu0
      %v2249 = vadd.f32 0.0, %v2248
      %v2250 = vpop.f32.mrf.mxu0
      %v2251 = vpop.f32.mrf.mxu0
      %v2252 = vadd.f32 0.0, %v2251
      %v2253 = vpop.f32.mrf.mxu0
      %2254 = vmatprep.mubr.bf16.mxu0 0
      %2255 = vmatmul.mubr.bf16.gmra.mxu0 %v1822
      %v2256 = vpop.f32.mrf.mxu0
      %v2257 = vadd.f32 0.0, %v2256
      %v2258 = vpop.f32.mrf.mxu0
      %v2259 = vpop.f32.mrf.mxu0
      %v2260 = vadd.f32 0.0, %v2259
      %v2261 = vpop.f32.mrf.mxu0
      %2262 = vmatprep.mubr.bf16.mxu0 0
      %2263 = vmatmul.mubr.bf16.gmra.mxu0 %v1825
      %v2264 = vpop.f32.mrf.mxu0
      %v2265 = vadd.f32 0.0, %v2264
      %v2266 = vpop.f32.mrf.mxu0
      %v2267 = vpop.f32.mrf.mxu0
      %v2268 = vadd.f32 0.0, %v2267
      %v2269 = vpop.f32.mrf.mxu0
      %2270 = vmatprep.mubr.bf16.mxu0 0
      %2271 = vmatmul.mubr.bf16.gmra.mxu0 %v1828
      %v2272 = vpop.f32.mrf.mxu0
      %v2273 = vadd.f32 0.0, %v2272
      %v2274 = vpop.f32.mrf.mxu0
      %v2275 = vpop.f32.mrf.mxu0
      %v2276 = vadd.f32 0.0, %v2275
      %v2277 = vpop.f32.mrf.mxu0
      %2278 = vmatprep.mubr.bf16.mxu0 0
      %2279 = vmatmul.mubr.bf16.gmra.mxu0 %v1831
      %v2280 = vpop.f32.mrf.mxu0
      %v2281 = vadd.f32 0.0, %v2280
      %v2282 = vpop.f32.mrf.mxu0
      %v2283 = vpop.f32.mrf.mxu0
      %v2284 = vadd.f32 0.0, %v2283
      %v2285 = vpop.f32.mrf.mxu0
      %2286 = vmatprep.mubr.bf16.mxu0 0
      %2287 = vmatmul.mubr.bf16.gmra.mxu0 %v2193
      %v2288 = vpop.f32.mrf.mxu0
      %v2289 = vadd.f32 0.0, %v2288
      %v2290 = vpop.f32.mrf.mxu0
      %v2291 = vpop.f32.mrf.mxu0
      %v2292 = vadd.f32 0.0, %v2291
      %v2293 = vpop.f32.mrf.mxu0
      %2294 = vdwg.mxu0
      %v2295 = vadd.f32 %v1933, %v2233
      %v2296 = vadd.f32 %v1934, %v2236
      %v2297 = vadd.f32 %v1935, %v2241
      %v2298 = vadd.f32 %v1936, %v2244
      %v2299 = vadd.f32 %v1937, %v2249
      %v2300 = vadd.f32 %v1938, %v2252
      %v2301 = vadd.f32 %v1939, %v2257
      %v2302 = vadd.f32 %v1940, %v2260
      %v2303 = vadd.f32 %v1941, %v2265
      %v2304 = vadd.f32 %v1942, %v2268
      %v2305 = vadd.f32 %v1943, %v2273
      %v2306 = vadd.f32 %v1944, %v2276
      %v2307 = vadd.f32 %v1945, %v2281
      %v2308 = vadd.f32 %v1946, %v2284
      %v2309 = vadd.f32 %v1947, %v2289
      %v2310 = vadd.f32 %v1948, %v2292
      %s2311 = scalar_lea.vmem %s7, 8
      %v2312 = vld [vmem:[%s2311] sm:$0x3]
      %v2314 = vsel %vm769, %v2312, 0
      %2316 = vmatprep.subr.bf16.mxu0 0
      %2317 = vmatpush1.bf16.msra.mxu0 0
      %2318 = vmatprep.subr.bf16.mxu0 0
      %2319 = vmatpush1.bf16.msra.mxu0 0
      %2320 = vmatprep.subr.bf16.mxu0 0
      %2321 = vmatpush1.bf16.msra.mxu0 0
      %2322 = vmatprep.subr.bf16.mxu0 0
      %2323 = vmatpush1.bf16.msra.mxu0 0
      %2324 = vmatprep.subr.bf16.mxu0 0
      %2325 = vmatpush1.bf16.msra.mxu0 0
      %2326 = vmatprep.subr.bf16.mxu0 0
      %2327 = vmatpush1.bf16.msra.mxu0 0
      %2328 = vmatprep.subr.bf16.mxu0 0
      %2329 = vmatpush1.bf16.msra.mxu0 0
      %2330 = vmatprep.subr.bf16.mxu0 0
      %2331 = vmatpush1.bf16.msra.mxu0 %v2314
      %2332 = vmatprep.subr.bf16.mxu0 0
      %2333 = vmatpush2.bf16.msra.mxu0 0
      %2334 = vmatprep.subr.bf16.mxu0 0
      %2335 = vmatpush2.bf16.msra.mxu0 0
      %2336 = vmatprep.subr.bf16.mxu0 0
      %2337 = vmatpush2.bf16.msra.mxu0 0
      %2338 = vmatprep.subr.bf16.mxu0 0
      %2339 = vmatpush2.bf16.msra.mxu0 0
      %2340 = vmatprep.subr.bf16.mxu0 0
      %2341 = vmatpush2.bf16.msra.mxu0 0
      %2342 = vmatprep.subr.bf16.mxu0 0
      %2343 = vmatpush2.bf16.msra.mxu0 0
      %2344 = vmatprep.subr.bf16.mxu0 0
      %2345 = vmatpush2.bf16.msra.mxu0 0
      %2346 = vmatprep.subr.bf16.mxu0 0
      %2347 = vmatpush2.bf16.msra.mxu0 0
      %2348 = vmatprep.mubr.bf16.mxu0 0
      %2349 = vmatmul.mubr.bf16.gmra.mxu0 %v1813
      %v2350 = vpop.f32.mrf.mxu0
      %v2351 = vadd.f32 0.0, %v2350
      %v2352 = vpop.f32.mrf.mxu0
      %v2353 = vpop.f32.mrf.mxu0
      %v2354 = vadd.f32 0.0, %v2353
      %v2355 = vpop.f32.mrf.mxu0
      %2356 = vmatprep.mubr.bf16.mxu0 0
      %2357 = vmatmul.mubr.bf16.gmra.mxu0 %v1816
      %v2358 = vpop.f32.mrf.mxu0
      %v2359 = vadd.f32 0.0, %v2358
      %v2360 = vpop.f32.mrf.mxu0
      %v2361 = vpop.f32.mrf.mxu0
      %v2362 = vadd.f32 0.0, %v2361
      %v2363 = vpop.f32.mrf.mxu0
      %2364 = vmatprep.mubr.bf16.mxu0 0
      %2365 = vmatmul.mubr.bf16.gmra.mxu0 %v1819
      %v2366 = vpop.f32.mrf.mxu0
      %v2367 = vadd.f32 0.0, %v2366
      %v2368 = vpop.f32.mrf.mxu0
      %v2369 = vpop.f32.mrf.mxu0
      %v2370 = vadd.f32 0.0, %v2369
      %v2371 = vpop.f32.mrf.mxu0
      %2372 = vmatprep.mubr.bf16.mxu0 0
      %2373 = vmatmul.mubr.bf16.gmra.mxu0 %v1822
      %v2374 = vpop.f32.mrf.mxu0
      %v2375 = vadd.f32 0.0, %v2374
      %v2376 = vpop.f32.mrf.mxu0
      %v2377 = vpop.f32.mrf.mxu0
      %v2378 = vadd.f32 0.0, %v2377
      %v2379 = vpop.f32.mrf.mxu0
      %2380 = vmatprep.mubr.bf16.mxu0 0
      %2381 = vmatmul.mubr.bf16.gmra.mxu0 %v1825
      %v2382 = vpop.f32.mrf.mxu0
      %v2383 = vadd.f32 0.0, %v2382
      %v2384 = vpop.f32.mrf.mxu0
      %v2385 = vpop.f32.mrf.mxu0
      %v2386 = vadd.f32 0.0, %v2385
      %v2387 = vpop.f32.mrf.mxu0
      %2388 = vmatprep.mubr.bf16.mxu0 0
      %2389 = vmatmul.mubr.bf16.gmra.mxu0 %v1828
      %v2390 = vpop.f32.mrf.mxu0
      %v2391 = vadd.f32 0.0, %v2390
      %v2392 = vpop.f32.mrf.mxu0
      %v2393 = vpop.f32.mrf.mxu0
      %v2394 = vadd.f32 0.0, %v2393
      %v2395 = vpop.f32.mrf.mxu0
      %2396 = vmatprep.mubr.bf16.mxu0 0
      %2397 = vmatmul.mubr.bf16.gmra.mxu0 %v1831
      %v2398 = vpop.f32.mrf.mxu0
      %v2399 = vadd.f32 0.0, %v2398
      %v2400 = vpop.f32.mrf.mxu0
      %v2401 = vpop.f32.mrf.mxu0
      %v2402 = vadd.f32 0.0, %v2401
      %v2403 = vpop.f32.mrf.mxu0
      %2404 = vmatprep.mubr.bf16.mxu0 0
      %2405 = vmatmul.mubr.bf16.gmra.mxu0 %v2193
      %v2406 = vpop.f32.mrf.mxu0
      %v2407 = vadd.f32 0.0, %v2406
      %v2408 = vpop.f32.mrf.mxu0
      %v2409 = vpop.f32.mrf.mxu0
      %v2410 = vadd.f32 0.0, %v2409
      %v2411 = vpop.f32.mrf.mxu0
      %2412 = vdwg.mxu0
      %v2413 = vadd.f32 %v2051, %v2351
      %v2414 = vadd.f32 %v2052, %v2354
      %v2415 = vadd.f32 %v2053, %v2359
      %v2416 = vadd.f32 %v2054, %v2362
      %v2417 = vadd.f32 %v2055, %v2367
      %v2418 = vadd.f32 %v2056, %v2370
      %v2419 = vadd.f32 %v2057, %v2375
      %v2420 = vadd.f32 %v2058, %v2378
      %v2421 = vadd.f32 %v2059, %v2383
      %v2422 = vadd.f32 %v2060, %v2386
      %v2423 = vadd.f32 %v2061, %v2391
      %v2424 = vadd.f32 %v2062, %v2394
      %v2425 = vadd.f32 %v2063, %v2399
      %v2426 = vadd.f32 %v2064, %v2402
      %v2427 = vadd.f32 %v2065, %v2407
      %v2428 = vadd.f32 %v2066, %v2410
      %s2429 = scalar_lea.vmem %s7, 10
      %v2430 = vld [vmem:[%s2429] sm:$0x3]
      %v2432 = vsel %vm769, %v2430, 0
      %2434 = vmatprep.subr.bf16.mxu0 0
      %2435 = vmatpush1.bf16.msra.mxu0 0
      %2436 = vmatprep.subr.bf16.mxu0 0
      %2437 = vmatpush1.bf16.msra.mxu0 0
      %2438 = vmatprep.subr.bf16.mxu0 0
      %2439 = vmatpush1.bf16.msra.mxu0 0
      %2440 = vmatprep.subr.bf16.mxu0 0
      %2441 = vmatpush1.bf16.msra.mxu0 0
      %2442 = vmatprep.subr.bf16.mxu0 0
      %2443 = vmatpush1.bf16.msra.mxu0 0
      %2444 = vmatprep.subr.bf16.mxu0 0
      %2445 = vmatpush1.bf16.msra.mxu0 0
      %2446 = vmatprep.subr.bf16.mxu0 0
      %2447 = vmatpush1.bf16.msra.mxu0 0
      %2448 = vmatprep.subr.bf16.mxu0 0
      %2449 = vmatpush1.bf16.msra.mxu0 %v2432
      %2450 = vmatprep.subr.bf16.mxu0 0
      %2451 = vmatpush2.bf16.msra.mxu0 0
      %2452 = vmatprep.subr.bf16.mxu0 0
      %2453 = vmatpush2.bf16.msra.mxu0 0
      %2454 = vmatprep.subr.bf16.mxu0 0
      %2455 = vmatpush2.bf16.msra.mxu0 0
      %2456 = vmatprep.subr.bf16.mxu0 0
      %2457 = vmatpush2.bf16.msra.mxu0 0
      %2458 = vmatprep.subr.bf16.mxu0 0
      %2459 = vmatpush2.bf16.msra.mxu0 0
      %2460 = vmatprep.subr.bf16.mxu0 0
      %2461 = vmatpush2.bf16.msra.mxu0 0
      %2462 = vmatprep.subr.bf16.mxu0 0
      %2463 = vmatpush2.bf16.msra.mxu0 0
      %2464 = vmatprep.subr.bf16.mxu0 0
      %2465 = vmatpush2.bf16.msra.mxu0 0
      %2466 = vmatprep.mubr.bf16.mxu0 0
      %2467 = vmatmul.mubr.bf16.gmra.mxu0 %v1813
      %v2468 = vpop.f32.mrf.mxu0
      %v2469 = vadd.f32 0.0, %v2468
      %v2470 = vpop.f32.mrf.mxu0
      %v2471 = vpop.f32.mrf.mxu0
      %v2472 = vadd.f32 0.0, %v2471
      %v2473 = vpop.f32.mrf.mxu0
      %2474 = vmatprep.mubr.bf16.mxu0 0
      %2475 = vmatmul.mubr.bf16.gmra.mxu0 %v1816
      %v2476 = vpop.f32.mrf.mxu0
      %v2477 = vadd.f32 0.0, %v2476
      %v2478 = vpop.f32.mrf.mxu0
      %v2479 = vpop.f32.mrf.mxu0
      %v2480 = vadd.f32 0.0, %v2479
      %v2481 = vpop.f32.mrf.mxu0
      %2482 = vmatprep.mubr.bf16.mxu0 0
      %2483 = vmatmul.mubr.bf16.gmra.mxu0 %v1819
      %v2484 = vpop.f32.mrf.mxu0
      %v2485 = vadd.f32 0.0, %v2484
      %v2486 = vpop.f32.mrf.mxu0
      %v2487 = vpop.f32.mrf.mxu0
      %v2488 = vadd.f32 0.0, %v2487
      %v2489 = vpop.f32.mrf.mxu0
      %2490 = vmatprep.mubr.bf16.mxu0 0
      %2491 = vmatmul.mubr.bf16.gmra.mxu0 %v1822
      %v2492 = vpop.f32.mrf.mxu0
      %v2493 = vadd.f32 0.0, %v2492
      %v2494 = vpop.f32.mrf.mxu0
      %v2495 = vpop.f32.mrf.mxu0
      %v2496 = vadd.f32 0.0, %v2495
      %v2497 = vpop.f32.mrf.mxu0
      %2498 = vmatprep.mubr.bf16.mxu0 0
      %2499 = vmatmul.mubr.bf16.gmra.mxu0 %v1825
      %v2500 = vpop.f32.mrf.mxu0
      %v2501 = vadd.f32 0.0, %v2500
      %v2502 = vpop.f32.mrf.mxu0
      %v2503 = vpop.f32.mrf.mxu0
      %v2504 = vadd.f32 0.0, %v2503
      %v2505 = vpop.f32.mrf.mxu0
      %2506 = vmatprep.mubr.bf16.mxu0 0
      %2507 = vmatmul.mubr.bf16.gmra.mxu0 %v1828
      %v2508 = vpop.f32.mrf.mxu0
      %v2509 = vadd.f32 0.0, %v2508
      %v2510 = vpop.f32.mrf.mxu0
      %v2511 = vpop.f32.mrf.mxu0
      %v2512 = vadd.f32 0.0, %v2511
      %v2513 = vpop.f32.mrf.mxu0
      %2514 = vmatprep.mubr.bf16.mxu0 0
      %2515 = vmatmul.mubr.bf16.gmra.mxu0 %v1831
      %v2516 = vpop.f32.mrf.mxu0
      %v2517 = vadd.f32 0.0, %v2516
      %v2518 = vpop.f32.mrf.mxu0
      %v2519 = vpop.f32.mrf.mxu0
      %v2520 = vadd.f32 0.0, %v2519
      %v2521 = vpop.f32.mrf.mxu0
      %2522 = vmatprep.mubr.bf16.mxu0 0
      %2523 = vmatmul.mubr.bf16.gmra.mxu0 %v2193
      %v2524 = vpop.f32.mrf.mxu0
      %v2525 = vadd.f32 0.0, %v2524
      %v2526 = vpop.f32.mrf.mxu0
      %v2527 = vpop.f32.mrf.mxu0
      %v2528 = vadd.f32 0.0, %v2527
      %v2529 = vpop.f32.mrf.mxu0
      %2530 = vdwg.mxu0
      %v2531 = vadd.f32 %v2169, %v2469
      %v2532 = vadd.f32 %v2170, %v2472
      %v2533 = vadd.f32 %v2171, %v2477
      %v2534 = vadd.f32 %v2172, %v2480
      %v2535 = vadd.f32 %v2173, %v2485
      %v2536 = vadd.f32 %v2174, %v2488
      %v2537 = vadd.f32 %v2175, %v2493
      %v2538 = vadd.f32 %v2176, %v2496
      %v2539 = vadd.f32 %v2177, %v2501
      %v2540 = vadd.f32 %v2178, %v2504
      %v2541 = vadd.f32 %v2179, %v2509
      %v2542 = vadd.f32 %v2180, %v2512
      %v2543 = vadd.f32 %v2181, %v2517
      %v2544 = vadd.f32 %v2182, %v2520
      %v2545 = vadd.f32 %v2183, %v2525
      %v2546 = vadd.f32 %v2184, %v2528
      %s2547 = scalar_lea.vmem %s7, 12
      %v2548 = vld [vmem:[%s2547] sm:$0x3]
      %v2551 = vunpack.c.l.b16 %v1766
      %v2552 = vunpack.c.l.b16 %v1767
      %v2553 = vpack.c.b16 %v2552, %v2551
      %v2555 = vsel %vm744, %v2553, 0
      %v2558 = vsel %vm769, %v2548, 0
      %2560 = vmatprep.subr.bf16.mxu0 0
      %2561 = vmatpush1.bf16.msra.mxu0 0
      %2562 = vmatprep.subr.bf16.mxu0 0
      %2563 = vmatpush1.bf16.msra.mxu0 0
      %2564 = vmatprep.subr.bf16.mxu0 0
      %2565 = vmatpush1.bf16.msra.mxu0 0
      %2566 = vmatprep.subr.bf16.mxu0 0
      %2567 = vmatpush1.bf16.msra.mxu0 0
      %2568 = vmatprep.subr.bf16.mxu0 0
      %2569 = vmatpush1.bf16.msra.mxu0 0
      %2570 = vmatprep.subr.bf16.mxu0 0
      %2571 = vmatpush1.bf16.msra.mxu0 0
      %2572 = vmatprep.subr.bf16.mxu0 0
      %2573 = vmatpush1.bf16.msra.mxu0 0
      %2574 = vmatprep.subr.bf16.mxu0 0
      %2575 = vmatpush1.bf16.msra.mxu0 %v2558
      %2576 = vmatprep.subr.bf16.mxu0 0
      %2577 = vmatpush2.bf16.msra.mxu0 0
      %2578 = vmatprep.subr.bf16.mxu0 0
      %2579 = vmatpush2.bf16.msra.mxu0 0
      %2580 = vmatprep.subr.bf16.mxu0 0
      %2581 = vmatpush2.bf16.msra.mxu0 0
      %2582 = vmatprep.subr.bf16.mxu0 0
      %2583 = vmatpush2.bf16.msra.mxu0 0
      %2584 = vmatprep.subr.bf16.mxu0 0
      %2585 = vmatpush2.bf16.msra.mxu0 0
      %2586 = vmatprep.subr.bf16.mxu0 0
      %2587 = vmatpush2.bf16.msra.mxu0 0
      %2588 = vmatprep.subr.bf16.mxu0 0
      %2589 = vmatpush2.bf16.msra.mxu0 0
      %2590 = vmatprep.subr.bf16.mxu0 0
      %2591 = vmatpush2.bf16.msra.mxu0 0
      %2592 = vmatprep.mubr.bf16.mxu0 0
      %2593 = vmatmul.mubr.bf16.gmra.mxu0 %v1816
      %v2594 = vpop.f32.mrf.mxu0
      %v2595 = vadd.f32 0.0, %v2594
      %v2596 = vpop.f32.mrf.mxu0
      %v2597 = vpop.f32.mrf.mxu0
      %v2598 = vadd.f32 0.0, %v2597
      %v2599 = vpop.f32.mrf.mxu0
      %2600 = vmatprep.mubr.bf16.mxu0 0
      %2601 = vmatmul.mubr.bf16.gmra.mxu0 %v1819
      %v2602 = vpop.f32.mrf.mxu0
      %v2603 = vadd.f32 0.0, %v2602
      %v2604 = vpop.f32.mrf.mxu0
      %v2605 = vpop.f32.mrf.mxu0
      %v2606 = vadd.f32 0.0, %v2605
      %v2607 = vpop.f32.mrf.mxu0
      %2608 = vmatprep.mubr.bf16.mxu0 0
      %2609 = vmatmul.mubr.bf16.gmra.mxu0 %v1822
      %v2610 = vpop.f32.mrf.mxu0
      %v2611 = vadd.f32 0.0, %v2610
      %v2612 = vpop.f32.mrf.mxu0
      %v2613 = vpop.f32.mrf.mxu0
      %v2614 = vadd.f32 0.0, %v2613
      %v2615 = vpop.f32.mrf.mxu0
      %2616 = vmatprep.mubr.bf16.mxu0 0
      %2617 = vmatmul.mubr.bf16.gmra.mxu0 %v1825
      %v2618 = vpop.f32.mrf.mxu0
      %v2619 = vadd.f32 0.0, %v2618
      %v2620 = vpop.f32.mrf.mxu0
      %v2621 = vpop.f32.mrf.mxu0
      %v2622 = vadd.f32 0.0, %v2621
      %v2623 = vpop.f32.mrf.mxu0
      %2624 = vmatprep.mubr.bf16.mxu0 0
      %2625 = vmatmul.mubr.bf16.gmra.mxu0 %v1828
      %v2626 = vpop.f32.mrf.mxu0
      %v2627 = vadd.f32 0.0, %v2626
      %v2628 = vpop.f32.mrf.mxu0
      %v2629 = vpop.f32.mrf.mxu0
      %v2630 = vadd.f32 0.0, %v2629
      %v2631 = vpop.f32.mrf.mxu0
      %2632 = vmatprep.mubr.bf16.mxu0 0
      %2633 = vmatmul.mubr.bf16.gmra.mxu0 %v1831
      %v2634 = vpop.f32.mrf.mxu0
      %v2635 = vadd.f32 0.0, %v2634
      %v2636 = vpop.f32.mrf.mxu0
      %v2637 = vpop.f32.mrf.mxu0
      %v2638 = vadd.f32 0.0, %v2637
      %v2639 = vpop.f32.mrf.mxu0
      %2640 = vmatprep.mubr.bf16.mxu0 0
      %2641 = vmatmul.mubr.bf16.gmra.mxu0 %v2193
      %v2642 = vpop.f32.mrf.mxu0
      %v2643 = vadd.f32 0.0, %v2642
      %v2644 = vpop.f32.mrf.mxu0
      %v2645 = vpop.f32.mrf.mxu0
      %v2646 = vadd.f32 0.0, %v2645
      %v2647 = vpop.f32.mrf.mxu0
      %2648 = vmatprep.mubr.bf16.mxu0 0
      %2649 = vmatmul.mubr.bf16.gmra.mxu0 %v2555
      %v2650 = vpop.f32.mrf.mxu0
      %v2651 = vadd.f32 0.0, %v2650
      %v2652 = vpop.f32.mrf.mxu0
      %v2653 = vpop.f32.mrf.mxu0
      %v2654 = vadd.f32 0.0, %v2653
      %v2655 = vpop.f32.mrf.mxu0
      %2656 = vdwg.mxu0
      %v2657 = vadd.f32 %v2295, %v2595
      %v2658 = vadd.f32 %v2296, %v2598
      %v2659 = vadd.f32 %v2297, %v2603
      %v2660 = vadd.f32 %v2298, %v2606
      %v2661 = vadd.f32 %v2299, %v2611
      %v2662 = vadd.f32 %v2300, %v2614
      %v2663 = vadd.f32 %v2301, %v2619
      %v2664 = vadd.f32 %v2302, %v2622
      %v2665 = vadd.f32 %v2303, %v2627
      %v2666 = vadd.f32 %v2304, %v2630
      %v2667 = vadd.f32 %v2305, %v2635
      %v2668 = vadd.f32 %v2306, %v2638
      %v2669 = vadd.f32 %v2307, %v2643
      %v2670 = vadd.f32 %v2308, %v2646
      %v2671 = vadd.f32 %v2309, %v2651
      %v2672 = vadd.f32 %v2310, %v2654
      %s2673 = scalar_lea.vmem %s7, 14
      %v2674 = vld [vmem:[%s2673] sm:$0x3]
      %v2676 = vsel %vm769, %v2674, 0
      %2678 = vmatprep.subr.bf16.mxu0 0
      %2679 = vmatpush1.bf16.msra.mxu0 0
      %2680 = vmatprep.subr.bf16.mxu0 0
      %2681 = vmatpush1.bf16.msra.mxu0 0
      %2682 = vmatprep.subr.bf16.mxu0 0
      %2683 = vmatpush1.bf16.msra.mxu0 0
      %2684 = vmatprep.subr.bf16.mxu0 0
      %2685 = vmatpush1.bf16.msra.mxu0 0
      %2686 = vmatprep.subr.bf16.mxu0 0
      %2687 = vmatpush1.bf16.msra.mxu0 0
      %2688 = vmatprep.subr.bf16.mxu0 0
      %2689 = vmatpush1.bf16.msra.mxu0 0
      %2690 = vmatprep.subr.bf16.mxu0 0
      %2691 = vmatpush1.bf16.msra.mxu0 0
      %2692 = vmatprep.subr.bf16.mxu0 0
      %2693 = vmatpush1.bf16.msra.mxu0 %v2676
      %2694 = vmatprep.subr.bf16.mxu0 0
      %2695 = vmatpush2.bf16.msra.mxu0 0
      %2696 = vmatprep.subr.bf16.mxu0 0
      %2697 = vmatpush2.bf16.msra.mxu0 0
      %2698 = vmatprep.subr.bf16.mxu0 0
      %2699 = vmatpush2.bf16.msra.mxu0 0
      %2700 = vmatprep.subr.bf16.mxu0 0
      %2701 = vmatpush2.bf16.msra.mxu0 0
      %2702 = vmatprep.subr.bf16.mxu0 0
      %2703 = vmatpush2.bf16.msra.mxu0 0
      %2704 = vmatprep.subr.bf16.mxu0 0
      %2705 = vmatpush2.bf16.msra.mxu0 0
      %2706 = vmatprep.subr.bf16.mxu0 0
      %2707 = vmatpush2.bf16.msra.mxu0 0
      %2708 = vmatprep.subr.bf16.mxu0 0
      %2709 = vmatpush2.bf16.msra.mxu0 0
      %2710 = vmatprep.mubr.bf16.mxu0 0
      %2711 = vmatmul.mubr.bf16.gmra.mxu0 %v1816
      %v2712 = vpop.f32.mrf.mxu0
      %v2713 = vadd.f32 0.0, %v2712
      %v2714 = vpop.f32.mrf.mxu0
      %v2715 = vpop.f32.mrf.mxu0
      %v2716 = vadd.f32 0.0, %v2715
      %v2717 = vpop.f32.mrf.mxu0
      %2718 = vmatprep.mubr.bf16.mxu0 0
      %2719 = vmatmul.mubr.bf16.gmra.mxu0 %v1819
      %v2720 = vpop.f32.mrf.mxu0
      %v2721 = vadd.f32 0.0, %v2720
      %v2722 = vpop.f32.mrf.mxu0
      %v2723 = vpop.f32.mrf.mxu0
      %v2724 = vadd.f32 0.0, %v2723
      %v2725 = vpop.f32.mrf.mxu0
      %2726 = vmatprep.mubr.bf16.mxu0 0
      %2727 = vmatmul.mubr.bf16.gmra.mxu0 %v1822
      %v2728 = vpop.f32.mrf.mxu0
      %v2729 = vadd.f32 0.0, %v2728
      %v2730 = vpop.f32.mrf.mxu0
      %v2731 = vpop.f32.mrf.mxu0
      %v2732 = vadd.f32 0.0, %v2731
      %v2733 = vpop.f32.mrf.mxu0
      %2734 = vmatprep.mubr.bf16.mxu0 0
      %2735 = vmatmul.mubr.bf16.gmra.mxu0 %v1825
      %v2736 = vpop.f32.mrf.mxu0
      %v2737 = vadd.f32 0.0, %v2736
      %v2738 = vpop.f32.mrf.mxu0
      %v2739 = vpop.f32.mrf.mxu0
      %v2740 = vadd.f32 0.0, %v2739
      %v2741 = vpop.f32.mrf.mxu0
      %2742 = vmatprep.mubr.bf16.mxu0 0
      %2743 = vmatmul.mubr.bf16.gmra.mxu0 %v1828
      %v2744 = vpop.f32.mrf.mxu0
      %v2745 = vadd.f32 0.0, %v2744
      %v2746 = vpop.f32.mrf.mxu0
      %v2747 = vpop.f32.mrf.mxu0
      %v2748 = vadd.f32 0.0, %v2747
      %v2749 = vpop.f32.mrf.mxu0
      %2750 = vmatprep.mubr.bf16.mxu0 0
      %2751 = vmatmul.mubr.bf16.gmra.mxu0 %v1831
      %v2752 = vpop.f32.mrf.mxu0
      %v2753 = vadd.f32 0.0, %v2752
      %v2754 = vpop.f32.mrf.mxu0
      %v2755 = vpop.f32.mrf.mxu0
      %v2756 = vadd.f32 0.0, %v2755
      %v2757 = vpop.f32.mrf.mxu0
      %2758 = vmatprep.mubr.bf16.mxu0 0
      %2759 = vmatmul.mubr.bf16.gmra.mxu0 %v2193
      %v2760 = vpop.f32.mrf.mxu0
      %v2761 = vadd.f32 0.0, %v2760
      %v2762 = vpop.f32.mrf.mxu0
      %v2763 = vpop.f32.mrf.mxu0
      %v2764 = vadd.f32 0.0, %v2763
      %v2765 = vpop.f32.mrf.mxu0
      %2766 = vmatprep.mubr.bf16.mxu0 0
      %2767 = vmatmul.mubr.bf16.gmra.mxu0 %v2555
      %v2768 = vpop.f32.mrf.mxu0
      %v2769 = vadd.f32 0.0, %v2768
      %v2770 = vpop.f32.mrf.mxu0
      %v2771 = vpop.f32.mrf.mxu0
      %v2772 = vadd.f32 0.0, %v2771
      %v2773 = vpop.f32.mrf.mxu0
      %2774 = vdwg.mxu0
      %v2775 = vadd.f32 %v2413, %v2713
      %v2776 = vadd.f32 %v2414, %v2716
      %v2777 = vadd.f32 %v2415, %v2721
      %v2778 = vadd.f32 %v2416, %v2724
      %v2779 = vadd.f32 %v2417, %v2729
      %v2780 = vadd.f32 %v2418, %v2732
      %v2781 = vadd.f32 %v2419, %v2737
      %v2782 = vadd.f32 %v2420, %v2740
      %v2783 = vadd.f32 %v2421, %v2745
      %v2784 = vadd.f32 %v2422, %v2748
      %v2785 = vadd.f32 %v2423, %v2753
      %v2786 = vadd.f32 %v2424, %v2756
      %v2787 = vadd.f32 %v2425, %v2761
      %v2788 = vadd.f32 %v2426, %v2764
      %v2789 = vadd.f32 %v2427, %v2769
      %v2790 = vadd.f32 %v2428, %v2772
      %s2791 = scalar_lea.vmem %s7, 16
      %v2792 = vld [vmem:[%s2791] sm:$0x3]
      %v2794 = vsel %vm769, %v2792, 0
      %2796 = vmatprep.subr.bf16.mxu0 0
      %2797 = vmatpush1.bf16.msra.mxu0 0
      %2798 = vmatprep.subr.bf16.mxu0 0
      %2799 = vmatpush1.bf16.msra.mxu0 0
      %2800 = vmatprep.subr.bf16.mxu0 0
      %2801 = vmatpush1.bf16.msra.mxu0 0
      %2802 = vmatprep.subr.bf16.mxu0 0
      %2803 = vmatpush1.bf16.msra.mxu0 0
      %2804 = vmatprep.subr.bf16.mxu0 0
      %2805 = vmatpush1.bf16.msra.mxu0 0
      %2806 = vmatprep.subr.bf16.mxu0 0
      %2807 = vmatpush1.bf16.msra.mxu0 0
      %2808 = vmatprep.subr.bf16.mxu0 0
      %2809 = vmatpush1.bf16.msra.mxu0 0
      %2810 = vmatprep.subr.bf16.mxu0 0
      %2811 = vmatpush1.bf16.msra.mxu0 %v2794
      %2812 = vmatprep.subr.bf16.mxu0 0
      %2813 = vmatpush2.bf16.msra.mxu0 0
      %2814 = vmatprep.subr.bf16.mxu0 0
      %2815 = vmatpush2.bf16.msra.mxu0 0
      %2816 = vmatprep.subr.bf16.mxu0 0
      %2817 = vmatpush2.bf16.msra.mxu0 0
      %2818 = vmatprep.subr.bf16.mxu0 0
      %2819 = vmatpush2.bf16.msra.mxu0 0
      %2820 = vmatprep.subr.bf16.mxu0 0
      %2821 = vmatpush2.bf16.msra.mxu0 0
      %2822 = vmatprep.subr.bf16.mxu0 0
      %2823 = vmatpush2.bf16.msra.mxu0 0
      %2824 = vmatprep.subr.bf16.mxu0 0
      %2825 = vmatpush2.bf16.msra.mxu0 0
      %2826 = vmatprep.subr.bf16.mxu0 0
      %2827 = vmatpush2.bf16.msra.mxu0 0
      %2828 = vmatprep.mubr.bf16.mxu0 0
      %2829 = vmatmul.mubr.bf16.gmra.mxu0 %v1816
      %v2830 = vpop.f32.mrf.mxu0
      %v2831 = vadd.f32 0.0, %v2830
      %v2832 = vpop.f32.mrf.mxu0
      %v2833 = vpop.f32.mrf.mxu0
      %v2834 = vadd.f32 0.0, %v2833
      %v2835 = vpop.f32.mrf.mxu0
      %2836 = vmatprep.mubr.bf16.mxu0 0
      %2837 = vmatmul.mubr.bf16.gmra.mxu0 %v1819
      %v2838 = vpop.f32.mrf.mxu0
      %v2839 = vadd.f32 0.0, %v2838
      %v2840 = vpop.f32.mrf.mxu0
      %v2841 = vpop.f32.mrf.mxu0
      %v2842 = vadd.f32 0.0, %v2841
      %v2843 = vpop.f32.mrf.mxu0
      %2844 = vmatprep.mubr.bf16.mxu0 0
      %2845 = vmatmul.mubr.bf16.gmra.mxu0 %v1822
      %v2846 = vpop.f32.mrf.mxu0
      %v2847 = vadd.f32 0.0, %v2846
      %v2848 = vpop.f32.mrf.mxu0
      %v2849 = vpop.f32.mrf.mxu0
      %v2850 = vadd.f32 0.0, %v2849
      %v2851 = vpop.f32.mrf.mxu0
      %2852 = vmatprep.mubr.bf16.mxu0 0
      %2853 = vmatmul.mubr.bf16.gmra.mxu0 %v1825
      %v2854 = vpop.f32.mrf.mxu0
      %v2855 = vadd.f32 0.0, %v2854
      %v2856 = vpop.f32.mrf.mxu0
      %v2857 = vpop.f32.mrf.mxu0
      %v2858 = vadd.f32 0.0, %v2857
      %v2859 = vpop.f32.mrf.mxu0
      %2860 = vmatprep.mubr.bf16.mxu0 0
      %2861 = vmatmul.mubr.bf16.gmra.mxu0 %v1828
      %v2862 = vpop.f32.mrf.mxu0
      %v2863 = vadd.f32 0.0, %v2862
      %v2864 = vpop.f32.mrf.mxu0
      %v2865 = vpop.f32.mrf.mxu0
      %v2866 = vadd.f32 0.0, %v2865
      %v2867 = vpop.f32.mrf.mxu0
      %2868 = vmatprep.mubr.bf16.mxu0 0
      %2869 = vmatmul.mubr.bf16.gmra.mxu0 %v1831
      %v2870 = vpop.f32.mrf.mxu0
      %v2871 = vadd.f32 0.0, %v2870
      %v2872 = vpop.f32.mrf.mxu0
      %v2873 = vpop.f32.mrf.mxu0
      %v2874 = vadd.f32 0.0, %v2873
      %v2875 = vpop.f32.mrf.mxu0
      %2876 = vmatprep.mubr.bf16.mxu0 0
      %2877 = vmatmul.mubr.bf16.gmra.mxu0 %v2193
      %v2878 = vpop.f32.mrf.mxu0
      %v2879 = vadd.f32 0.0, %v2878
      %v2880 = vpop.f32.mrf.mxu0
      %v2881 = vpop.f32.mrf.mxu0
      %v2882 = vadd.f32 0.0, %v2881
      %v2883 = vpop.f32.mrf.mxu0
      %2884 = vmatprep.mubr.bf16.mxu0 0
      %2885 = vmatmul.mubr.bf16.gmra.mxu0 %v2555
      %v2886 = vpop.f32.mrf.mxu0
      %v2887 = vadd.f32 0.0, %v2886
      %v2888 = vpop.f32.mrf.mxu0
      %v2889 = vpop.f32.mrf.mxu0
      %v2890 = vadd.f32 0.0, %v2889
      %v2891 = vpop.f32.mrf.mxu0
      %2892 = vdwg.mxu0
      %v2893 = vadd.f32 %v2531, %v2831
      %v2894 = vadd.f32 %v2532, %v2834
      %v2895 = vadd.f32 %v2533, %v2839
      %v2896 = vadd.f32 %v2534, %v2842
      %v2897 = vadd.f32 %v2535, %v2847
      %v2898 = vadd.f32 %v2536, %v2850
      %v2899 = vadd.f32 %v2537, %v2855
      %v2900 = vadd.f32 %v2538, %v2858
      %v2901 = vadd.f32 %v2539, %v2863
      %v2902 = vadd.f32 %v2540, %v2866
      %v2903 = vadd.f32 %v2541, %v2871
      %v2904 = vadd.f32 %v2542, %v2874
      %v2905 = vadd.f32 %v2543, %v2879
      %v2906 = vadd.f32 %v2544, %v2882
      %v2907 = vadd.f32 %v2545, %v2887
      %v2908 = vadd.f32 %v2546, %v2890
      %vm2909 = vcmask 24576
      %2910 = vst.msk [vmem:[#allocation2] sm:$0x1] %vm2909, 0.0
      %2911 = vst.msk [vmem:[#allocation2 + $0x18] sm:$0x1] %vm2909, 0.0
      %2912 = vst.msk [vmem:[#allocation2 + $0x30] sm:$0x1] %vm2909, 0.0
      %2913 = vst.msk [vmem:[#allocation2 + $0x48] sm:$0x1] %vm2909, 0.0
      %2914 = vst.msk [vmem:[#allocation2 + $0x60] sm:$0x1] %vm2909, 0.0
      %2915 = vst.msk [vmem:[#allocation2 + $0x78] sm:$0x1] %vm2909, 0.0
      %2916 = vst.msk [vmem:[#allocation2 + $0x90] sm:$0x1] %vm2909, 0.0
      %2917 = vst.msk [vmem:[#allocation2 + $0xa8] sm:$0x1] %vm2909, 0.0
      %2918 = vst.msk [vmem:[#allocation2 + $0x1] sm:$0xff] %vm744, %v2657
      %2919 = vst.msk [vmem:[#allocation2 + $0x9] sm:$0xff] %vm744, %v2658
      %2920 = vst.msk [vmem:[#allocation2 + $0x19] sm:$0xff] %vm744, %v2659
      %2921 = vst.msk [vmem:[#allocation2 + $0x21] sm:$0xff] %vm744, %v2660
      %2922 = vst.msk [vmem:[#allocation2 + $0x31] sm:$0xff] %vm744, %v2661
      %2923 = vst.msk [vmem:[#allocation2 + $0x39] sm:$0xff] %vm744, %v2662
      %2924 = vst.msk [vmem:[#allocation2 + $0x49] sm:$0xff] %vm744, %v2663
      %2925 = vst.msk [vmem:[#allocation2 + $0x51] sm:$0xff] %vm744, %v2664
      %2926 = vst.msk [vmem:[#allocation2 + $0x61] sm:$0xff] %vm744, %v2665
      %2927 = vst.msk [vmem:[#allocation2 + $0x69] sm:$0xff] %vm744, %v2666
      %2928 = vst.msk [vmem:[#allocation2 + $0x79] sm:$0xff] %vm744, %v2667
      %2929 = vst.msk [vmem:[#allocation2 + $0x81] sm:$0xff] %vm744, %v2668
      %2930 = vst.msk [vmem:[#allocation2 + $0x91] sm:$0xff] %vm744, %v2669
      %2931 = vst.msk [vmem:[#allocation2 + $0x99] sm:$0xff] %vm744, %v2670
      %2932 = vst.msk [vmem:[#allocation2 + $0xa9] sm:$0xff] %vm744, %v2671
      %2933 = vst.msk [vmem:[#allocation2 + $0xb1] sm:$0xff] %vm744, %v2672
      %s2934 = scalar_lea.vmem [#allocation2], 192
      %2935 = vst.msk [vmem:[%s2934 + $0x1] sm:$0xff] %vm744, %v2893
      %2936 = vst.msk [vmem:[%s2934 + $0x9] sm:$0xff] %vm744, %v2894
      %2937 = vst.msk [vmem:[%s2934 + $0x19] sm:$0xff] %vm744, %v2895
      %2938 = vst.msk [vmem:[%s2934 + $0x21] sm:$0xff] %vm744, %v2896
      %2939 = vst.msk [vmem:[%s2934 + $0x31] sm:$0xff] %vm744, %v2897
      %2940 = vst.msk [vmem:[%s2934 + $0x39] sm:$0xff] %vm744, %v2898
      %2941 = vst.msk [vmem:[%s2934 + $0x49] sm:$0xff] %vm744, %v2899
      %2942 = vst.msk [vmem:[%s2934 + $0x51] sm:$0xff] %vm744, %v2900
      %2943 = vst.msk [vmem:[%s2934 + $0x61] sm:$0xff] %vm744, %v2901
      %2944 = vst.msk [vmem:[%s2934 + $0x69] sm:$0xff] %vm744, %v2902
      %2945 = vst.msk [vmem:[%s2934 + $0x79] sm:$0xff] %vm744, %v2903
      %2946 = vst.msk [vmem:[%s2934 + $0x81] sm:$0xff] %vm744, %v2904
      %2947 = vst.msk [vmem:[%s2934 + $0x91] sm:$0xff] %vm744, %v2905
      %2948 = vst.msk [vmem:[%s2934 + $0x99] sm:$0xff] %vm744, %v2906
      %2949 = vst.msk [vmem:[%s2934 + $0xa9] sm:$0xff] %vm744, %v2907
      %2950 = vst.msk [vmem:[%s2934 + $0xb1] sm:$0xff] %vm744, %v2908
      %2951 = vst.msk [vmem:[%s2934 + $0x11] sm:$0x1] %vm2909, 0.0
      %2952 = vst.msk [vmem:[%s2934 + $0x29] sm:$0x1] %vm2909, 0.0
      %2953 = vst.msk [vmem:[%s2934 + $0x41] sm:$0x1] %vm2909, 0.0
      %2954 = vst.msk [vmem:[%s2934 + $0x59] sm:$0x1] %vm2909, 0.0
      %2955 = vst.msk [vmem:[%s2934 + $0x71] sm:$0x1] %vm2909, 0.0
      %2956 = vst.msk [vmem:[%s2934 + $0x89] sm:$0x1] %vm2909, 0.0
      %2957 = vst.msk [vmem:[%s2934 + $0xa1] sm:$0x1] %vm2909, 0.0
      %2958 = vst.msk [vmem:[%s2934 + $0xb9] sm:$0x1] %vm2909, 0.0
      %v2959 = vld [vmem:[#allocation2] sm:$0xff]
      %v2960 = vld [vmem:[#allocation2 + $0x8] sm:$0xff]
      %v2961 = vld [vmem:[#allocation2 + $0x18] sm:$0xff]
      %v2962 = vld [vmem:[#allocation2 + $0x20] sm:$0xff]
      %v2963 = vld [vmem:[#allocation2 + $0x30] sm:$0xff]
      %v2964 = vld [vmem:[#allocation2 + $0x38] sm:$0xff]
      %v2965 = vld [vmem:[#allocation2 + $0x48] sm:$0xff]
      %v2966 = vld [vmem:[#allocation2 + $0x50] sm:$0xff]
      %v2967 = vld [vmem:[#allocation2 + $0x60] sm:$0xff]
      %v2968 = vld [vmem:[#allocation2 + $0x68] sm:$0xff]
      %v2969 = vld [vmem:[#allocation2 + $0x78] sm:$0xff]
      %v2970 = vld [vmem:[#allocation2 + $0x80] sm:$0xff]
      %v2971 = vld [vmem:[#allocation2 + $0x90] sm:$0xff]
      %v2972 = vld [vmem:[#allocation2 + $0x98] sm:$0xff]
      %v2973 = vld [vmem:[#allocation2 + $0xa8] sm:$0xff]
      %v2974 = vld [vmem:[#allocation2 + $0xb0] sm:$0xff]
      %v2975 = vld [vmem:[%s2934 + $0x2] sm:$0xff]
      %v2976 = vld [vmem:[%s2934 + $0xa] sm:$0xff]
      %v2977 = vld [vmem:[%s2934 + $0x1a] sm:$0xff]
      %v2978 = vld [vmem:[%s2934 + $0x22] sm:$0xff]
      %v2979 = vld [vmem:[%s2934 + $0x32] sm:$0xff]
      %v2980 = vld [vmem:[%s2934 + $0x3a] sm:$0xff]
      %v2981 = vld [vmem:[%s2934 + $0x4a] sm:$0xff]
      %v2982 = vld [vmem:[%s2934 + $0x52] sm:$0xff]
      %v2983 = vld [vmem:[%s2934 + $0x62] sm:$0xff]
      %v2984 = vld [vmem:[%s2934 + $0x6a] sm:$0xff]
      %v2985 = vld [vmem:[%s2934 + $0x7a] sm:$0xff]
      %v2986 = vld [vmem:[%s2934 + $0x82] sm:$0xff]
      %v2987 = vld [vmem:[%s2934 + $0x92] sm:$0xff]
      %v2988 = vld [vmem:[%s2934 + $0x9a] sm:$0xff]
      %v2989 = vld [vmem:[%s2934 + $0xaa] sm:$0xff]
      %v2990 = vld [vmem:[%s2934 + $0xb2] sm:$0xff]
      %v2991 = vadd.f32 %v2775, %v2959
      %v2992 = vadd.f32 %v2776, %v2960
      %v2993 = vadd.f32 %v2777, %v2961
      %v2994 = vadd.f32 %v2778, %v2962
      %v2995 = vadd.f32 %v2779, %v2963
      %v2996 = vadd.f32 %v2780, %v2964
      %v2997 = vadd.f32 %v2781, %v2965
      %v2998 = vadd.f32 %v2782, %v2966
      %v2999 = vadd.f32 %v2783, %v2967
      %v3000 = vadd.f32 %v2784, %v2968
      %v3001 = vadd.f32 %v2785, %v2969
      %v3002 = vadd.f32 %v2786, %v2970
      %v3003 = vadd.f32 %v2787, %v2971
      %v3004 = vadd.f32 %v2788, %v2972
      %v3005 = vadd.f32 %v2789, %v2973
      %v3006 = vadd.f32 %v2790, %v2974
      %v3007 = vadd.f32 %v2991, %v2975
      %v3008 = vadd.f32 %v2992, %v2976
      %v3009 = vadd.f32 %v2993, %v2977
      %v3010 = vadd.f32 %v2994, %v2978
      %v3011 = vadd.f32 %v2995, %v2979
      %v3012 = vadd.f32 %v2996, %v2980
      %v3013 = vadd.f32 %v2997, %v2981
      %v3014 = vadd.f32 %v2998, %v2982
      %v3015 = vadd.f32 %v2999, %v2983
      %v3016 = vadd.f32 %v3000, %v2984
      %v3017 = vadd.f32 %v3001, %v2985
      %v3018 = vadd.f32 %v3002, %v2986
      %v3019 = vadd.f32 %v3003, %v2987
      %v3020 = vadd.f32 %v3004, %v2988
      %v3021 = vadd.f32 %v3005, %v2989
      %v3022 = vadd.f32 %v3006, %v2990
      %v3023 = vld [vmem:[%s8] sm:$0x1]
      %v3025 = vlaneseq
      %v3026 = vshrl.u32 %v3025, 7
      %v3027 = vsub.s32 0, %v3026
      %v3028 = vrot.slane %v3023, %v3027
      %v3030 = vadd.f32 %v3007, %v3028
      %v3031 = vadd.f32 %v3008, %v3028
      %v3032 = vadd.f32 %v3009, %v3028
      %v3033 = vadd.f32 %v3010, %v3028
      %v3034 = vadd.f32 %v3011, %v3028
      %v3035 = vadd.f32 %v3012, %v3028
      %v3036 = vadd.f32 %v3013, %v3028
      %v3037 = vadd.f32 %v3014, %v3028
      %v3038 = vadd.f32 %v3015, %v3028
      %v3039 = vadd.f32 %v3016, %v3028
      %v3040 = vadd.f32 %v3017, %v3028
      %v3041 = vadd.f32 %v3018, %v3028
      %v3042 = vadd.f32 %v3019, %v3028
      %v3043 = vadd.f32 %v3020, %v3028
      %v3044 = vadd.f32 %v3021, %v3028
      %v3045 = vadd.f32 %v3022, %v3028
      %v3046 = vmax.f32 %v3030, 0.0
      %v3047 = vmax.f32 %v3031, 0.0
      %v3048 = vmax.f32 %v3032, 0.0
      %v3049 = vmax.f32 %v3033, 0.0
      %v3050 = vmax.f32 %v3034, 0.0
      %v3051 = vmax.f32 %v3035, 0.0
      %v3052 = vmax.f32 %v3036, 0.0
      %v3053 = vmax.f32 %v3037, 0.0
      %v3054 = vmax.f32 %v3038, 0.0
      %v3055 = vmax.f32 %v3039, 0.0
      %v3056 = vmax.f32 %v3040, 0.0
      %v3057 = vmax.f32 %v3041, 0.0
      %v3058 = vmax.f32 %v3042, 0.0
      %v3059 = vmax.f32 %v3043, 0.0
      %v3060 = vmax.f32 %v3044, 0.0
      %v3061 = vmax.f32 %v3045, 0.0
      %v3062 = vpack.c.bf16 %v3047, %v3046
      %v3063 = vpack.c.bf16 %v3049, %v3048
      %v3064 = vpack.c.bf16 %v3051, %v3050
      %v3065 = vpack.c.bf16 %v3053, %v3052
      %v3066 = vpack.c.bf16 %v3055, %v3054
      %v3067 = vpack.c.bf16 %v3057, %v3056
      %v3068 = vpack.c.bf16 %v3059, %v3058
      %v3069 = vpack.c.bf16 %v3061, %v3060
      %v3078 = vunpack.c.l.b16 %v3062
      %v3079 = vunpack.c.h.b16 %v3062
      %v3080 = vunpack.c.l.b16 %v3063
      %v3081 = vunpack.c.h.b16 %v3063
      %v3082 = vunpack.c.l.b16 %v3064
      %v3083 = vunpack.c.h.b16 %v3064
      %v3084 = vunpack.c.l.b16 %v3065
      %v3085 = vunpack.c.h.b16 %v3065
      %v3086 = vunpack.c.l.b16 %v3066
      %v3087 = vunpack.c.h.b16 %v3066
      %v3088 = vunpack.c.l.b16 %v3067
      %v3089 = vunpack.c.h.b16 %v3067
      %v3090 = vunpack.c.l.b16 %v3068
      %v3091 = vunpack.c.h.b16 %v3068
      %v3092 = vunpack.c.l.b16 %v3069
      %v3093 = vunpack.c.h.b16 %v3069
      %v3094 = vpack.c.b16 %v3078, %v3078
      %v3095 = vpack.c.b16 %v3079, %v3079
      %v3096 = vpack.c.b16 %v3080, %v3080
      %v3097 = vpack.c.b16 %v3081, %v3081
      %v3098 = vpack.c.b16 %v3082, %v3082
      %v3099 = vpack.c.b16 %v3083, %v3083
      %v3100 = vpack.c.b16 %v3084, %v3084
      %v3101 = vpack.c.b16 %v3085, %v3085
      %v3102 = vpack.c.b16 %v3086, %v3086
      %v3103 = vpack.c.b16 %v3087, %v3087
      %v3104 = vpack.c.b16 %v3088, %v3088
      %v3105 = vpack.c.b16 %v3089, %v3089
      %v3106 = vpack.c.b16 %v3090, %v3090
      %v3107 = vpack.c.b16 %v3091, %v3091
      %v3108 = vpack.c.b16 %v3092, %v3092
      %v3109 = vpack.c.b16 %v3093, %v3093
      %vm3126 = vcmask 27648
      %3127 = vst.msk [vmem:[%s662] sm:$0xf] %vm3126, %v3094
      %3128 = vst.msk [vmem:[%s662 + $0x4] sm:$0xf] %vm3126, %v3095
      %3129 = vst.msk [vmem:[%s662 + $0x8] sm:$0xf] %vm3126, %v3096
      %3130 = vst.msk [vmem:[%s662 + $0xc] sm:$0xf] %vm3126, %v3097
      %3131 = vst.msk [vmem:[%s662 + $0x10] sm:$0xf] %vm3126, %v3098
      %3132 = vst.msk [vmem:[%s662 + $0x14] sm:$0xf] %vm3126, %v3099
      %3133 = vst.msk [vmem:[%s662 + $0x18] sm:$0xf] %vm3126, %v3100
      %3134 = vst.msk [vmem:[%s662 + $0x1c] sm:$0xf] %vm3126, %v3101
      %3135 = vst.msk [vmem:[%s662 + $0x20] sm:$0xf] %vm3126, %v3102
      %3136 = vst.msk [vmem:[%s662 + $0x24] sm:$0xf] %vm3126, %v3103
      %3137 = vst.msk [vmem:[%s662 + $0x28] sm:$0xf] %vm3126, %v3104
      %3138 = vst.msk [vmem:[%s662 + $0x2c] sm:$0xf] %vm3126, %v3105
      %3139 = vst.msk [vmem:[%s662 + $0x30] sm:$0xf] %vm3126, %v3106
      %3140 = vst.msk [vmem:[%s662 + $0x34] sm:$0xf] %vm3126, %v3107
      %3141 = vst.msk [vmem:[%s662 + $0x38] sm:$0xf] %vm3126, %v3108
      %3142 = vst.msk [vmem:[%s662 + $0x3c] sm:$0xf] %vm3126, %v3109
      %s3143 = smul.u32 8, %s25
      %p3144 = scmp.lt.s32.totalorder %s24, 1
      %s3145 = scalar_select %p3144, %s24, 1
      %p3146 = scmp.lt.s32.totalorder %s3143, 15
      %s3147 = scalar_select %p3146, %s3143, 15
      %s3148 = smul.addr %s3147, 2
      %s3149 = smul.addr %s3145, 32
      %s3150 = sadd.s32 %s3148, %s3149
      %s3151 = smul.addr %s3150, 4
      %s3152 = scalar_lea.vmem %s9, %s3151
      // Predicated region
      $region57: #{upconv_forward.4} parent=55 // pred_check
        %p3153 = pneg %p315
      $region58: #{upconv_forward.4} parent=55 // pred_check_branch
        %3155 = sbr.rel (%p3153) target = $region60
      $region59: #{upconv_forward.4} parent=55 // pred_region
        %s3156 = smul.u32 8, %s25
      $region60: #{upconv_forward.4} parent=55 // pred_fallthru
        _
    $region56: #{upconv_forward.4} parent=5 // pred_fallthru
      _
    %p3157 = scmp.le.s32.totalorder 2, %s15
    // Predicated region
    $region61: #{upconv_forward.4} parent=5 // pred_check
      %p3158 = pneg %p3157
    $region62: #{upconv_forward.4} parent=5 // pred_check_branch
      %3160 = sbr.rel (%p3158) target = $region64
    $region63: #{upconv_forward.4} parent=5 // pred_region
      %s3161 = ssub.s32 %s15, 2
      // Predicated region
      $region65: #{upconv_forward.4} parent=63 // pred_check
        %p3162 = pneg %p321
      $region66: #{upconv_forward.4} parent=63 // pred_check_branch
        %3164 = sbr.rel (%p3162) target = $region68
      $region67: #{upconv_forward.4} parent=63 // pred_region
        %s3165 = smul.u32 8, %s27
        %p3166 = scmp.lt.s32.totalorder %s26, 1
        %s3167 = scalar_select %p3166, %s26, 1
        %p3168 = scmp.lt.s32.totalorder %s3165, 15
        %s3169 = scalar_select %p3168, %s3165, 15
        %s3170 = smul.addr %s3169, 2
        %s3171 = smul.addr %s3167, 32
        %s3172 = sadd.s32 %s3170, %s3171
        %s3173 = smul.addr %s3172, 4
        %s3174 = scalar_lea.vmem %s9, %s3173
      $region68: #{upconv_forward.4} parent=63 // pred_fallthru
        _
    $region64: #{upconv_forward.4} parent=5 // pred_fallthru
      _
  $region6: #{upconv_forward.4} parent=0 // loop_footer
    %s19 = sadd.s32 1, %s15
  $region7: #{upconv_forward.4} parent=0 // loop_footer_branch
    %14 = sbr.rel target = $region3
  $region8: #{upconv_forward.4} parent=0 // loop_exit
    _

</llo_original>
